<compile_context>
chip_gen: v7x
topology: tpu7x:2x2x1
jax: 0.10.0
libtpu: 0.0.40
codegen_flags: <defaults>
</compile_context>

<pallas_src>
import functools
import math

import jax
import jax.numpy as jnp
from jax import lax
from jax.experimental import pallas as pl
from jax.experimental.pallas import tpu as pltpu


def _cross_attn_kernel(rgb_ref, depth_ref,
                       wq_t_ref, bq_ref, wkv_t_ref, bkv_ref,
                       wout_t_ref, bout_ref, gamma_ref, beta_ref,
                       o_ref, kv_ref, *,
                       num_heads, head_dim, ln_eps, compute_dtype, recip_approx):
    E = num_heads * head_dim
    rgb = rgb_ref[0]                       # (Tq, E) f32 — kept f32 for residual
    Tq = rgb.shape[0]
    Lk = kv_ref.shape[0]

    # ---- K/V in-projection: once per batch element, cached in VMEM ----------
    # (qi grid axis is "arbitrary", so this cross-iteration dependency is safe.)
    @pl.when(pl.program_id(1) == 0)
    def _():
        depth = depth_ref[0].astype(compute_dtype)                       # (Lk, E)
        kv = jnp.dot(depth, wkv_t_ref[...],
                     preferred_element_type=jnp.float32) + bkv_ref[...]  # (Lk, 2E) f32
        kv_ref[...] = kv.astype(kv_ref.dtype)

    # ---- Q in-projection (1/sqrt(head_dim) scale + bias folded into wq/bq) --
    q = jnp.dot(rgb.astype(compute_dtype), wq_t_ref[...],
                preferred_element_type=jnp.float32) + bq_ref[...]        # (Tq, E) f32

    k = kv_ref[:, :E]                                                    # (Lk, E)
    v = kv_ref[:, E:]                                                    # (Lk, E)

    # ---- multi-head attention: one batched contraction over heads -----------
    # TODO(synk): if the Mosaic lowering of these head-batched einsums shows
    # costly per-step relayouts for head_dim < 128, pre-arrange q/k/v head-major
    # (pltpu.einshape) and write PV per head into a lane-dense (Tq, E) scratch.
    q_h = q.astype(compute_dtype).reshape(Tq, num_heads, head_dim)
    k_h = k.reshape(Lk, num_heads, head_dim)
    v_h = v.reshape(Lk, num_heads, head_dim)

    s = jnp.einsum("qhd,khd->hqk", q_h, k_h,
                   preferred_element_type=jnp.float32)                   # (H,Tq,Lk) f32
    s = s - jnp.max(s, axis=-1, keepdims=True)
    p = jnp.exp(s)                                                       # f32 softmax math
    inv = pl.reciprocal(jnp.sum(p, axis=-1, keepdims=True), approx=recip_approx)
    p = (p * inv).astype(compute_dtype)

    attn = jnp.einsum("hqk,khd->qhd", p, v_h,
                      preferred_element_type=jnp.float32).reshape(Tq, E)  # (Tq, E) f32

    # ---- out-projection + residual (f32 rgb) + LayerNorm (f32) --------------
    y = (jnp.dot(attn.astype(compute_dtype), wout_t_ref[...],
                 preferred_element_type=jnp.float32)
         + bout_ref[...] + rgb)
    mean = jnp.mean(y, axis=-1, keepdims=True)
    var = jnp.mean(jnp.square(y - mean), axis=-1, keepdims=True)
    y = (y - mean) * lax.rsqrt(var + ln_eps)
    # Lane-dense (block_q, E) store (E multiple of 128) — important on v5e.
    o_ref[0] = (y * gamma_ref[...] + beta_ref[...]).astype(o_ref.dtype)


def _pick_block_q(Lq):
    for cand in (256, 128, 64, 32, 16, 8):
        if Lq % cand == 0:
            return cand
    # TODO(synk): ragged Lq falls back to a single (Lq, E) block; a masked tail
    # tile would be better for very long non-multiple-of-8 sequences.
    return Lq


def cross_attention_pallas(rgb, depth, params, *, num_heads,
                           compute_dtype=jnp.bfloat16, ln_eps=1e-5,
                           block_q=None, single_buffer_weights=True):
    B, Lq, E = rgb.shape
    _, Lk, _ = depth.shape
    assert E % num_heads == 0 and E % 128 == 0
    head_dim = E // num_heads
    w_in, b_in, w_out, b_out, gamma, beta = params

    # ---- one-time (XLA-side) weight prep: transpose / fuse / fold / cast -----
    scale = 1.0 / math.sqrt(head_dim)
    wq_t = (w_in[:E] * scale).T.astype(compute_dtype)      # (E, E)  scale folded in
    bq = (b_in[:, :E] * scale).astype(jnp.float32)         # (1, E)
    wkv_t = w_in[E:].T.astype(compute_dtype)               # (E, 2E) fused K/V proj
    bkv = b_in[:, E:].astype(jnp.float32)                  # (1, 2E)
    wout_t = w_out.T.astype(compute_dtype)                 # (E, E)
    bout = b_out.astype(jnp.float32)                       # (1, E)
    gamma = gamma.astype(jnp.float32)
    beta = beta.astype(jnp.float32)

    if block_q is None:
        block_q = _pick_block_q(Lq)
    num_q_blocks = Lq // block_q

    recip_approx = jnp.dtype(compute_dtype) != jnp.dtype(jnp.float32)
    kernel = functools.partial(
        _cross_attn_kernel, num_heads=num_heads, head_dim=head_dim,
        ln_eps=ln_eps, compute_dtype=compute_dtype, recip_approx=recip_approx)

    # ---- cost estimate (KV projection counted once per batch) ---------------
    w_bytes = jnp.dtype(compute_dtype).itemsize
    flops = 2 * B * (Lq * E * E                              # Q projection
                     + Lk * E * 2 * E                        # fused K/V projection
                     + 2 * num_heads * Lq * Lk * head_dim    # QK^T + PV
                     + Lq * E * E)                           # out projection
    bytes_accessed = (4 * (2 * B * Lq * E + B * Lk * E)      # f32 activations in/out
                      + w_bytes * 4 * E * E                  # compute-dtype weights
                      + 4 * 7 * E)                           # biases + LN params
    cost = pl.CostEstimate(flops=flops,
                           transcendentals=B * num_heads * Lq * Lk,
                           bytes_accessed=bytes_accessed)

    # ---- VMEM budget: computed, capped at 48 MiB (v7x has 64 MiB total) -----
    # TODO(synk): for very long Lk add an "arbitrary" Lk grid axis with a
    # flash-style online-softmax accumulator so the (H, Tq, Lk) scores and the
    # full-Lk depth tile stop being the VMEM high-water mark on v7x.
    wbuf = 1 if single_buffer_weights else 2
    vmem_est = (wbuf * w_bytes * (4 * E * E + 5 * E)                     # weights/biases
                + 2 * 4 * (block_q * E + Lk * E)                         # rgb+depth blocks
                + 2 * jnp.dtype(rgb.dtype).itemsize * block_q * E        # output block
                + w_bytes * Lk * 2 * E                                   # KV scratch
                + 4 * (2 * num_heads * block_q * Lk + 3 * block_q * E))  # scores + f32 tmps
    vmem_limit = int(min(48 * 1024 * 1024, max(2 * vmem_est, 16 * 1024 * 1024)))

    def _const_spec(shape, buffered):
        index_map = lambda b, qi: (0,) * len(shape)
        if buffered:
            # Grid-invariant operands: single-buffer to cut VMEM (v7x).
            return pl.BlockSpec(shape, index_map, pipeline_mode=pl.Buffered(1))
        return pl.BlockSpec(shape, index_map)

    def _call(buffer_weights_once):
        in_specs = [
            pl.BlockSpec((1, block_q, E), lambda b, qi: (b, qi, 0)),   # rgb (query)
            pl.BlockSpec((1, Lk, E), lambda b, qi: (b, 0, 0)),         # depth (k/v src)
            _const_spec((E, E), buffer_weights_once),                  # wq_t (scaled)
            _const_spec((1, E), buffer_weights_once),                  # bq (scaled)
            _const_spec((E, 2 * E), buffer_weights_once),              # wkv_t
            _const_spec((1, 2 * E), buffer_weights_once),              # bkv
            _const_spec((E, E), buffer_weights_once),                  # wout_t
            _const_spec((1, E), buffer_weights_once),                  # bout
            _const_spec((1, E), buffer_weights_once),                  # LN gamma
            _const_spec((1, E), buffer_weights_once),                  # LN beta
        ]
        return pl.pallas_call(
            kernel,
            out_shape=jax.ShapeDtypeStruct((B, Lq, E), rgb.dtype),
            grid=(B, num_q_blocks),
            in_specs=in_specs,
            out_specs=pl.BlockSpec((1, block_q, E), lambda b, qi: (b, qi, 0)),
            scratch_shapes=[pltpu.VMEM((Lk, 2 * E), compute_dtype)],   # cached K|V
            compiler_params=pltpu.CompilerParams(
                # batch stays "parallel" (megacore split on v7x); qi must be
                # "arbitrary" because of the cached-KV cross-iteration dep.
                dimension_semantics=("parallel", "arbitrary"),
                vmem_limit_bytes=vmem_limit),
            cost_estimate=cost,
        )(rgb, depth, wq_t, bq, wkv_t, bkv, wout_t, bout, gamma, beta)

    if single_buffer_weights:
        try:
            return _call(True)
        except Exception:
            # Graceful fallback if this JAX build rejects pl.Buffered(1) on
            # top-level pallas_call BlockSpecs (semantics are identical; only
            # the VMEM footprint differs).
            pass
    return _call(False)


def cross_attention_ref(rgb, depth, params, *, num_heads):
    """Pure-JAX reference matching nn.MultiheadAttention + residual + LayerNorm."""
    w_in, b_in, w_out, b_out, gamma, beta = params
    B, Lq, E = rgb.shape
    Lk = depth.shape[1]
    D = E // num_heads
    wq, wk, wv = w_in[0:E], w_in[E:2 * E], w_in[2 * E:3 * E]
    bq, bk, bv = b_in[0, 0:E], b_in[0, E:2 * E], b_in[0, 2 * E:3 * E]
    q = rgb @ wq.T + bq
    k = depth @ wk.T + bk
    v = depth @ wv.T + bv
    q = q.reshape(B, Lq, num_heads, D).transpose(0, 2, 1, 3) / math.sqrt(D)
    k = k.reshape(B, Lk, num_heads, D).transpose(0, 2, 1, 3)
    v = v.reshape(B, Lk, num_heads, D).transpose(0, 2, 1, 3)
    s = jnp.einsum("bhqd,bhkd->bhqk", q, k)
    p = jax.nn.softmax(s, axis=-1)
    attn = jnp.einsum("bhqk,bhkd->bhqd", p, v).transpose(0, 2, 1, 3).reshape(B, Lq, E)
    attn_out = attn @ w_out.T + b_out[0]
    y = attn_out + rgb
    mean = jnp.mean(y, axis=-1, keepdims=True)
    var = jnp.mean((y - mean) ** 2, axis=-1, keepdims=True)
    return (y - mean) * lax.rsqrt(var + 1e-5) * gamma[0] + beta[0]


def make_params(key, embed_dim):
    """Deterministic synthetic parameters with nn.MultiheadAttention/LayerNorm shapes."""
    E = embed_dim
    k1, k2, k3, k4 = jax.random.split(key, 4)
    w_in = jax.random.normal(k1, (3 * E, E), jnp.float32) * (1.0 / math.sqrt(E))
    b_in = jax.random.normal(k3, (1, 3 * E), jnp.float32) * 0.02
    w_out = jax.random.normal(k2, (E, E), jnp.float32) * (1.0 / math.sqrt(E))
    b_out = jax.random.normal(k4, (1, E), jnp.float32) * 0.02
    gamma = jnp.ones((1, E), jnp.float32)   # LayerNorm weight
    beta = jnp.zeros((1, E), jnp.float32)   # LayerNorm bias
    return (w_in, b_in, w_out, b_out, gamma, beta)


if __name__ == "__main__":
    # Small shapes consistent with the module (lane-dense E = 128, 4 heads).
    B, Lq, Lk, E, H = 2, 16, 16, 128, 4

    key = jax.random.PRNGKey(0)
    k_rgb, k_depth, k_param = jax.random.split(key, 3)
    rgb = jax.random.normal(k_rgb, (B, Lq, E), jnp.float32)
    depth = jax.random.normal(k_depth, (B, Lk, E), jnp.float32)
    params = make_params(k_param, E)

    ref = cross_attention_ref(rgb, depth, params, num_heads=H)

    # Strict semantic check: full f32 matmuls, exact softmax reciprocal.
    out_f32 = jax.block_until_ready(
        cross_attention_pallas(rgb, depth, params, num_heads=H,
                               compute_dtype=jnp.float32))
    assert out_f32.shape == (B, Lq, E)
    assert jnp.allclose(out_f32, ref, atol=2e-3, rtol=2e-3), \
        "f32-mode mismatch vs JAX reference"

    # Performance mode: bf16 MXU inputs for all matmuls, f32 accumulation and
    # f32 softmax/LayerNorm -> looser tolerance expected from bf16 rounding.
    out_bf16 = jax.block_until_ready(
        cross_attention_pallas(rgb, depth, params, num_heads=H,
                               compute_dtype=jnp.bfloat16))
    assert out_bf16.shape == (B, Lq, E)
    assert jnp.allclose(out_bf16, ref, atol=5e-2, rtol=5e-2), \
        "bf16-mode mismatch vs JAX reference"

    print("KERNEL_OK")
</pallas_src>

<mosaic_0001>
module attributes {stable_mosaic.version = 11 : i64} {
  func.func @_cross_attn_kernel(%arg0: i32, %arg1: i32, %arg2: memref<1x16x128xf32, #tpu.memory_space<vmem>>, %arg3: memref<1x16x128xf32, #tpu.memory_space<vmem>>, %arg4: memref<128x128xf32, #tpu.memory_space<vmem>>, %arg5: memref<1x128xf32, #tpu.memory_space<vmem>>, %arg6: memref<128x256xf32, #tpu.memory_space<vmem>>, %arg7: memref<1x256xf32, #tpu.memory_space<vmem>>, %arg8: memref<128x128xf32, #tpu.memory_space<vmem>>, %arg9: memref<1x128xf32, #tpu.memory_space<vmem>>, %arg10: memref<1x128xf32, #tpu.memory_space<vmem>>, %arg11: memref<1x128xf32, #tpu.memory_space<vmem>>, %arg12: memref<1x16x128xf32, #tpu.memory_space<vmem>>, %arg13: memref<16x256xf32, #tpu.memory_space<vmem>>) attributes {dimension_semantics = [#tpu.dimension_semantics<parallel>, #tpu.dimension_semantics<arbitrary>], iteration_bounds = array<i64: 2, 1>, scalar_prefetch = 0 : i64, scratch_operands = 1 : i64, tpu.core_type = #tpu.core_type<tc>, window_params = [{transform_indices = @transform_0, window_bounds = array<i64: 1, 16, 128>}, {transform_indices = @transform_1, window_bounds = array<i64: 1, 16, 128>}, {pipeline_mode = #tpu.pipeline_mode<synchronous>, transform_indices = @transform_2, window_bounds = array<i64: 128, 128>}, {pipeline_mode = #tpu.pipeline_mode<synchronous>, transform_indices = @transform_3, window_bounds = array<i64: 1, 128>}, {pipeline_mode = #tpu.pipeline_mode<synchronous>, transform_indices = @transform_4, window_bounds = array<i64: 128, 256>}, {pipeline_mode = #tpu.pipeline_mode<synchronous>, transform_indices = @transform_5, window_bounds = array<i64: 1, 256>}, {pipeline_mode = #tpu.pipeline_mode<synchronous>, transform_indices = @transform_6, window_bounds = array<i64: 128, 128>}, {pipeline_mode = #tpu.pipeline_mode<synchronous>, transform_indices = @transform_7, window_bounds = array<i64: 1, 128>}, {pipeline_mode = #tpu.pipeline_mode<synchronous>, transform_indices = @transform_8, window_bounds = array<i64: 1, 128>}, {pipeline_mode = #tpu.pipeline_mode<synchronous>, transform_indices = @transform_9, window_bounds = array<i64: 1, 128>}, {transform_indices = @transform_10, window_bounds = array<i64: 1, 16, 128>}]} {
    %c0 = arith.constant 0 : index
    %c0_0 = arith.constant 0 : index
    %c0_1 = arith.constant 0 : index
    %0 = vector.load %arg2[%c0, %c0_0, %c0_1] : memref<1x16x128xf32, #tpu.memory_space<vmem>>, vector<1x16x128xf32>
    %1 = vector.shape_cast %0 : vector<1x16x128xf32> to vector<16x128xf32>
    %c0_i32 = arith.constant 0 : i32
    %2 = arith.cmpi eq, %arg1, %c0_i32 : i32
    %3 = arith.extui %2 : i1 to i32
    %c0_i32_2 = arith.constant 0 : i32
    %4 = arith.cmpi ne, %3, %c0_i32_2 : i32
    scf.if %4 {
      %c0_31 = arith.constant 0 : index
      %c0_32 = arith.constant 0 : index
      %c0_33 = arith.constant 0 : index
      %62 = vector.load %arg3[%c0_31, %c0_32, %c0_33] : memref<1x16x128xf32, #tpu.memory_space<vmem>>, vector<1x16x128xf32>
      %63 = vector.shape_cast %62 : vector<1x16x128xf32> to vector<16x128xf32>
      %c0_34 = arith.constant 0 : index
      %c0_35 = arith.constant 0 : index
      %64 = vector.load %arg6[%c0_34, %c0_35] : memref<128x256xf32, #tpu.memory_space<vmem>>, vector<128x256xf32>
      %cst_36 = arith.constant dense<0.000000e+00> : vector<16x256xf32>
      %65 = tpu.matmul %63, %64, %cst_36 {dimension_numbers = #tpu.dot_dimension_numbers<[1], [0], [0], [1], [0, 0, 1, 1], [], []>} : vector<16x128xf32>, vector<128x256xf32>, vector<16x256xf32> -> vector<16x256xf32>
      %c0_37 = arith.constant 0 : index
      %c0_38 = arith.constant 0 : index
      %66 = vector.load %arg7[%c0_37, %c0_38] : memref<1x256xf32, #tpu.memory_space<vmem>>, vector<1x256xf32>
      %67 = vector.broadcast %66 : vector<1x256xf32> to vector<16x256xf32>
      %68 = arith.addf %65, %67 : vector<16x256xf32>
      %c0_39 = arith.constant 0 : index
      %c0_40 = arith.constant 0 : index
      %69 = vector.load %arg13[%c0_39, %c0_40] : memref<16x256xf32, #tpu.memory_space<vmem>>, vector<16x256xf32>
      tpu.vector_store %arg13[%c0_39, %c0_40], %68 {strides = array<i32>} : memref<16x256xf32, #tpu.memory_space<vmem>>, vector<16x256xf32>,
    } else {
    }
    %c0_3 = arith.constant 0 : index
    %c0_4 = arith.constant 0 : index
    %5 = vector.load %arg4[%c0_3, %c0_4] : memref<128x128xf32, #tpu.memory_space<vmem>>, vector<128x128xf32>
    %cst = arith.constant dense<0.000000e+00> : vector<16x128xf32>
    %6 = tpu.matmul %1, %5, %cst {dimension_numbers = #tpu.dot_dimension_numbers<[1], [0], [0], [1], [0, 0, 1, 1], [], []>} : vector<16x128xf32>, vector<128x128xf32>, vector<16x128xf32> -> vector<16x128xf32>
    %c0_5 = arith.constant 0 : index
    %c0_6 = arith.constant 0 : index
    %7 = vector.load %arg5[%c0_5, %c0_6] : memref<1x128xf32, #tpu.memory_space<vmem>>, vector<1x128xf32>
    %8 = vector.broadcast %7 : vector<1x128xf32> to vector<16x128xf32>
    %9 = arith.addf %6, %8 : vector<16x128xf32>
    %c0_7 = arith.constant 0 : index
    %c0_8 = arith.constant 0 : index
    %10 = vector.load %arg13[%c0_7, %c0_8] : memref<16x256xf32, #tpu.memory_space<vmem>>, vector<16x128xf32>
    %c0_9 = arith.constant 0 : index
    %c128 = arith.constant 128 : index
    %11 = vector.load %arg13[%c0_9, %c128] : memref<16x256xf32, #tpu.memory_space<vmem>>, vector<16x128xf32>
    %12 = vector.shape_cast %9 : vector<16x128xf32> to vector<16x4x32xf32>
    %13 = vector.shape_cast %10 : vector<16x128xf32> to vector<16x4x32xf32>
    %14 = vector.shape_cast %11 : vector<16x128xf32> to vector<16x4x32xf32>
    "tpu.trace_start"() <{level = 10 : i32, message = "qhd,khd->hqk"}> : () -> ()
    %cst_10 = arith.constant dense<0.000000e+00> : vector<4x16x16xf32>
    %15 = tpu.matmul %12, %13, %cst_10 {dimension_numbers = #tpu.dot_dimension_numbers<[2], [2], [0], [0], [0, 1, 0, 0, 1, 0], [1], [1]>} : vector<16x4x32xf32>, vector<16x4x32xf32>, vector<4x16x16xf32> -> vector<4x16x16xf32>
    "tpu.trace_stop"() : () -> ()
    %cst_11 = arith.constant dense<0xFF800000> : vector<4x16xf32>
    %16 = vector.multi_reduction <maximumf>, %15, %cst_11 [2] : vector<4x16x16xf32> to vector<4x16xf32>
    %17 = vector.shape_cast %16 : vector<4x16xf32> to vector<4x16x1xf32>
    %18 = vector.broadcast %17 : vector<4x16x1xf32> to vector<4x16x16xf32>
    %19 = arith.subf %15, %18 : vector<4x16x16xf32>
    %20 = math.exp %19 : vector<4x16x16xf32>
    %cst_12 = arith.constant dense<0.000000e+00> : vector<4x16xf32>
    %21 = vector.multi_reduction <add>, %20, %cst_12 [2] : vector<4x16x16xf32> to vector<4x16xf32>
    %22 = vector.shape_cast %21 : vector<4x16xf32> to vector<4x16x1xf32>
    %23 = tpu.reciprocal %22 : vector<4x16x1xf32> -> vector<4x16x1xf32>
    %24 = vector.broadcast %23 : vector<4x16x1xf32> to vector<4x16x16xf32>
    %25 = arith.mulf %20, %24 : vector<4x16x16xf32>
    "tpu.trace_start"() <{level = 10 : i32, message = "hqk,khd->qhd"}> : () -> ()
    %cst_13 = arith.constant dense<0.000000e+00> : vector<4x32x16xf32>
    %26 = tpu.matmul %14, %25, %cst_13 {dimension_numbers = #tpu.dot_dimension_numbers<[0], [2], [2], [1], [0, 1, 0, 2, 1, 1], [1], [0]>} : vector<16x4x32xf32>, vector<4x16x16xf32>, vector<4x32x16xf32> -> vector<4x32x16xf32>
    %27 = tpu.transpose %26, [2, 0, 1] : vector<4x32x16xf32> -> vector<16x4x32xf32>
    "tpu.trace_stop"() : () -> ()
    %28 = vector.shape_cast %27 : vector<16x4x32xf32> to vector<16x128xf32>
    %c0_14 = arith.constant 0 : index
    %c0_15 = arith.constant 0 : index
    %29 = vector.load %arg8[%c0_14, %c0_15] : memref<128x128xf32, #tpu.memory_space<vmem>>, vector<128x128xf32>
    %cst_16 = arith.constant dense<0.000000e+00> : vector<16x128xf32>
    %30 = tpu.matmul %28, %29, %cst_16 {dimension_numbers = #tpu.dot_dimension_numbers<[1], [0], [0], [1], [0, 0, 1, 1], [], []>} : vector<16x128xf32>, vector<128x128xf32>, vector<16x128xf32> -> vector<16x128xf32>
    %c0_17 = arith.constant 0 : index
    %c0_18 = arith.constant 0 : index
    %31 = vector.load %arg9[%c0_17, %c0_18] : memref<1x128xf32, #tpu.memory_space<vmem>>, vector<1x128xf32>
    %32 = vector.broadcast %31 : vector<1x128xf32> to vector<16x128xf32>
    %33 = arith.addf %30, %32 : vector<16x128xf32>
    %34 = arith.addf %33, %1 : vector<16x128xf32>
    %cst_19 = arith.constant dense<0.000000e+00> : vector<16xf32>
    %35 = vector.multi_reduction <add>, %34, %cst_19 [1] : vector<16x128xf32> to vector<16xf32>
    %36 = vector.shape_cast %35 : vector<16xf32> to vector<16x1xf32>
    %cst_20 = arith.constant 1.280000e+02 : f32
    %37 = vector.broadcast %cst_20 : f32 to vector<16x1xf32>
    %38 = arith.divf %36, %37 : vector<16x1xf32>
    %39 = vector.broadcast %38 : vector<16x1xf32> to vector<16x128xf32>
    %40 = arith.subf %34, %39 : vector<16x128xf32>
    %41 = arith.mulf %40, %40 : vector<16x128xf32>
    %cst_21 = arith.constant dense<0.000000e+00> : vector<16xf32>
    %42 = vector.multi_reduction <add>, %41, %cst_21 [1] : vector<16x128xf32> to vector<16xf32>
    %43 = vector.shape_cast %42 : vector<16xf32> to vector<16x1xf32>
    %cst_22 = arith.constant 1.280000e+02 : f32
    %44 = vector.broadcast %cst_22 : f32 to vector<16x1xf32>
    %45 = arith.divf %43, %44 : vector<16x1xf32>
    %46 = vector.broadcast %38 : vector<16x1xf32> to vector<16x128xf32>
    %47 = arith.subf %34, %46 : vector<16x128xf32>
    %cst_23 = arith.constant 9.99999974E-6 : f32
    %48 = vector.broadcast %cst_23 : f32 to vector<16x1xf32>
    %49 = arith.addf %45, %48 : vector<16x1xf32>
    %50 = math.rsqrt %49 : vector<16x1xf32>
    %51 = vector.broadcast %50 : vector<16x1xf32> to vector<16x128xf32>
    %52 = arith.mulf %47, %51 : vector<16x128xf32>
    %c0_24 = arith.constant 0 : index
    %c0_25 = arith.constant 0 : index
    %53 = vector.load %arg10[%c0_24, %c0_25] : memref<1x128xf32, #tpu.memory_space<vmem>>, vector<1x128xf32>
    %54 = vector.broadcast %53 : vector<1x128xf32> to vector<16x128xf32>
    %55 = arith.mulf %52, %54 : vector<16x128xf32>
    %c0_26 = arith.constant 0 : index
    %c0_27 = arith.constant 0 : index
    %56 = vector.load %arg11[%c0_26, %c0_27] : memref<1x128xf32, #tpu.memory_space<vmem>>, vector<1x128xf32>
    %57 = vector.broadcast %56 : vector<1x128xf32> to vector<16x128xf32>
    %58 = arith.addf %55, %57 : vector<16x128xf32>
    %c0_28 = arith.constant 0 : index
    %c0_29 = arith.constant 0 : index
    %c0_30 = arith.constant 0 : index
    %59 = vector.load %arg12[%c0_28, %c0_29, %c0_30] : memref<1x16x128xf32, #tpu.memory_space<vmem>>, vector<1x16x128xf32>
    %60 = vector.shape_cast %59 : vector<1x16x128xf32> to vector<16x128xf32>
    %61 = vector.shape_cast %58 : vector<16x128xf32> to vector<1x16x128xf32>
    tpu.vector_store %arg12[%c0_28, %c0_29, %c0_30], %61 {strides = array<i32>} : memref<1x16x128xf32, #tpu.memory_space<vmem>>, vector<1x16x128xf32>,
    return
  }
  func.func @transform_0(%arg0: i32, %arg1: i32) -> (i32, i32, i32) {
    %c0_i32 = arith.constant 0 : i32
    %c0_i32_0 = arith.constant 0 : i32
    return %arg0, %arg1, %c0_i32 : i32, i32, i32
  }
  func.func @transform_1(%arg0: i32, %arg1: i32) -> (i32, i32, i32) {
    %c0_i32 = arith.constant 0 : i32
    %c0_i32_0 = arith.constant 0 : i32
    %c0_i32_1 = arith.constant 0 : i32
    return %arg0, %c0_i32, %c0_i32_0 : i32, i32, i32
  }
  func.func @transform_2(%arg0: i32, %arg1: i32) -> (i32, i32) {
    %c0_i32 = arith.constant 0 : i32
    %c0_i32_0 = arith.constant 0 : i32
    %c0_i32_1 = arith.constant 0 : i32
    return %c0_i32, %c0_i32_0 : i32, i32
  }
  func.func @transform_3(%arg0: i32, %arg1: i32) -> (i32, i32) {
    %c0_i32 = arith.constant 0 : i32
    %c0_i32_0 = arith.constant 0 : i32
    %c0_i32_1 = arith.constant 0 : i32
    return %c0_i32, %c0_i32_0 : i32, i32
  }
  func.func @transform_4(%arg0: i32, %arg1: i32) -> (i32, i32) {
    %c0_i32 = arith.constant 0 : i32
    %c0_i32_0 = arith.constant 0 : i32
    %c0_i32_1 = arith.constant 0 : i32
    return %c0_i32, %c0_i32_0 : i32, i32
  }
  func.func @transform_5(%arg0: i32, %arg1: i32) -> (i32, i32) {
    %c0_i32 = arith.constant 0 : i32
    %c0_i32_0 = arith.constant 0 : i32
    %c0_i32_1 = arith.constant 0 : i32
    return %c0_i32, %c0_i32_0 : i32, i32
  }
  func.func @transform_6(%arg0: i32, %arg1: i32) -> (i32, i32) {
    %c0_i32 = arith.constant 0 : i32
    %c0_i32_0 = arith.constant 0 : i32
    %c0_i32_1 = arith.constant 0 : i32
    return %c0_i32, %c0_i32_0 : i32, i32
  }
  func.func @transform_7(%arg0: i32, %arg1: i32) -> (i32, i32) {
    %c0_i32 = arith.constant 0 : i32
    %c0_i32_0 = arith.constant 0 : i32
    %c0_i32_1 = arith.constant 0 : i32
    return %c0_i32, %c0_i32_0 : i32, i32
  }
  func.func @transform_8(%arg0: i32, %arg1: i32) -> (i32, i32) {
    %c0_i32 = arith.constant 0 : i32
    %c0_i32_0 = arith.constant 0 : i32
    %c0_i32_1 = arith.constant 0 : i32
    return %c0_i32, %c0_i32_0 : i32, i32
  }
  func.func @transform_9(%arg0: i32, %arg1: i32) -> (i32, i32) {
    %c0_i32 = arith.constant 0 : i32
    %c0_i32_0 = arith.constant 0 : i32
    %c0_i32_1 = arith.constant 0 : i32
    return %c0_i32, %c0_i32_0 : i32, i32
  }
  func.func @transform_10(%arg0: i32, %arg1: i32) -> (i32, i32, i32) {
    %c0_i32 = arith.constant 0 : i32
    %c0_i32_0 = arith.constant 0 : i32
    return %arg0, %arg1, %c0_i32 : i32, i32, i32
  }
}

module attributes {stable_mosaic.version = 11 : i64} {
  func.func @_cross_attn_kernel(%arg0: i32, %arg1: i32, %arg2: memref<1x16x128xf32, #tpu.memory_space<vmem>>, %arg3: memref<1x16x128xf32, #tpu.memory_space<vmem>>, %arg4: memref<128x128xf32, #tpu.memory_space<vmem>>, %arg5: memref<1x128xf32, #tpu.memory_space<vmem>>, %arg6: memref<128x256xf32, #tpu.memory_space<vmem>>, %arg7: memref<1x256xf32, #tpu.memory_space<vmem>>, %arg8: memref<128x128xf32, #tpu.memory_space<vmem>>, %arg9: memref<1x128xf32, #tpu.memory_space<vmem>>, %arg10: memref<1x128xf32, #tpu.memory_space<vmem>>, %arg11: memref<1x128xf32, #tpu.memory_space<vmem>>, %arg12: memref<1x16x128xf32, #tpu.memory_space<vmem>>, %arg13: memref<16x256xf32, #tpu.memory_space<vmem>>) attributes {dimension_semantics = [#tpu.dimension_semantics<parallel>, #tpu.dimension_semantics<arbitrary>], iteration_bounds = array<i64: 2, 1>, scalar_prefetch = 0 : i64, scratch_operands = 1 : i64, tpu.core_type = #tpu.core_type<tc>, window_params = [{transform_indices = @transform_0, window_bounds = array<i64: 1, 16, 128>}, {transform_indices = @transform_1, window_bounds = array<i64: 1, 16, 128>}, {pipeline_mode = #tpu.pipeline_mode<synchronous>, transform_indices = @transform_2, window_bounds = array<i64: 128, 128>}, {pipeline_mode = #tpu.pipeline_mode<synchronous>, transform_indices = @transform_3, window_bounds = array<i64: 1, 128>}, {pipeline_mode = #tpu.pipeline_mode<synchronous>, transform_indices = @transform_4, window_bounds = array<i64: 128, 256>}, {pipeline_mode = #tpu.pipeline_mode<synchronous>, transform_indices = @transform_5, window_bounds = array<i64: 1, 256>}, {pipeline_mode = #tpu.pipeline_mode<synchronous>, transform_indices = @transform_6, window_bounds = array<i64: 128, 128>}, {pipeline_mode = #tpu.pipeline_mode<synchronous>, transform_indices = @transform_7, window_bounds = array<i64: 1, 128>}, {pipeline_mode = #tpu.pipeline_mode<synchronous>, transform_indices = @transform_8, window_bounds = array<i64: 1, 128>}, {pipeline_mode = #tpu.pipeline_mode<synchronous>, transform_indices = @transform_9, window_bounds = array<i64: 1, 128>}, {transform_indices = @transform_10, window_bounds = array<i64: 1, 16, 128>}]} {
    %c0 = arith.constant 0 : index
    %c0_0 = arith.constant 0 : index
    %c0_1 = arith.constant 0 : index
    %0 = vector.load %arg2[%c0, %c0_0, %c0_1] : memref<1x16x128xf32, #tpu.memory_space<vmem>>, vector<1x16x128xf32>
    %1 = vector.shape_cast %0 : vector<1x16x128xf32> to vector<16x128xf32>
    %c0_i32 = arith.constant 0 : i32
    %2 = arith.cmpi eq, %arg1, %c0_i32 : i32
    %3 = arith.extui %2 : i1 to i32
    %c0_i32_2 = arith.constant 0 : i32
    %4 = arith.cmpi ne, %3, %c0_i32_2 : i32
    scf.if %4 {
      %c0_31 = arith.constant 0 : index
      %c0_32 = arith.constant 0 : index
      %c0_33 = arith.constant 0 : index
      %62 = vector.load %arg3[%c0_31, %c0_32, %c0_33] : memref<1x16x128xf32, #tpu.memory_space<vmem>>, vector<1x16x128xf32>
      %63 = vector.shape_cast %62 : vector<1x16x128xf32> to vector<16x128xf32>
      %c0_34 = arith.constant 0 : index
      %c0_35 = arith.constant 0 : index
      %64 = vector.load %arg6[%c0_34, %c0_35] : memref<128x256xf32, #tpu.memory_space<vmem>>, vector<128x256xf32>
      %cst_36 = arith.constant dense<0.000000e+00> : vector<16x256xf32>
      %65 = tpu.matmul %63, %64, %cst_36 {dimension_numbers = #tpu.dot_dimension_numbers<[1], [0], [0], [1], [0, 0, 1, 1], [], []>} : vector<16x128xf32>, vector<128x256xf32>, vector<16x256xf32> -> vector<16x256xf32>
      %c0_37 = arith.constant 0 : index
      %c0_38 = arith.constant 0 : index
      %66 = vector.load %arg7[%c0_37, %c0_38] : memref<1x256xf32, #tpu.memory_space<vmem>>, vector<1x256xf32>
      %67 = vector.broadcast %66 : vector<1x256xf32> to vector<16x256xf32>
      %68 = arith.addf %65, %67 : vector<16x256xf32>
      %c0_39 = arith.constant 0 : index
      %c0_40 = arith.constant 0 : index
      %69 = vector.load %arg13[%c0_39, %c0_40] : memref<16x256xf32, #tpu.memory_space<vmem>>, vector<16x256xf32>
      tpu.vector_store %arg13[%c0_39, %c0_40], %68 {strides = array<i32>} : memref<16x256xf32, #tpu.memory_space<vmem>>, vector<16x256xf32>,
    } else {
    }
    %c0_3 = arith.constant 0 : index
    %c0_4 = arith.constant 0 : index
    %5 = vector.load %arg4[%c0_3, %c0_4] : memref<128x128xf32, #tpu.memory_space<vmem>>, vector<128x128xf32>
    %cst = arith.constant dense<0.000000e+00> : vector<16x128xf32>
    %6 = tpu.matmul %1, %5, %cst {dimension_numbers = #tpu.dot_dimension_numbers<[1], [0], [0], [1], [0, 0, 1, 1], [], []>} : vector<16x128xf32>, vector<128x128xf32>, vector<16x128xf32> -> vector<16x128xf32>
    %c0_5 = arith.constant 0 : index
    %c0_6 = arith.constant 0 : index
    %7 = vector.load %arg5[%c0_5, %c0_6] : memref<1x128xf32, #tpu.memory_space<vmem>>, vector<1x128xf32>
    %8 = vector.broadcast %7 : vector<1x128xf32> to vector<16x128xf32>
    %9 = arith.addf %6, %8 : vector<16x128xf32>
    %c0_7 = arith.constant 0 : index
    %c0_8 = arith.constant 0 : index
    %10 = vector.load %arg13[%c0_7, %c0_8] : memref<16x256xf32, #tpu.memory_space<vmem>>, vector<16x128xf32>
    %c0_9 = arith.constant 0 : index
    %c128 = arith.constant 128 : index
    %11 = vector.load %arg13[%c0_9, %c128] : memref<16x256xf32, #tpu.memory_space<vmem>>, vector<16x128xf32>
    %12 = vector.shape_cast %9 : vector<16x128xf32> to vector<16x4x32xf32>
    %13 = vector.shape_cast %10 : vector<16x128xf32> to vector<16x4x32xf32>
    %14 = vector.shape_cast %11 : vector<16x128xf32> to vector<16x4x32xf32>
    "tpu.trace_start"() <{level = 10 : i32, message = "qhd,khd->hqk"}> : () -> ()
    %cst_10 = arith.constant dense<0.000000e+00> : vector<4x16x16xf32>
    %15 = tpu.matmul %12, %13, %cst_10 {dimension_numbers = #tpu.dot_dimension_numbers<[2], [2], [0], [0], [0, 1, 0, 0, 1, 0], [1], [1]>} : vector<16x4x32xf32>, vector<16x4x32xf32>, vector<4x16x16xf32> -> vector<4x16x16xf32>
    "tpu.trace_stop"() : () -> ()
    %cst_11 = arith.constant dense<0xFF800000> : vector<4x16xf32>
    %16 = vector.multi_reduction <maximumf>, %15, %cst_11 [2] : vector<4x16x16xf32> to vector<4x16xf32>
    %17 = vector.shape_cast %16 : vector<4x16xf32> to vector<4x16x1xf32>
    %18 = vector.broadcast %17 : vector<4x16x1xf32> to vector<4x16x16xf32>
    %19 = arith.subf %15, %18 : vector<4x16x16xf32>
    %20 = math.exp %19 : vector<4x16x16xf32>
    %cst_12 = arith.constant dense<0.000000e+00> : vector<4x16xf32>
    %21 = vector.multi_reduction <add>, %20, %cst_12 [2] : vector<4x16x16xf32> to vector<4x16xf32>
    %22 = vector.shape_cast %21 : vector<4x16xf32> to vector<4x16x1xf32>
    %23 = tpu.reciprocal %22 : vector<4x16x1xf32> -> vector<4x16x1xf32>
    %24 = vector.broadcast %23 : vector<4x16x1xf32> to vector<4x16x16xf32>
    %25 = arith.mulf %20, %24 : vector<4x16x16xf32>
    "tpu.trace_start"() <{level = 10 : i32, message = "hqk,khd->qhd"}> : () -> ()
    %cst_13 = arith.constant dense<0.000000e+00> : vector<4x32x16xf32>
    %26 = tpu.matmul %14, %25, %cst_13 {dimension_numbers = #tpu.dot_dimension_numbers<[0], [2], [2], [1], [0, 1, 0, 2, 1, 1], [1], [0]>} : vector<16x4x32xf32>, vector<4x16x16xf32>, vector<4x32x16xf32> -> vector<4x32x16xf32>
    %27 = tpu.transpose %26, [2, 0, 1] : vector<4x32x16xf32> -> vector<16x4x32xf32>
    "tpu.trace_stop"() : () -> ()
    %28 = vector.shape_cast %27 : vector<16x4x32xf32> to vector<16x128xf32>
    %c0_14 = arith.constant 0 : index
    %c0_15 = arith.constant 0 : index
    %29 = vector.load %arg8[%c0_14, %c0_15] : memref<128x128xf32, #tpu.memory_space<vmem>>, vector<128x128xf32>
    %cst_16 = arith.constant dense<0.000000e+00> : vector<16x128xf32>
    %30 = tpu.matmul %28, %29, %cst_16 {dimension_numbers = #tpu.dot_dimension_numbers<[1], [0], [0], [1], [0, 0, 1, 1], [], []>} : vector<16x128xf32>, vector<128x128xf32>, vector<16x128xf32> -> vector<16x128xf32>
    %c0_17 = arith.constant 0 : index
    %c0_18 = arith.constant 0 : index
    %31 = vector.load %arg9[%c0_17, %c0_18] : memref<1x128xf32, #tpu.memory_space<vmem>>, vector<1x128xf32>
    %32 = vector.broadcast %31 : vector<1x128xf32> to vector<16x128xf32>
    %33 = arith.addf %30, %32 : vector<16x128xf32>
    %34 = arith.addf %33, %1 : vector<16x128xf32>
    %cst_19 = arith.constant dense<0.000000e+00> : vector<16xf32>
    %35 = vector.multi_reduction <add>, %34, %cst_19 [1] : vector<16x128xf32> to vector<16xf32>
    %36 = vector.shape_cast %35 : vector<16xf32> to vector<16x1xf32>
    %cst_20 = arith.constant 1.280000e+02 : f32
    %37 = vector.broadcast %cst_20 : f32 to vector<16x1xf32>
    %38 = arith.divf %36, %37 : vector<16x1xf32>
    %39 = vector.broadcast %38 : vector<16x1xf32> to vector<16x128xf32>
    %40 = arith.subf %34, %39 : vector<16x128xf32>
    %41 = arith.mulf %40, %40 : vector<16x128xf32>
    %cst_21 = arith.constant dense<0.000000e+00> : vector<16xf32>
    %42 = vector.multi_reduction <add>, %41, %cst_21 [1] : vector<16x128xf32> to vector<16xf32>
    %43 = vector.shape_cast %42 : vector<16xf32> to vector<16x1xf32>
    %cst_22 = arith.constant 1.280000e+02 : f32
    %44 = vector.broadcast %cst_22 : f32 to vector<16x1xf32>
    %45 = arith.divf %43, %44 : vector<16x1xf32>
    %46 = vector.broadcast %38 : vector<16x1xf32> to vector<16x128xf32>
    %47 = arith.subf %34, %46 : vector<16x128xf32>
    %cst_23 = arith.constant 9.99999974E-6 : f32
    %48 = vector.broadcast %cst_23 : f32 to vector<16x1xf32>
    %49 = arith.addf %45, %48 : vector<16x1xf32>
    %50 = math.rsqrt %49 : vector<16x1xf32>
    %51 = vector.broadcast %50 : vector<16x1xf32> to vector<16x128xf32>
    %52 = arith.mulf %47, %51 : vector<16x128xf32>
    %c0_24 = arith.constant 0 : index
    %c0_25 = arith.constant 0 : index
    %53 = vector.load %arg10[%c0_24, %c0_25] : memref<1x128xf32, #tpu.memory_space<vmem>>, vector<1x128xf32>
    %54 = vector.broadcast %53 : vector<1x128xf32> to vector<16x128xf32>
    %55 = arith.mulf %52, %54 : vector<16x128xf32>
    %c0_26 = arith.constant 0 : index
    %c0_27 = arith.constant 0 : index
    %56 = vector.load %arg11[%c0_26, %c0_27] : memref<1x128xf32, #tpu.memory_space<vmem>>, vector<1x128xf32>
    %57 = vector.broadcast %56 : vector<1x128xf32> to vector<16x128xf32>
    %58 = arith.addf %55, %57 : vector<16x128xf32>
    %c0_28 = arith.constant 0 : index
    %c0_29 = arith.constant 0 : index
    %c0_30 = arith.constant 0 : index
    %59 = vector.load %arg12[%c0_28, %c0_29, %c0_30] : memref<1x16x128xf32, #tpu.memory_space<vmem>>, vector<1x16x128xf32>
    %60 = vector.shape_cast %59 : vector<1x16x128xf32> to vector<16x128xf32>
    %61 = vector.shape_cast %58 : vector<16x128xf32> to vector<1x16x128xf32>
    tpu.vector_store %arg12[%c0_28, %c0_29, %c0_30], %61 {strides = array<i32>} : memref<1x16x128xf32, #tpu.memory_space<vmem>>, vector<1x16x128xf32>,
    return
  }
  func.func @transform_0(%arg0: i32, %arg1: i32) -> (i32, i32, i32) {
    %c0_i32 = arith.constant 0 : i32
    %c0_i32_0 = arith.constant 0 : i32
    return %arg0, %arg1, %c0_i32 : i32, i32, i32
  }
  func.func @transform_1(%arg0: i32, %arg1: i32) -> (i32, i32, i32) {
    %c0_i32 = arith.constant 0 : i32
    %c0_i32_0 = arith.constant 0 : i32
    %c0_i32_1 = arith.constant 0 : i32
    return %arg0, %c0_i32, %c0_i32_0 : i32, i32, i32
  }
  func.func @transform_2(%arg0: i32, %arg1: i32) -> (i32, i32) {
    %c0_i32 = arith.constant 0 : i32
    %c0_i32_0 = arith.constant 0 : i32
    %c0_i32_1 = arith.constant 0 : i32
    return %c0_i32, %c0_i32_0 : i32, i32
  }
  func.func @transform_3(%arg0: i32, %arg1: i32) -> (i32, i32) {
    %c0_i32 = arith.constant 0 : i32
    %c0_i32_0 = arith.constant 0 : i32
    %c0_i32_1 = arith.constant 0 : i32
    return %c0_i32, %c0_i32_0 : i32, i32
  }
  func.func @transform_4(%arg0: i32, %arg1: i32) -> (i32, i32) {
    %c0_i32 = arith.constant 0 : i32
    %c0_i32_0 = arith.constant 0 : i32
    %c0_i32_1 = arith.constant 0 : i32
    return %c0_i32, %c0_i32_0 : i32, i32
  }
  func.func @transform_5(%arg0: i32, %arg1: i32) -> (i32, i32) {
    %c0_i32 = arith.constant 0 : i32
    %c0_i32_0 = arith.constant 0 : i32
    %c0_i32_1 = arith.constant 0 : i32
    return %c0_i32, %c0_i32_0 : i32, i32
  }
  func.func @transform_6(%arg0: i32, %arg1: i32) -> (i32, i32) {
    %c0_i32 = arith.constant 0 : i32
    %c0_i32_0 = arith.constant 0 : i32
    %c0_i32_1 = arith.constant 0 : i32
    return %c0_i32, %c0_i32_0 : i32, i32
  }
  func.func @transform_7(%arg0: i32, %arg1: i32) -> (i32, i32) {
    %c0_i32 = arith.constant 0 : i32
    %c0_i32_0 = arith.constant 0 : i32
    %c0_i32_1 = arith.constant 0 : i32
    return %c0_i32, %c0_i32_0 : i32, i32
  }
  func.func @transform_8(%arg0: i32, %arg1: i32) -> (i32, i32) {
    %c0_i32 = arith.constant 0 : i32
    %c0_i32_0 = arith.constant 0 : i32
    %c0_i32_1 = arith.constant 0 : i32
    return %c0_i32, %c0_i32_0 : i32, i32
  }
  func.func @transform_9(%arg0: i32, %arg1: i32) -> (i32, i32) {
    %c0_i32 = arith.constant 0 : i32
    %c0_i32_0 = arith.constant 0 : i32
    %c0_i32_1 = arith.constant 0 : i32
    return %c0_i32, %c0_i32_0 : i32, i32
  }
  func.func @transform_10(%arg0: i32, %arg1: i32) -> (i32, i32, i32) {
    %c0_i32 = arith.constant 0 : i32
    %c0_i32_0 = arith.constant 0 : i32
    return %arg0, %arg1, %c0_i32 : i32, i32, i32
  }
}

</mosaic_0001>

<llo_original>
// kernel: tpu_custom_call.1
$region0: #{tpu_custom_call.1}
  #allocation0 [shape = 'u32[]', space=smem, size = 0x4, offset = 0x4, fixed_abs, tag = 'smem constant byte address 0x4 - core index']
  #allocation1 [shape = 'u32[144,128]{1,0:T(1,128)}', space=vmem, size = 0x12000, scoped, tag = 'internal scratch']
  #allocation2 [shape = 'f32[16,256]{1,0:T(8,128)}', space=vmem, size = 0x4000, scoped, tag = 'scratch operand']
  %s0 = inlined_call_operand.hbm [shape: f32[2,16,128], index: 0, kind: input, shape index: {}]
  %s1 = inlined_call_operand.hbm [shape: f32[2,16,128], index: 1, kind: input, shape index: {}]
  %s2 = inlined_call_operand.hbm [shape: f32[128,128], index: 2, kind: input, shape index: {}]
  %s3 = inlined_call_operand.vmem [shape: f32[1,128], index: 3, kind: input, shape index: {}]
  %s4 = inlined_call_operand.hbm [shape: f32[128,256], index: 4, kind: input, shape index: {}]
  %s5 = inlined_call_operand.vmem [shape: f32[1,256], index: 5, kind: input, shape index: {}]
  %s6 = inlined_call_operand.hbm [shape: f32[128,128], index: 6, kind: input, shape index: {}]
  %s7 = inlined_call_operand.vmem [shape: f32[1,128], index: 7, kind: input, shape index: {}]
  %s8 = inlined_call_operand.vmem [shape: f32[1,128], index: 8, kind: input, shape index: {}]
  %s9 = inlined_call_operand.vmem [shape: f32[1,128], index: 9, kind: input, shape index: {}]
  %s10 = inlined_call_operand.hbm [shape: f32[2,16,128], index: 10, kind: output, shape index: {}]
  %s11 = sld [smem:[#allocation0]]
  $region97: #{tpu_custom_call.1} parent=0
    _
  %s13 = ssub.s32 1, %s11
  %s14 = scalar_select 0, %s13, %s11
  $region1: #{tpu_custom_call.1} parent=0
    #allocation3 [shape = 'u8[16384]{0}', space=vmem, size = 0x4000, scoped, tag = 'input window, operand 0']
    #allocation4 [shape = 's32[2]{0}', space=sflag, size = 0x8, scoped, tag = 'scoped memory for tpu_custom_call.1']
    #allocation5 [shape = 's32[2]{0}', space=sflag, size = 0x8, scoped, tag = 'scoped memory for tpu_custom_call.1']
    #allocation6 [shape = 'u8[16384]{0}', space=vmem, size = 0x4000, scoped, tag = 'input window, operand 1']
    #allocation7 [shape = 's32[2]{0}', space=sflag, size = 0x8, scoped, tag = 'scoped memory for tpu_custom_call.1']
    #allocation8 [shape = 'u8[65536]{0}', space=vmem, size = 0x10000, scoped, tag = 'input window, operand 2, single buffered']
    #allocation9 [shape = 'u8[131072]{0}', space=vmem, size = 0x20000, scoped, tag = 'input window, operand 4, single buffered']
    #allocation10 [shape = 's32[1]{0}', space=sflag, size = 0x4, scoped, tag = 'scoped memory for tpu_custom_call.1']
    #allocation11 [shape = 'u8[65536]{0}', space=vmem, size = 0x10000, scoped, tag = 'input window, operand 6, single buffered']
    #allocation12 [shape = 'u8[16384]{0}', space=vmem, size = 0x4000, scoped, tag = 'output window, operand 0']
    %15 = vsyncpa [#allocation4], 0
    %s16 = scalar_lea.sflag [#allocation4], 1
    %17 = vsyncpa %s16, 0
    %18 = vsyncpa [#allocation7], 0
    %s19 = scalar_lea.sflag [#allocation7], 1
    %20 = vsyncpa %s19, 0
    %21 = vsyncpa [#allocation10], 0
    %22 = vsyncpa [#allocation5], 0
    %s23 = scalar_lea.sflag [#allocation5], 1
    %24 = vsyncpa %s23, 0
    loop: start=0, step=1, limit=4
    $region2: #{tpu_custom_call.1} parent=1 // loop_pre_header
      _
    $region3: #{tpu_custom_call.1} parent=1 // loop_header
      %s26 = sphi 0, %s30
      %p27 = scmp.ge.s32.totalorder %s26, 4
      %s33 = sphi 0, %s45
      %s34 = sphi 0, %s41
      %s35 = sphi 0, %s33
      %s36 = sphi 0, %s34
      %s37 = sphi 0, %s35
      %s38 = sphi 0, %s36
      %s50 = sphi 0, %s52
      %s53 = sphi 0, %s50
      %s54 = sphi 0, %s53
      %s70 = sphi 0, %s54
      %s76 = sphi 0, %s78
      %s79 = sphi 0, %s76
      %s80 = sphi 0, %s79
      %s96 = sphi 0, %s80
      %s100 = sphi 0, %s100
      %s102 = sphi 0, %s100
      %s103 = sphi 0, %s102
      %s117 = sphi 0, %s103
      %s121 = sphi 0, %s121
      %s123 = sphi 0, %s121
      %s124 = sphi 0, %s123
      %s138 = sphi 0, %s124
      %s142 = sphi 0, %s142
      %s144 = sphi 0, %s142
      %s145 = sphi 0, %s144
      %s159 = sphi 0, %s145
      %s163 = sphi 0, %s163
      %s165 = sphi 0, %s163
      %s166 = sphi 0, %s165
      %s180 = sphi 0, %s166
      %s184 = sphi 0, %s184
      %s186 = sphi 0, %s184
      %s187 = sphi 0, %s186
      %s201 = sphi 0, %s187
      %s205 = sphi 0, %s205
      %s207 = sphi 0, %s205
      %s208 = sphi 0, %s207
      %s222 = sphi 0, %s208
      %s226 = sphi 0, %s226
      %s228 = sphi 0, %s226
      %s229 = sphi 0, %s228
      %s243 = sphi 0, %s229
      %s247 = sphi 0, %s247
      %s249 = sphi 0, %s247
      %s250 = sphi 0, %s249
      %s264 = sphi 0, %s250
      %s272 = sphi 0, %s274
      %s275 = sphi 0, %s272
      %s276 = sphi 0, %s275
      %s292 = sphi 0, %s276
    $region4: #{tpu_custom_call.1} parent=1 // loop_header_branch
      %29 = sbr.rel (%p27) target = $region8
    $region5: #{tpu_custom_call.1} parent=1 // loop_body
      %s31 = ssub.s32 %s26, 1
      %s32 = ssub.s32 %s26, 2
      %s39 = sadd.s32 1, %s34
      %p40 = scmp.ge.s32.totalorder %s39, 1
      %s41 = scalar_select %p40, 0, %s39
      %s42 = sadd.s32 1, %s33
      %s43 = scalar_select %p40, %s42, %s33
      %p44 = scmp.ge.s32.totalorder %s43, 2
      %s45 = scalar_select %p44, 0, %s43
      %s46 = ssub.s32 %s33, %s45
      %s47 = ssub.s32 %s34, %s41
      %s48 = sor.u32 %s46, %s47
      %p49 = scmp.eq.s32.totalorder %s48, 0
      %s51 = sadd.s32 %s50, 1
      %s52 = scalar_select %p49, %s50, %s51
      %p55 = pneg %p49
      %p56 = scmp.eq.s32.totalorder %s26, 1
      %p57 = por %p55, %p56
      %p58 = scmp.ne.s32.totalorder %s50, %s53
      %p59 = scmp.eq.s32.totalorder %s26, 0
      %p60 = por %p58, %p59
      %p61 = scmp.ne.s32.totalorder %s50, %s53
      %p62 = scmp.eq.s32.totalorder %s31, 1
      %p63 = por %p61, %p62
      %p64 = scmp.ne.s32.totalorder %s53, %s54
      %p65 = scmp.eq.s32.totalorder %s31, 0
      %p66 = por %p64, %p65
      %p67 = scmp.ne.s32.totalorder %s53, %s54
      %p68 = scmp.eq.s32.totalorder %s32, 1
      %p69 = por %p67, %p68
      %p71 = scmp.ne.s32.totalorder %s54, %s70
      %p72 = scmp.eq.s32.totalorder %s32, 0
      %p73 = por %p71, %p72
      %s74 = ssub.s32 %s33, %s45
      %p75 = scmp.eq.s32.totalorder %s74, 0
      %s77 = sadd.s32 %s76, 1
      %s78 = scalar_select %p75, %s76, %s77
      %p81 = pneg %p75
      %p82 = scmp.eq.s32.totalorder %s26, 1
      %p83 = por %p81, %p82
      %p84 = scmp.ne.s32.totalorder %s76, %s79
      %p85 = scmp.eq.s32.totalorder %s26, 0
      %p86 = por %p84, %p85
      %p87 = scmp.ne.s32.totalorder %s76, %s79
      %p88 = scmp.eq.s32.totalorder %s31, 1
      %p89 = por %p87, %p88
      %p90 = scmp.ne.s32.totalorder %s79, %s80
      %p91 = scmp.eq.s32.totalorder %s31, 0
      %p92 = por %p90, %p91
      %p93 = scmp.ne.s32.totalorder %s79, %s80
      %p94 = scmp.eq.s32.totalorder %s32, 1
      %p95 = por %p93, %p94
      %p97 = scmp.ne.s32.totalorder %s80, %s96
      %p98 = scmp.eq.s32.totalorder %s32, 0
      %p99 = por %p97, %p98
      %s101 = sadd.s32 %s100, 1
      %p104 = scmp.eq.s32.totalorder %s26, 1
      %p105 = scmp.ne.s32.totalorder %s100, %s102
      %p106 = scmp.eq.s32.totalorder %s26, 0
      %p107 = por %p105, %p106
      %p108 = scmp.ne.s32.totalorder %s100, %s102
      %p109 = scmp.eq.s32.totalorder %s31, 1
      %p110 = por %p108, %p109
      %p111 = scmp.ne.s32.totalorder %s102, %s103
      %p112 = scmp.eq.s32.totalorder %s31, 0
      %p113 = por %p111, %p112
      %p114 = scmp.ne.s32.totalorder %s102, %s103
      %p115 = scmp.eq.s32.totalorder %s32, 1
      %p116 = por %p114, %p115
      %p118 = scmp.ne.s32.totalorder %s103, %s117
      %p119 = scmp.eq.s32.totalorder %s32, 0
      %p120 = por %p118, %p119
      %s122 = sadd.s32 %s121, 1
      %p125 = scmp.eq.s32.totalorder %s26, 1
      %p126 = scmp.ne.s32.totalorder %s121, %s123
      %p127 = scmp.eq.s32.totalorder %s26, 0
      %p128 = por %p126, %p127
      %p129 = scmp.ne.s32.totalorder %s121, %s123
      %p130 = scmp.eq.s32.totalorder %s31, 1
      %p131 = por %p129, %p130
      %p132 = scmp.ne.s32.totalorder %s123, %s124
      %p133 = scmp.eq.s32.totalorder %s31, 0
      %p134 = por %p132, %p133
      %p135 = scmp.ne.s32.totalorder %s123, %s124
      %p136 = scmp.eq.s32.totalorder %s32, 1
      %p137 = por %p135, %p136
      %p139 = scmp.ne.s32.totalorder %s124, %s138
      %p140 = scmp.eq.s32.totalorder %s32, 0
      %p141 = por %p139, %p140
      %s143 = sadd.s32 %s142, 1
      %p146 = scmp.eq.s32.totalorder %s26, 1
      %p147 = scmp.ne.s32.totalorder %s142, %s144
      %p148 = scmp.eq.s32.totalorder %s26, 0
      %p149 = por %p147, %p148
      %p150 = scmp.ne.s32.totalorder %s142, %s144
      %p151 = scmp.eq.s32.totalorder %s31, 1
      %p152 = por %p150, %p151
      %p153 = scmp.ne.s32.totalorder %s144, %s145
      %p154 = scmp.eq.s32.totalorder %s31, 0
      %p155 = por %p153, %p154
      %p156 = scmp.ne.s32.totalorder %s144, %s145
      %p157 = scmp.eq.s32.totalorder %s32, 1
      %p158 = por %p156, %p157
      %p160 = scmp.ne.s32.totalorder %s145, %s159
      %p161 = scmp.eq.s32.totalorder %s32, 0
      %p162 = por %p160, %p161
      %s164 = sadd.s32 %s163, 1
      %p167 = scmp.eq.s32.totalorder %s26, 1
      %p168 = scmp.ne.s32.totalorder %s163, %s165
      %p169 = scmp.eq.s32.totalorder %s26, 0
      %p170 = por %p168, %p169
      %p171 = scmp.ne.s32.totalorder %s163, %s165
      %p172 = scmp.eq.s32.totalorder %s31, 1
      %p173 = por %p171, %p172
      %p174 = scmp.ne.s32.totalorder %s165, %s166
      %p175 = scmp.eq.s32.totalorder %s31, 0
      %p176 = por %p174, %p175
      %p177 = scmp.ne.s32.totalorder %s165, %s166
      %p178 = scmp.eq.s32.totalorder %s32, 1
      %p179 = por %p177, %p178
      %p181 = scmp.ne.s32.totalorder %s166, %s180
      %p182 = scmp.eq.s32.totalorder %s32, 0
      %p183 = por %p181, %p182
      %s185 = sadd.s32 %s184, 1
      %p188 = scmp.eq.s32.totalorder %s26, 1
      %p189 = scmp.ne.s32.totalorder %s184, %s186
      %p190 = scmp.eq.s32.totalorder %s26, 0
      %p191 = por %p189, %p190
      %p192 = scmp.ne.s32.totalorder %s184, %s186
      %p193 = scmp.eq.s32.totalorder %s31, 1
      %p194 = por %p192, %p193
      %p195 = scmp.ne.s32.totalorder %s186, %s187
      %p196 = scmp.eq.s32.totalorder %s31, 0
      %p197 = por %p195, %p196
      %p198 = scmp.ne.s32.totalorder %s186, %s187
      %p199 = scmp.eq.s32.totalorder %s32, 1
      %p200 = por %p198, %p199
      %p202 = scmp.ne.s32.totalorder %s187, %s201
      %p203 = scmp.eq.s32.totalorder %s32, 0
      %p204 = por %p202, %p203
      %s206 = sadd.s32 %s205, 1
      %p209 = scmp.eq.s32.totalorder %s26, 1
      %p210 = scmp.ne.s32.totalorder %s205, %s207
      %p211 = scmp.eq.s32.totalorder %s26, 0
      %p212 = por %p210, %p211
      %p213 = scmp.ne.s32.totalorder %s205, %s207
      %p214 = scmp.eq.s32.totalorder %s31, 1
      %p215 = por %p213, %p214
      %p216 = scmp.ne.s32.totalorder %s207, %s208
      %p217 = scmp.eq.s32.totalorder %s31, 0
      %p218 = por %p216, %p217
      %p219 = scmp.ne.s32.totalorder %s207, %s208
      %p220 = scmp.eq.s32.totalorder %s32, 1
      %p221 = por %p219, %p220
      %p223 = scmp.ne.s32.totalorder %s208, %s222
      %p224 = scmp.eq.s32.totalorder %s32, 0
      %p225 = por %p223, %p224
      %s227 = sadd.s32 %s226, 1
      %p230 = scmp.eq.s32.totalorder %s26, 1
      %p231 = scmp.ne.s32.totalorder %s226, %s228
      %p232 = scmp.eq.s32.totalorder %s26, 0
      %p233 = por %p231, %p232
      %p234 = scmp.ne.s32.totalorder %s226, %s228
      %p235 = scmp.eq.s32.totalorder %s31, 1
      %p236 = por %p234, %p235
      %p237 = scmp.ne.s32.totalorder %s228, %s229
      %p238 = scmp.eq.s32.totalorder %s31, 0
      %p239 = por %p237, %p238
      %p240 = scmp.ne.s32.totalorder %s228, %s229
      %p241 = scmp.eq.s32.totalorder %s32, 1
      %p242 = por %p240, %p241
      %p244 = scmp.ne.s32.totalorder %s229, %s243
      %p245 = scmp.eq.s32.totalorder %s32, 0
      %p246 = por %p244, %p245
      %s248 = sadd.s32 %s247, 1
      %p251 = scmp.eq.s32.totalorder %s26, 1
      %p252 = scmp.ne.s32.totalorder %s247, %s249
      %p253 = scmp.eq.s32.totalorder %s26, 0
      %p254 = por %p252, %p253
      %p255 = scmp.ne.s32.totalorder %s247, %s249
      %p256 = scmp.eq.s32.totalorder %s31, 1
      %p257 = por %p255, %p256
      %p258 = scmp.ne.s32.totalorder %s249, %s250
      %p259 = scmp.eq.s32.totalorder %s31, 0
      %p260 = por %p258, %p259
      %p261 = scmp.ne.s32.totalorder %s249, %s250
      %p262 = scmp.eq.s32.totalorder %s32, 1
      %p263 = por %p261, %p262
      %p265 = scmp.ne.s32.totalorder %s250, %s264
      %p266 = scmp.eq.s32.totalorder %s32, 0
      %p267 = por %p265, %p266
      %s268 = ssub.s32 %s33, %s45
      %s269 = ssub.s32 %s34, %s41
      %s270 = sor.u32 %s268, %s269
      %p271 = scmp.eq.s32.totalorder %s270, 0
      %s273 = sadd.s32 %s272, 1
      %s274 = scalar_select %p271, %s272, %s273
      %p277 = pneg %p271
      %p278 = scmp.eq.s32.totalorder %s26, 1
      %p279 = por %p277, %p278
      %p280 = scmp.ne.s32.totalorder %s272, %s275
      %p281 = scmp.eq.s32.totalorder %s26, 0
      %p282 = por %p280, %p281
      %p283 = scmp.ne.s32.totalorder %s272, %s275
      %p284 = scmp.eq.s32.totalorder %s31, 1
      %p285 = por %p283, %p284
      %p286 = scmp.ne.s32.totalorder %s275, %s276
      %p287 = scmp.eq.s32.totalorder %s31, 0
      %p288 = por %p286, %p287
      %p289 = scmp.ne.s32.totalorder %s275, %s276
      %p290 = scmp.eq.s32.totalorder %s32, 1
      %p291 = por %p289, %p290
      %p293 = scmp.ne.s32.totalorder %s276, %s292
      %p294 = scmp.eq.s32.totalorder %s32, 0
      %p295 = por %p293, %p294
      %p296 = scmp.le.s32.totalorder 1, %s26
      %p297 = scmp.lt.s32.totalorder %s26, 3
      %p298 = pnand %p296, %p297
      %p299 = pneg %p298
      // Predicated region
      $region9: #{tpu_custom_call.1} parent=5 // pred_check
        _
      $region10: #{tpu_custom_call.1} parent=5 // pred_check_branch
        %301 = sbr.rel (%p298) target = $region12
      $region11: #{tpu_custom_call.1} parent=5 // pred_region
        %s302 = ssub.s32 %s26, 1
        // Predicated region
        $region13: #{tpu_custom_call.1} parent=11 // pred_check
          %p303 = pneg %p113
        $region14: #{tpu_custom_call.1} parent=11 // pred_check_branch
          %305 = sbr.rel (%p303) target = $region16
        $region15: #{tpu_custom_call.1} parent=11 // pred_region
          %s307 = ssub.s32 2048, 2048
          %308 = vsyncadd [#allocation7], %s307
          %s309 = sshll.u32 [#allocation8], 4
          %s310 = int_to_ptr.vmem [resolvable:$true] %s309
          %315 = dma.hbm_to_vmem [thread:$0]  %s2, 2048, %s310, [#allocation7], 128, 128, 8
        $region16: #{tpu_custom_call.1} parent=11 // pred_fallthru
          _
        // Predicated region
        $region17: #{tpu_custom_call.1} parent=11 // pred_check
          %p316 = pneg %p134
        $region18: #{tpu_custom_call.1} parent=11 // pred_check_branch
          %318 = sbr.rel (%p316) target = $region20
        $region19: #{tpu_custom_call.1} parent=11 // pred_region
          _
        $region20: #{tpu_custom_call.1} parent=11 // pred_fallthru
          _
        // Predicated region
        $region21: #{tpu_custom_call.1} parent=11 // pred_check
          %p319 = pneg %p155
        $region22: #{tpu_custom_call.1} parent=11 // pred_check_branch
          %321 = sbr.rel (%p319) target = $region24
        $region23: #{tpu_custom_call.1} parent=11 // pred_region
          %s323 = ssub.s32 4096, 4096
          %324 = vsyncadd [#allocation10], %s323
          %s325 = sshll.u32 [#allocation9], 4
          %s326 = int_to_ptr.vmem [resolvable:$true] %s325
          %331 = dma.hbm_to_vmem [thread:$0]  %s4, 4096, %s326, [#allocation10], 256, 256, 16
        $region24: #{tpu_custom_call.1} parent=11 // pred_fallthru
          _
        // Predicated region
        $region25: #{tpu_custom_call.1} parent=11 // pred_check
          %p332 = pneg %p176
        $region26: #{tpu_custom_call.1} parent=11 // pred_check_branch
          %334 = sbr.rel (%p332) target = $region28
        $region27: #{tpu_custom_call.1} parent=11 // pred_region
          _
        $region28: #{tpu_custom_call.1} parent=11 // pred_fallthru
          _
        // Predicated region
        $region29: #{tpu_custom_call.1} parent=11 // pred_check
          %p335 = pneg %p197
        $region30: #{tpu_custom_call.1} parent=11 // pred_check_branch
          %337 = sbr.rel (%p335) target = $region32
        $region31: #{tpu_custom_call.1} parent=11 // pred_region
          %s339 = ssub.s32 2048, 2048
          %340 = vsyncadd [#allocation10], %s339
          %s341 = sshll.u32 [#allocation11], 4
          %s342 = int_to_ptr.vmem [resolvable:$true] %s341
          %347 = dma.hbm_to_vmem [thread:$0]  %s6, 2048, %s342, [#allocation10], 128, 128, 8
        $region32: #{tpu_custom_call.1} parent=11 // pred_fallthru
          _
        // Predicated region
        $region33: #{tpu_custom_call.1} parent=11 // pred_check
          %p348 = pneg %p218
        $region34: #{tpu_custom_call.1} parent=11 // pred_check_branch
          %350 = sbr.rel (%p348) target = $region36
        $region35: #{tpu_custom_call.1} parent=11 // pred_region
          _
        $region36: #{tpu_custom_call.1} parent=11 // pred_fallthru
          _
        // Predicated region
        $region37: #{tpu_custom_call.1} parent=11 // pred_check
          %p351 = pneg %p239
        $region38: #{tpu_custom_call.1} parent=11 // pred_check_branch
          %353 = sbr.rel (%p351) target = $region40
        $region39: #{tpu_custom_call.1} parent=11 // pred_region
          _
        $region40: #{tpu_custom_call.1} parent=11 // pred_fallthru
          _
        // Predicated region
        $region41: #{tpu_custom_call.1} parent=11 // pred_check
          %p354 = pneg %p260
        $region42: #{tpu_custom_call.1} parent=11 // pred_check_branch
          %356 = sbr.rel (%p354) target = $region44
        $region43: #{tpu_custom_call.1} parent=11 // pred_region
          _
        $region44: #{tpu_custom_call.1} parent=11 // pred_fallthru
          _
      $region12: #{tpu_custom_call.1} parent=5 // pred_fallthru
        _
      %p357 = scmp.lt.s32.totalorder %s26, 2
      // Predicated region
      $region45: #{tpu_custom_call.1} parent=5 // pred_check
        %p358 = pneg %p357
      $region46: #{tpu_custom_call.1} parent=5 // pred_check_branch
        %360 = sbr.rel (%p358) target = $region48
      $region47: #{tpu_custom_call.1} parent=5 // pred_region
        // Predicated region
        $region49: #{tpu_custom_call.1} parent=47 // pred_check
          %p361 = pneg %p60
        $region50: #{tpu_custom_call.1} parent=47 // pred_check_branch
          %363 = sbr.rel (%p361) target = $region52
        $region51: #{tpu_custom_call.1} parent=47 // pred_region
          %s364 = sand.u32 %s50, 1
          %s365 = scalar_lea.sflag [#allocation4], %s364
          %s366 = sand.u32 %s50, 1
          %s367 = smul.addr %s366, 16
          %s368 = scalar_lea.vmem [#allocation3], %s367
          %s369 = smul.u32 2, %s34
          %s371 = ssub.s32 256, 256
          %372 = vsyncadd %s365, %s371
          %s373 = smul.addr %s33, 2
          %s374 = sadd.s32 %s369, %s373
          %s375 = smul.addr %s374, 128
          %s376 = scalar_lea.hbm %s0, %s375
          %s377 = sshll.u32 %s368, 4
          %s378 = int_to_ptr.vmem [resolvable:$true] %s377
          %383 = dma.hbm_to_vmem [thread:$0]  %s376, 256, %s378, %s365, 128, 128, 8
        $region52: #{tpu_custom_call.1} parent=47 // pred_fallthru
          _
        // Predicated region
        $region53: #{tpu_custom_call.1} parent=47 // pred_check
          %p384 = pneg %p86
        $region54: #{tpu_custom_call.1} parent=47 // pred_check_branch
          %386 = sbr.rel (%p384) target = $region56
        $region55: #{tpu_custom_call.1} parent=47 // pred_region
          %s387 = sand.u32 %s26, 1
          %s388 = scalar_lea.sflag [#allocation7], %s387
          %s389 = sand.u32 %s76, 1
          %s390 = smul.addr %s389, 16
          %s391 = scalar_lea.vmem [#allocation6], %s390
          %s393 = ssub.s32 256, 256
          %394 = vsyncadd %s388, %s393
          %s395 = smul.addr %s33, 2
          %s396 = smul.addr %s395, 128
          %s397 = scalar_lea.hbm %s1, %s396
          %s398 = sshll.u32 %s391, 4
          %s399 = int_to_ptr.vmem [resolvable:$true] %s398
          %404 = dma.hbm_to_vmem [thread:$0]  %s397, 256, %s399, %s388, 128, 128, 8
        $region56: #{tpu_custom_call.1} parent=47 // pred_fallthru
          _
      $region48: #{tpu_custom_call.1} parent=5 // pred_fallthru
        _
      %p405 = scmp.le.s32.totalorder 1, %s26
      %p406 = scmp.lt.s32.totalorder %s26, 3
      %p407 = pnand %p405, %p406
      %p408 = pneg %p407
      // Predicated region
      $region57: #{tpu_custom_call.1} parent=5 // pred_check
        _
      $region58: #{tpu_custom_call.1} parent=5 // pred_check_branch
        %410 = sbr.rel (%p407) target = $region60
      $region59: #{tpu_custom_call.1} parent=5 // pred_region
        %s411 = ssub.s32 %s26, 1
        %s412 = sand.u32 %s53, 1
        %s413 = scalar_lea.sflag [#allocation4], %s412
        %s414 = sand.u32 %s53, 1
        %s415 = smul.addr %s414, 16
        %s416 = scalar_lea.vmem [#allocation3], %s415
        // Predicated region
        $region61: #{tpu_custom_call.1} parent=59 // pred_check
          %p417 = pneg %p66
        $region62: #{tpu_custom_call.1} parent=59 // pred_check_branch
          %419 = sbr.rel (%p417) target = $region64
        $region63: #{tpu_custom_call.1} parent=59 // pred_region
          %420 = dma.done %s413, 256
        $region64: #{tpu_custom_call.1} parent=59 // pred_fallthru
          _
        %s421 = sand.u32 %s31, 1
        %s422 = scalar_lea.sflag [#allocation7], %s421
        %s423 = sand.u32 %s79, 1
        %s424 = smul.addr %s423, 16
        %s425 = scalar_lea.vmem [#allocation6], %s424
        // Predicated region
        $region65: #{tpu_custom_call.1} parent=59 // pred_check
          %p426 = pneg %p92
        $region66: #{tpu_custom_call.1} parent=59 // pred_check_branch
          %428 = sbr.rel (%p426) target = $region68
        $region67: #{tpu_custom_call.1} parent=59 // pred_region
          %429 = dma.done %s422, 256
        $region68: #{tpu_custom_call.1} parent=59 // pred_fallthru
          _
        // Predicated region
        $region69: #{tpu_custom_call.1} parent=59 // pred_check
          %p430 = pneg %p113
        $region70: #{tpu_custom_call.1} parent=59 // pred_check_branch
          %432 = sbr.rel (%p430) target = $region72
        $region71: #{tpu_custom_call.1} parent=59 // pred_region
          %433 = dma.done [#allocation7], 2048
        $region72: #{tpu_custom_call.1} parent=59 // pred_fallthru
          _
        // Predicated region
        $region73: #{tpu_custom_call.1} parent=59 // pred_check
          %p434 = pneg %p155
        $region74: #{tpu_custom_call.1} parent=59 // pred_check_branch
          %436 = sbr.rel (%p434) target = $region76
        $region75: #{tpu_custom_call.1} parent=59 // pred_region
          %437 = dma.done [#allocation10], 4096
        $region76: #{tpu_custom_call.1} parent=59 // pred_fallthru
          _
        // Predicated region
        $region77: #{tpu_custom_call.1} parent=59 // pred_check
          %p438 = pneg %p197
        $region78: #{tpu_custom_call.1} parent=59 // pred_check_branch
          %440 = sbr.rel (%p438) target = $region80
        $region79: #{tpu_custom_call.1} parent=59 // pred_region
          %441 = dma.done [#allocation10], 2048
        $region80: #{tpu_custom_call.1} parent=59 // pred_fallthru
          _
        %s442 = sand.u32 %s53, 1
        %s443 = scalar_lea.sflag [#allocation4], %s442
        %s444 = sand.u32 %s53, 1
        %s445 = smul.addr %s444, 16
        %s446 = scalar_lea.vmem [#allocation3], %s445
        %p447 = pneg %p66
        %p448 = pneg %p63
        %s449 = sand.u32 %s31, 1
        %s450 = scalar_lea.sflag [#allocation7], %s449
        %s451 = sand.u32 %s79, 1
        %s452 = smul.addr %s451, 16
        %s453 = scalar_lea.vmem [#allocation6], %s452
        %p454 = pneg %p92
        %p455 = pneg %p89
        %p456 = pneg %p113
        %p457 = pneg %p110
        %p458 = pneg %p134
        %p459 = pneg %p131
        %p460 = pneg %p155
        %p461 = pneg %p152
        %p462 = pneg %p176
        %p463 = pneg %p173
        %p464 = pneg %p197
        %p465 = pneg %p194
        %p466 = pneg %p218
        %p467 = pneg %p215
        %p468 = pneg %p239
        %p469 = pneg %p236
        %p470 = pneg %p260
        %p471 = pneg %p257
        %p472 = pneg %p288
        %p473 = pneg %p285
        %s474 = sand.u32 %s275, 1
        %s475 = scalar_lea.sflag [#allocation5], %s474
        %s476 = sand.u32 %s275, 1
        %s477 = smul.addr %s476, 16
        %s478 = scalar_lea.vmem [#allocation12], %s477
        %s479 = smul.u32 2, %s36
        %s480 = smul.u32 2, %s36
        %v481 = vld [vmem:[%s416] sm:$0xff]
        %v482 = vld [vmem:[%s416 + $0x8] sm:$0xff]
        %p483 = scmp.eq.s32.totalorder %s36, 0
        // Predicated region
        $region81: #{tpu_custom_call.1} parent=59 // pred_check
          %p484 = pneg %p483
        $region82: #{tpu_custom_call.1} parent=59 // pred_check_branch
          %486 = sbr.rel (%p484) target = $region84
        $region83: #{tpu_custom_call.1} parent=59 // pred_region
          %v487 = vld [vmem:[%s425] sm:$0xff]
          %v488 = vld [vmem:[%s425 + $0x8] sm:$0xff]
          %v489 = vld [vmem:[#allocation9] sm:$0xff]
          %v490 = vld [vmem:[#allocation9 + $0x8] sm:$0xff]
          %v491 = vld [vmem:[#allocation9 + $0x10] sm:$0xff]
          %v492 = vld [vmem:[#allocation9 + $0x18] sm:$0xff]
          %v493 = vld [vmem:[#allocation9 + $0x20] sm:$0xff]
          %v494 = vld [vmem:[#allocation9 + $0x28] sm:$0xff]
          %v495 = vld [vmem:[#allocation9 + $0x30] sm:$0xff]
          %v496 = vld [vmem:[#allocation9 + $0x38] sm:$0xff]
          %v497 = vld [vmem:[#allocation9 + $0x40] sm:$0xff]
          %v498 = vld [vmem:[#allocation9 + $0x48] sm:$0xff]
          %v499 = vld [vmem:[#allocation9 + $0x50] sm:$0xff]
          %v500 = vld [vmem:[#allocation9 + $0x58] sm:$0xff]
          %v501 = vld [vmem:[#allocation9 + $0x60] sm:$0xff]
          %v502 = vld [vmem:[#allocation9 + $0x68] sm:$0xff]
          %v503 = vld [vmem:[#allocation9 + $0x70] sm:$0xff]
          %v504 = vld [vmem:[#allocation9 + $0x78] sm:$0xff]
          %v505 = vld [vmem:[#allocation9 + $0x80] sm:$0xff]
          %v506 = vld [vmem:[#allocation9 + $0x88] sm:$0xff]
          %v507 = vld [vmem:[#allocation9 + $0x90] sm:$0xff]
          %v508 = vld [vmem:[#allocation9 + $0x98] sm:$0xff]
          %v509 = vld [vmem:[#allocation9 + $0xa0] sm:$0xff]
          %v510 = vld [vmem:[#allocation9 + $0xa8] sm:$0xff]
          %v511 = vld [vmem:[#allocation9 + $0xb0] sm:$0xff]
          %v512 = vld [vmem:[#allocation9 + $0xb8] sm:$0xff]
          %v513 = vld [vmem:[#allocation9 + $0xc0] sm:$0xff]
          %v514 = vld [vmem:[#allocation9 + $0xc8] sm:$0xff]
          %v515 = vld [vmem:[#allocation9 + $0xd0] sm:$0xff]
          %v516 = vld [vmem:[#allocation9 + $0xd8] sm:$0xff]
          %v517 = vld [vmem:[#allocation9 + $0xe0] sm:$0xff]
          %v518 = vld [vmem:[#allocation9 + $0xe8] sm:$0xff]
          %v519 = vld [vmem:[#allocation9 + $0xf0] sm:$0xff]
          %v520 = vld [vmem:[#allocation9 + $0xf8] sm:$0xff]
          %v521 = vld [vmem:[%s5] sm:$0x3]
          %v523 = vlaneseq
          %v524 = vshrl.u32 %v523, 7
          %v525 = vsub.s32 0, %v524
          %v526 = vrot.slane %v521, %v525
          %v527 = vlaneseq
          %v528 = vshrl.u32 %v527, 7
          %v529 = vsub.s32 1, %v528
          %v530 = vrot.slane %v521, %v529
          %533 = vmatprep.subr.mxu0 %v490
          %534 = vmatpush1.msra.mxu0 %v489
          %535 = vmatprep.subr.mxu0 %v492
          %536 = vmatpush1.msra.mxu0 %v491
          %537 = vmatprep.subr.mxu0 %v494
          %538 = vmatpush1.msra.mxu0 %v493
          %539 = vmatprep.subr.mxu0 %v496
          %540 = vmatpush1.msra.mxu0 %v495
          %541 = vmatprep.subr.mxu0 %v498
          %542 = vmatpush1.msra.mxu0 %v497
          %543 = vmatprep.subr.mxu0 %v500
          %544 = vmatpush1.msra.mxu0 %v499
          %545 = vmatprep.subr.mxu0 %v502
          %546 = vmatpush1.msra.mxu0 %v501
          %547 = vmatprep.subr.mxu0 %v504
          %548 = vmatpush1.msra.mxu0 %v503
          %549 = vmatprep.subr.mxu0 %v506
          %550 = vmatpush1.msra.mxu0 %v505
          %551 = vmatprep.subr.mxu0 %v508
          %552 = vmatpush1.msra.mxu0 %v507
          %553 = vmatprep.subr.mxu0 %v510
          %554 = vmatpush1.msra.mxu0 %v509
          %555 = vmatprep.subr.mxu0 %v512
          %556 = vmatpush1.msra.mxu0 %v511
          %557 = vmatprep.subr.mxu0 %v514
          %558 = vmatpush1.msra.mxu0 %v513
          %559 = vmatprep.subr.mxu0 %v516
          %560 = vmatpush1.msra.mxu0 %v515
          %561 = vmatprep.subr.mxu0 %v518
          %562 = vmatpush1.msra.mxu0 %v517
          %563 = vmatprep.subr.mxu0 %v520
          %564 = vmatpush1.msra.mxu0 %v519
          %565 = vmatprep.subr.mxu0 0.0
          %566 = vmatpush1.msra.mxu0 0.0
          %567 = vmatprep.subr.mxu0 0.0
          %568 = vmatpush1.msra.mxu0 0.0
          %569 = vmatprep.subr.mxu0 0.0
          %570 = vmatpush1.msra.mxu0 0.0
          %571 = vmatprep.subr.mxu0 0.0
          %572 = vmatpush1.msra.mxu0 0.0
          %573 = vmatprep.subr.mxu0 0.0
          %574 = vmatpush1.msra.mxu0 0.0
          %575 = vmatprep.subr.mxu0 0.0
          %576 = vmatpush1.msra.mxu0 0.0
          %577 = vmatprep.subr.mxu0 0.0
          %578 = vmatpush1.msra.mxu0 0.0
          %579 = vmatprep.subr.mxu0 0.0
          %580 = vmatpush1.msra.mxu0 0.0
          %581 = vmatprep.subr.mxu0 0.0
          %582 = vmatpush1.msra.mxu0 0.0
          %583 = vmatprep.subr.mxu0 0.0
          %584 = vmatpush1.msra.mxu0 0.0
          %585 = vmatprep.subr.mxu0 0.0
          %586 = vmatpush1.msra.mxu0 0.0
          %587 = vmatprep.subr.mxu0 0.0
          %588 = vmatpush1.msra.mxu0 0.0
          %589 = vmatprep.subr.mxu0 0.0
          %590 = vmatpush1.msra.mxu0 0.0
          %591 = vmatprep.subr.mxu0 0.0
          %592 = vmatpush1.msra.mxu0 0.0
          %593 = vmatprep.subr.mxu0 0.0
          %594 = vmatpush1.msra.mxu0 0.0
          %595 = vmatprep.subr.mxu0 0.0
          %596 = vmatpush1.msra.mxu0 0.0
          %597 = vmatprep.mubr.f32.mxu0 0.0
          %598 = vmatmul.mubr.f32.gmra.mrb[0].mxu0 %v487
          %v599 = vpop.f32.mrb[0].mxu0
          %v600 = vadd.f32 %v526, %v599
          %v601 = vpop.f32.mrb[0].mxu0
          %v602 = vadd.f32 %v530, %v601
          %603 = vmatprep.mubr.f32.mxu0 0.0
          %604 = vmatmul.mubr.f32.gmra.mrb[0].mxu0 %v488
          %v605 = vpop.f32.mrb[0].mxu0
          %v606 = vadd.f32 %v526, %v605
          %v607 = vpop.f32.mrb[0].mxu0
          %v608 = vadd.f32 %v530, %v607
          %609 = vdwg.mxu0
          %610 = vst [vmem:[#allocation2] sm:$0xff] %v600
          %611 = vst [vmem:[#allocation2 + $0x8] sm:$0xff] %v602
          %612 = vst [vmem:[#allocation2 + $0x10] sm:$0xff] %v606
          %613 = vst [vmem:[#allocation2 + $0x18] sm:$0xff] %v608
        $region84: #{tpu_custom_call.1} parent=59 // pred_fallthru
          _
        %v614 = vld [vmem:[#allocation8] sm:$0xff]
        %v615 = vld [vmem:[#allocation8 + $0x8] sm:$0xff]
        %v616 = vld [vmem:[#allocation8 + $0x10] sm:$0xff]
        %v617 = vld [vmem:[#allocation8 + $0x18] sm:$0xff]
        %v618 = vld [vmem:[#allocation8 + $0x20] sm:$0xff]
        %v619 = vld [vmem:[#allocation8 + $0x28] sm:$0xff]
        %v620 = vld [vmem:[#allocation8 + $0x30] sm:$0xff]
        %v621 = vld [vmem:[#allocation8 + $0x38] sm:$0xff]
        %v622 = vld [vmem:[#allocation8 + $0x40] sm:$0xff]
        %v623 = vld [vmem:[#allocation8 + $0x48] sm:$0xff]
        %v624 = vld [vmem:[#allocation8 + $0x50] sm:$0xff]
        %v625 = vld [vmem:[#allocation8 + $0x58] sm:$0xff]
        %v626 = vld [vmem:[#allocation8 + $0x60] sm:$0xff]
        %v627 = vld [vmem:[#allocation8 + $0x68] sm:$0xff]
        %v628 = vld [vmem:[#allocation8 + $0x70] sm:$0xff]
        %v629 = vld [vmem:[#allocation8 + $0x78] sm:$0xff]
        %v630 = vld [vmem:[%s3] sm:$0x1]
        %v632 = vlaneseq
        %v633 = vshrl.u32 %v632, 7
        %v634 = vsub.s32 0, %v633
        %v635 = vrot.slane %v630, %v634
        %637 = vmatprep.subr.mxu0 0.0
        %638 = vmatpush1.msra.mxu0 %v614
        %639 = vmatprep.subr.mxu0 0.0
        %640 = vmatpush1.msra.mxu0 %v615
        %641 = vmatprep.subr.mxu0 0.0
        %642 = vmatpush1.msra.mxu0 %v616
        %643 = vmatprep.subr.mxu0 0.0
        %644 = vmatpush1.msra.mxu0 %v617
        %645 = vmatprep.subr.mxu0 0.0
        %646 = vmatpush1.msra.mxu0 %v618
        %647 = vmatprep.subr.mxu0 0.0
        %648 = vmatpush1.msra.mxu0 %v619
        %649 = vmatprep.subr.mxu0 0.0
        %650 = vmatpush1.msra.mxu0 %v620
        %651 = vmatprep.subr.mxu0 0.0
        %652 = vmatpush1.msra.mxu0 %v621
        %653 = vmatprep.subr.mxu0 0.0
        %654 = vmatpush1.msra.mxu0 %v622
        %655 = vmatprep.subr.mxu0 0.0
        %656 = vmatpush1.msra.mxu0 %v623
        %657 = vmatprep.subr.mxu0 0.0
        %658 = vmatpush1.msra.mxu0 %v624
        %659 = vmatprep.subr.mxu0 0.0
        %660 = vmatpush1.msra.mxu0 %v625
        %661 = vmatprep.subr.mxu0 0.0
        %662 = vmatpush1.msra.mxu0 %v626
        %663 = vmatprep.subr.mxu0 0.0
        %664 = vmatpush1.msra.mxu0 %v627
        %665 = vmatprep.subr.mxu0 0.0
        %666 = vmatpush1.msra.mxu0 %v628
        %667 = vmatprep.subr.mxu0 0.0
        %668 = vmatpush1.msra.mxu0 %v629
        %669 = vmatprep.subr.mxu0 0.0
        %670 = vmatpush1.msra.mxu0 0.0
        %671 = vmatprep.subr.mxu0 0.0
        %672 = vmatpush1.msra.mxu0 0.0
        %673 = vmatprep.subr.mxu0 0.0
        %674 = vmatpush1.msra.mxu0 0.0
        %675 = vmatprep.subr.mxu0 0.0
        %676 = vmatpush1.msra.mxu0 0.0
        %677 = vmatprep.subr.mxu0 0.0
        %678 = vmatpush1.msra.mxu0 0.0
        %679 = vmatprep.subr.mxu0 0.0
        %680 = vmatpush1.msra.mxu0 0.0
        %681 = vmatprep.subr.mxu0 0.0
        %682 = vmatpush1.msra.mxu0 0.0
        %683 = vmatprep.subr.mxu0 0.0
        %684 = vmatpush1.msra.mxu0 0.0
        %685 = vmatprep.subr.mxu0 0.0
        %686 = vmatpush1.msra.mxu0 0.0
        %687 = vmatprep.subr.mxu0 0.0
        %688 = vmatpush1.msra.mxu0 0.0
        %689 = vmatprep.subr.mxu0 0.0
        %690 = vmatpush1.msra.mxu0 0.0
        %691 = vmatprep.subr.mxu0 0.0
        %692 = vmatpush1.msra.mxu0 0.0
        %693 = vmatprep.subr.mxu0 0.0
        %694 = vmatpush1.msra.mxu0 0.0
        %695 = vmatprep.subr.mxu0 0.0
        %696 = vmatpush1.msra.mxu0 0.0
        %697 = vmatprep.subr.mxu0 0.0
        %698 = vmatpush1.msra.mxu0 0.0
        %699 = vmatprep.subr.mxu0 0.0
        %700 = vmatpush1.msra.mxu0 0.0
        %701 = vmatprep.mubr.f32.mxu0 0.0
        %702 = vmatmul.mubr.f32.gmra.mrb[0].mxu0 %v481
        %v703 = vpop.f32.mrb[0].mxu0
        %v704 = vadd.f32 %v635, %v703
        %v705 = vpop.f32.mrb[0].mxu0
        %706 = vmatprep.mubr.f32.mxu0 0.0
        %707 = vmatmul.mubr.f32.gmra.mrb[0].mxu0 %v482
        %v708 = vpop.f32.mrb[0].mxu0
        %v709 = vadd.f32 %v635, %v708
        %v710 = vpop.f32.mrb[0].mxu0
        %711 = vdwg.mxu0
        %v712 = vld [vmem:[#allocation2] sm:$0xff]
        %v713 = vld [vmem:[#allocation2 + $0x10] sm:$0xff]
        %v714 = vld [vmem:[#allocation2 + $0x8] sm:$0xff]
        %v715 = vld [vmem:[#allocation2 + $0x18] sm:$0xff]
        %718 = vrot.lane.b32.xlu0 %v704, 96
        %v719 = vpop.permute.xlu0 %718
        %720 = vrot.lane.b32.xlu0 %v709, 96
        %v721 = vpop.permute.xlu0 %720
        %722 = vrot.lane.b32.xlu0 %v704, 64
        %v723 = vpop.permute.xlu0 %722
        %724 = vrot.lane.b32.xlu0 %v709, 64
        %v725 = vpop.permute.xlu0 %724
        %726 = vrot.lane.b32.xlu0 %v704, 32
        %v727 = vpop.permute.xlu0 %726
        %728 = vrot.lane.b32.xlu0 %v709, 32
        %v729 = vpop.permute.xlu0 %728
        %732 = vrot.lane.b32.xlu0 %v712, 96
        %v733 = vpop.permute.xlu0 %732
        %734 = vrot.lane.b32.xlu0 %v713, 96
        %v735 = vpop.permute.xlu0 %734
        %738 = vrot.lane.b32.xlu0 %v712, 64
        %v739 = vpop.permute.xlu0 %738
        %740 = vrot.lane.b32.xlu0 %v713, 64
        %v741 = vpop.permute.xlu0 %740
        %744 = vrot.lane.b32.xlu0 %v712, 32
        %v745 = vpop.permute.xlu0 %744
        %746 = vrot.lane.b32.xlu0 %v713, 32
        %v747 = vpop.permute.xlu0 %746
        %752 = vrot.lane.b32.xlu0 %v714, 96
        %v753 = vpop.permute.xlu0 %752
        %754 = vrot.lane.b32.xlu0 %v715, 96
        %v755 = vpop.permute.xlu0 %754
        %758 = vrot.lane.b32.xlu0 %v714, 64
        %v759 = vpop.permute.xlu0 %758
        %760 = vrot.lane.b32.xlu0 %v715, 64
        %v761 = vpop.permute.xlu0 %760
        %764 = vrot.lane.b32.xlu0 %v714, 32
        %v765 = vpop.permute.xlu0 %764
        %766 = vrot.lane.b32.xlu0 %v715, 32
        %v767 = vpop.permute.xlu0 %766
        %770 = vxpose.xlu0.b32.start [1/16] %v712, 128
        %771 = vxpose.xlu0.b32.cont [2/16] %v713, 128
        %772 = vxpose.xlu0.b32.cont [3/16] 0.0, 128
        %773 = vxpose.xlu0.b32.cont [4/16] 0.0, 128
        %774 = vxpose.xlu0.b32.cont [5/16] 0.0, 128
        %775 = vxpose.xlu0.b32.cont [6/16] 0.0, 128
        %776 = vxpose.xlu0.b32.cont [7/16] 0.0, 128
        %777 = vxpose.xlu0.b32.cont [8/16] 0.0, 128
        %778 = vxpose.xlu0.b32.cont [9/16] 0.0, 128
        %779 = vxpose.xlu0.b32.cont [10/16] 0.0, 128
        %780 = vxpose.xlu0.b32.cont [11/16] 0.0, 128
        %781 = vxpose.xlu0.b32.cont [12/16] 0.0, 128
        %782 = vxpose.xlu0.b32.cont [13/16] 0.0, 128
        %783 = vxpose.xlu0.b32.cont [14/16] 0.0, 128
        %784 = vxpose.xlu0.b32.cont [15/16] 0.0, 128
        %785 = vxpose.xlu0.b32.end [16/16] 0.0, 128
        %v786 = vpop.trf.xlu0
        %v787 = vpop.trf.xlu0
        %v788 = vpop.trf.xlu0
        %v789 = vpop.trf.xlu0
        %v790 = vpop.trf.xlu0
        %v791 = vpop.trf.xlu0
        %v792 = vpop.trf.xlu0
        %v793 = vpop.trf.xlu0
        %v794 = vpop.trf.xlu0
        %v795 = vpop.trf.xlu0
        %v796 = vpop.trf.xlu0
        %v797 = vpop.trf.xlu0
        %v798 = vpop.trf.xlu0
        %v799 = vpop.trf.xlu0
        %v800 = vpop.trf.xlu0
        %v801 = vpop.trf.xlu0
        %802 = vxpose.xlu0.b32.start [1/16] %v733, 128
        %803 = vxpose.xlu0.b32.cont [2/16] %v735, 128
        %804 = vxpose.xlu0.b32.cont [3/16] 0.0, 128
        %805 = vxpose.xlu0.b32.cont [4/16] 0.0, 128
        %806 = vxpose.xlu0.b32.cont [5/16] 0.0, 128
        %807 = vxpose.xlu0.b32.cont [6/16] 0.0, 128
        %808 = vxpose.xlu0.b32.cont [7/16] 0.0, 128
        %809 = vxpose.xlu0.b32.cont [8/16] 0.0, 128
        %810 = vxpose.xlu0.b32.cont [9/16] 0.0, 128
        %811 = vxpose.xlu0.b32.cont [10/16] 0.0, 128
        %812 = vxpose.xlu0.b32.cont [11/16] 0.0, 128
        %813 = vxpose.xlu0.b32.cont [12/16] 0.0, 128
        %814 = vxpose.xlu0.b32.cont [13/16] 0.0, 128
        %815 = vxpose.xlu0.b32.cont [14/16] 0.0, 128
        %816 = vxpose.xlu0.b32.cont [15/16] 0.0, 128
        %817 = vxpose.xlu0.b32.end [16/16] 0.0, 128
        %v818 = vpop.trf.xlu0
        %v819 = vpop.trf.xlu0
        %v820 = vpop.trf.xlu0
        %v821 = vpop.trf.xlu0
        %v822 = vpop.trf.xlu0
        %v823 = vpop.trf.xlu0
        %v824 = vpop.trf.xlu0
        %v825 = vpop.trf.xlu0
        %v826 = vpop.trf.xlu0
        %v827 = vpop.trf.xlu0
        %v828 = vpop.trf.xlu0
        %v829 = vpop.trf.xlu0
        %v830 = vpop.trf.xlu0
        %v831 = vpop.trf.xlu0
        %v832 = vpop.trf.xlu0
        %v833 = vpop.trf.xlu0
        %834 = vxpose.xlu0.b32.start [1/16] %v739, 128
        %835 = vxpose.xlu0.b32.cont [2/16] %v741, 128
        %836 = vxpose.xlu0.b32.cont [3/16] 0.0, 128
        %837 = vxpose.xlu0.b32.cont [4/16] 0.0, 128
        %838 = vxpose.xlu0.b32.cont [5/16] 0.0, 128
        %839 = vxpose.xlu0.b32.cont [6/16] 0.0, 128
        %840 = vxpose.xlu0.b32.cont [7/16] 0.0, 128
        %841 = vxpose.xlu0.b32.cont [8/16] 0.0, 128
        %842 = vxpose.xlu0.b32.cont [9/16] 0.0, 128
        %843 = vxpose.xlu0.b32.cont [10/16] 0.0, 128
        %844 = vxpose.xlu0.b32.cont [11/16] 0.0, 128
        %845 = vxpose.xlu0.b32.cont [12/16] 0.0, 128
        %846 = vxpose.xlu0.b32.cont [13/16] 0.0, 128
        %847 = vxpose.xlu0.b32.cont [14/16] 0.0, 128
        %848 = vxpose.xlu0.b32.cont [15/16] 0.0, 128
        %849 = vxpose.xlu0.b32.end [16/16] 0.0, 128
        %v850 = vpop.trf.xlu0
        %v851 = vpop.trf.xlu0
        %v852 = vpop.trf.xlu0
        %v853 = vpop.trf.xlu0
        %v854 = vpop.trf.xlu0
        %v855 = vpop.trf.xlu0
        %v856 = vpop.trf.xlu0
        %v857 = vpop.trf.xlu0
        %v858 = vpop.trf.xlu0
        %v859 = vpop.trf.xlu0
        %v860 = vpop.trf.xlu0
        %v861 = vpop.trf.xlu0
        %v862 = vpop.trf.xlu0
        %v863 = vpop.trf.xlu0
        %v864 = vpop.trf.xlu0
        %v865 = vpop.trf.xlu0
        %866 = vxpose.xlu0.b32.start [1/16] %v745, 128
        %867 = vxpose.xlu0.b32.cont [2/16] %v747, 128
        %868 = vxpose.xlu0.b32.cont [3/16] 0.0, 128
        %869 = vxpose.xlu0.b32.cont [4/16] 0.0, 128
        %870 = vxpose.xlu0.b32.cont [5/16] 0.0, 128
        %871 = vxpose.xlu0.b32.cont [6/16] 0.0, 128
        %872 = vxpose.xlu0.b32.cont [7/16] 0.0, 128
        %873 = vxpose.xlu0.b32.cont [8/16] 0.0, 128
        %874 = vxpose.xlu0.b32.cont [9/16] 0.0, 128
        %875 = vxpose.xlu0.b32.cont [10/16] 0.0, 128
        %876 = vxpose.xlu0.b32.cont [11/16] 0.0, 128
        %877 = vxpose.xlu0.b32.cont [12/16] 0.0, 128
        %878 = vxpose.xlu0.b32.cont [13/16] 0.0, 128
        %879 = vxpose.xlu0.b32.cont [14/16] 0.0, 128
        %880 = vxpose.xlu0.b32.cont [15/16] 0.0, 128
        %881 = vxpose.xlu0.b32.end [16/16] 0.0, 128
        %v882 = vpop.trf.xlu0
        %v883 = vpop.trf.xlu0
        %v884 = vpop.trf.xlu0
        %v885 = vpop.trf.xlu0
        %v886 = vpop.trf.xlu0
        %v887 = vpop.trf.xlu0
        %v888 = vpop.trf.xlu0
        %v889 = vpop.trf.xlu0
        %v890 = vpop.trf.xlu0
        %v891 = vpop.trf.xlu0
        %v892 = vpop.trf.xlu0
        %v893 = vpop.trf.xlu0
        %v894 = vpop.trf.xlu0
        %v895 = vpop.trf.xlu0
        %v896 = vpop.trf.xlu0
        %v897 = vpop.trf.xlu0
        %vm898 = vcmask 261120
        %v899 = vsel %vm898, %v704, 0
        %v901 = vsel %vm898, %v709, 0
        %903 = vmatprep.subr.mxu0 0.0
        %904 = vmatpush1.msra.mxu0 %v786
        %905 = vmatprep.subr.mxu0 0.0
        %906 = vmatpush1.msra.mxu0 %v787
        %907 = vmatprep.subr.mxu0 0.0
        %908 = vmatpush1.msra.mxu0 %v788
        %909 = vmatprep.subr.mxu0 0.0
        %910 = vmatpush1.msra.mxu0 %v789
        %911 = vmatprep.subr.mxu0 0.0
        %912 = vmatpush1.msra.mxu0 0.0
        %913 = vmatprep.subr.mxu0 0.0
        %914 = vmatpush1.msra.mxu0 0.0
        %915 = vmatprep.subr.mxu0 0.0
        %916 = vmatpush1.msra.mxu0 0.0
        %917 = vmatprep.subr.mxu0 0.0
        %918 = vmatpush1.msra.mxu0 0.0
        %919 = vmatprep.subr.mxu0 0.0
        %920 = vmatpush1.msra.mxu0 0.0
        %921 = vmatprep.subr.mxu0 0.0
        %922 = vmatpush1.msra.mxu0 0.0
        %923 = vmatprep.subr.mxu0 0.0
        %924 = vmatpush1.msra.mxu0 0.0
        %925 = vmatprep.subr.mxu0 0.0
        %926 = vmatpush1.msra.mxu0 0.0
        %927 = vmatprep.subr.mxu0 0.0
        %928 = vmatpush1.msra.mxu0 0.0
        %929 = vmatprep.subr.mxu0 0.0
        %930 = vmatpush1.msra.mxu0 0.0
        %931 = vmatprep.subr.mxu0 0.0
        %932 = vmatpush1.msra.mxu0 0.0
        %933 = vmatprep.subr.mxu0 0.0
        %934 = vmatpush1.msra.mxu0 0.0
        %935 = vmatprep.subr.mxu0 0.0
        %936 = vmatpush1.msra.mxu0 0.0
        %937 = vmatprep.subr.mxu0 0.0
        %938 = vmatpush1.msra.mxu0 0.0
        %939 = vmatprep.subr.mxu0 0.0
        %940 = vmatpush1.msra.mxu0 0.0
        %941 = vmatprep.subr.mxu0 0.0
        %942 = vmatpush1.msra.mxu0 0.0
        %943 = vmatprep.subr.mxu0 0.0
        %944 = vmatpush1.msra.mxu0 0.0
        %945 = vmatprep.subr.mxu0 0.0
        %946 = vmatpush1.msra.mxu0 0.0
        %947 = vmatprep.subr.mxu0 0.0
        %948 = vmatpush1.msra.mxu0 0.0
        %949 = vmatprep.subr.mxu0 0.0
        %950 = vmatpush1.msra.mxu0 0.0
        %951 = vmatprep.subr.mxu0 0.0
        %952 = vmatpush1.msra.mxu0 0.0
        %953 = vmatprep.subr.mxu0 0.0
        %954 = vmatpush1.msra.mxu0 0.0
        %955 = vmatprep.subr.mxu0 0.0
        %956 = vmatpush1.msra.mxu0 0.0
        %957 = vmatprep.subr.mxu0 0.0
        %958 = vmatpush1.msra.mxu0 0.0
        %959 = vmatprep.subr.mxu0 0.0
        %960 = vmatpush1.msra.mxu0 0.0
        %961 = vmatprep.subr.mxu0 0.0
        %962 = vmatpush1.msra.mxu0 0.0
        %963 = vmatprep.subr.mxu0 0.0
        %964 = vmatpush1.msra.mxu0 0.0
        %965 = vmatprep.subr.mxu0 0.0
        %966 = vmatpush1.msra.mxu0 0.0
        %967 = vmatprep.mubr.f32.mxu0 0.0
        %968 = vmatmul.mubr.f32.gmra.mrb[0].mxu0 %v899
        %v969 = vpop.f32.mrb[0].mxu0
        %v970 = vadd.f32 0.0, %v969
        %v971 = vpop.f32.mrb[0].mxu0
        %972 = vmatprep.mubr.f32.mxu0 0.0
        %973 = vmatmul.mubr.f32.gmra.mrb[0].mxu0 %v901
        %v974 = vpop.f32.mrb[0].mxu0
        %v975 = vadd.f32 0.0, %v974
        %v976 = vpop.f32.mrb[0].mxu0
        %977 = vdwg.mxu0
        %v978 = vsel %vm898, %v719, 0
        %v980 = vsel %vm898, %v721, 0
        %982 = vmatprep.subr.mxu0 0.0
        %983 = vmatpush1.msra.mxu0 %v818
        %984 = vmatprep.subr.mxu0 0.0
        %985 = vmatpush1.msra.mxu0 %v819
        %986 = vmatprep.subr.mxu0 0.0
        %987 = vmatpush1.msra.mxu0 %v820
        %988 = vmatprep.subr.mxu0 0.0
        %989 = vmatpush1.msra.mxu0 %v821
        %990 = vmatprep.subr.mxu0 0.0
        %991 = vmatpush1.msra.mxu0 0.0
        %992 = vmatprep.subr.mxu0 0.0
        %993 = vmatpush1.msra.mxu0 0.0
        %994 = vmatprep.subr.mxu0 0.0
        %995 = vmatpush1.msra.mxu0 0.0
        %996 = vmatprep.subr.mxu0 0.0
        %997 = vmatpush1.msra.mxu0 0.0
        %998 = vmatprep.subr.mxu0 0.0
        %999 = vmatpush1.msra.mxu0 0.0
        %1000 = vmatprep.subr.mxu0 0.0
        %1001 = vmatpush1.msra.mxu0 0.0
        %1002 = vmatprep.subr.mxu0 0.0
        %1003 = vmatpush1.msra.mxu0 0.0
        %1004 = vmatprep.subr.mxu0 0.0
        %1005 = vmatpush1.msra.mxu0 0.0
        %1006 = vmatprep.subr.mxu0 0.0
        %1007 = vmatpush1.msra.mxu0 0.0
        %1008 = vmatprep.subr.mxu0 0.0
        %1009 = vmatpush1.msra.mxu0 0.0
        %1010 = vmatprep.subr.mxu0 0.0
        %1011 = vmatpush1.msra.mxu0 0.0
        %1012 = vmatprep.subr.mxu0 0.0
        %1013 = vmatpush1.msra.mxu0 0.0
        %1014 = vmatprep.subr.mxu0 0.0
        %1015 = vmatpush1.msra.mxu0 0.0
        %1016 = vmatprep.subr.mxu0 0.0
        %1017 = vmatpush1.msra.mxu0 0.0
        %1018 = vmatprep.subr.mxu0 0.0
        %1019 = vmatpush1.msra.mxu0 0.0
        %1020 = vmatprep.subr.mxu0 0.0
        %1021 = vmatpush1.msra.mxu0 0.0
        %1022 = vmatprep.subr.mxu0 0.0
        %1023 = vmatpush1.msra.mxu0 0.0
        %1024 = vmatprep.subr.mxu0 0.0
        %1025 = vmatpush1.msra.mxu0 0.0
        %1026 = vmatprep.subr.mxu0 0.0
        %1027 = vmatpush1.msra.mxu0 0.0
        %1028 = vmatprep.subr.mxu0 0.0
        %1029 = vmatpush1.msra.mxu0 0.0
        %1030 = vmatprep.subr.mxu0 0.0
        %1031 = vmatpush1.msra.mxu0 0.0
        %1032 = vmatprep.subr.mxu0 0.0
        %1033 = vmatpush1.msra.mxu0 0.0
        %1034 = vmatprep.subr.mxu0 0.0
        %1035 = vmatpush1.msra.mxu0 0.0
        %1036 = vmatprep.subr.mxu0 0.0
        %1037 = vmatpush1.msra.mxu0 0.0
        %1038 = vmatprep.subr.mxu0 0.0
        %1039 = vmatpush1.msra.mxu0 0.0
        %1040 = vmatprep.subr.mxu0 0.0
        %1041 = vmatpush1.msra.mxu0 0.0
        %1042 = vmatprep.subr.mxu0 0.0
        %1043 = vmatpush1.msra.mxu0 0.0
        %1044 = vmatprep.subr.mxu0 0.0
        %1045 = vmatpush1.msra.mxu0 0.0
        %1046 = vmatprep.mubr.f32.mxu0 0.0
        %1047 = vmatmul.mubr.f32.gmra.mrb[0].mxu0 %v978
        %v1048 = vpop.f32.mrb[0].mxu0
        %v1049 = vadd.f32 0.0, %v1048
        %v1050 = vpop.f32.mrb[0].mxu0
        %1051 = vmatprep.mubr.f32.mxu0 0.0
        %1052 = vmatmul.mubr.f32.gmra.mrb[0].mxu0 %v980
        %v1053 = vpop.f32.mrb[0].mxu0
        %v1054 = vadd.f32 0.0, %v1053
        %v1055 = vpop.f32.mrb[0].mxu0
        %1056 = vdwg.mxu0
        %v1057 = vsel %vm898, %v723, 0
        %v1059 = vsel %vm898, %v725, 0
        %1061 = vmatprep.subr.mxu0 0.0
        %1062 = vmatpush1.msra.mxu0 %v850
        %1063 = vmatprep.subr.mxu0 0.0
        %1064 = vmatpush1.msra.mxu0 %v851
        %1065 = vmatprep.subr.mxu0 0.0
        %1066 = vmatpush1.msra.mxu0 %v852
        %1067 = vmatprep.subr.mxu0 0.0
        %1068 = vmatpush1.msra.mxu0 %v853
        %1069 = vmatprep.subr.mxu0 0.0
        %1070 = vmatpush1.msra.mxu0 0.0
        %1071 = vmatprep.subr.mxu0 0.0
        %1072 = vmatpush1.msra.mxu0 0.0
        %1073 = vmatprep.subr.mxu0 0.0
        %1074 = vmatpush1.msra.mxu0 0.0
        %1075 = vmatprep.subr.mxu0 0.0
        %1076 = vmatpush1.msra.mxu0 0.0
        %1077 = vmatprep.subr.mxu0 0.0
        %1078 = vmatpush1.msra.mxu0 0.0
        %1079 = vmatprep.subr.mxu0 0.0
        %1080 = vmatpush1.msra.mxu0 0.0
        %1081 = vmatprep.subr.mxu0 0.0
        %1082 = vmatpush1.msra.mxu0 0.0
        %1083 = vmatprep.subr.mxu0 0.0
        %1084 = vmatpush1.msra.mxu0 0.0
        %1085 = vmatprep.subr.mxu0 0.0
        %1086 = vmatpush1.msra.mxu0 0.0
        %1087 = vmatprep.subr.mxu0 0.0
        %1088 = vmatpush1.msra.mxu0 0.0
        %1089 = vmatprep.subr.mxu0 0.0
        %1090 = vmatpush1.msra.mxu0 0.0
        %1091 = vmatprep.subr.mxu0 0.0
        %1092 = vmatpush1.msra.mxu0 0.0
        %1093 = vmatprep.subr.mxu0 0.0
        %1094 = vmatpush1.msra.mxu0 0.0
        %1095 = vmatprep.subr.mxu0 0.0
        %1096 = vmatpush1.msra.mxu0 0.0
        %1097 = vmatprep.subr.mxu0 0.0
        %1098 = vmatpush1.msra.mxu0 0.0
        %1099 = vmatprep.subr.mxu0 0.0
        %1100 = vmatpush1.msra.mxu0 0.0
        %1101 = vmatprep.subr.mxu0 0.0
        %1102 = vmatpush1.msra.mxu0 0.0
        %1103 = vmatprep.subr.mxu0 0.0
        %1104 = vmatpush1.msra.mxu0 0.0
        %1105 = vmatprep.subr.mxu0 0.0
        %1106 = vmatpush1.msra.mxu0 0.0
        %1107 = vmatprep.subr.mxu0 0.0
        %1108 = vmatpush1.msra.mxu0 0.0
        %1109 = vmatprep.subr.mxu0 0.0
        %1110 = vmatpush1.msra.mxu0 0.0
        %1111 = vmatprep.subr.mxu0 0.0
        %1112 = vmatpush1.msra.mxu0 0.0
        %1113 = vmatprep.subr.mxu0 0.0
        %1114 = vmatpush1.msra.mxu0 0.0
        %1115 = vmatprep.subr.mxu0 0.0
        %1116 = vmatpush1.msra.mxu0 0.0
        %1117 = vmatprep.subr.mxu0 0.0
        %1118 = vmatpush1.msra.mxu0 0.0
        %1119 = vmatprep.subr.mxu0 0.0
        %1120 = vmatpush1.msra.mxu0 0.0
        %1121 = vmatprep.subr.mxu0 0.0
        %1122 = vmatpush1.msra.mxu0 0.0
        %1123 = vmatprep.subr.mxu0 0.0
        %1124 = vmatpush1.msra.mxu0 0.0
        %1125 = vmatprep.mubr.f32.mxu0 0.0
        %1126 = vmatmul.mubr.f32.gmra.mrb[0].mxu0 %v1057
        %v1127 = vpop.f32.mrb[0].mxu0
        %v1128 = vadd.f32 0.0, %v1127
        %v1129 = vpop.f32.mrb[0].mxu0
        %1130 = vmatprep.mubr.f32.mxu0 0.0
        %1131 = vmatmul.mubr.f32.gmra.mrb[0].mxu0 %v1059
        %v1132 = vpop.f32.mrb[0].mxu0
        %v1133 = vadd.f32 0.0, %v1132
        %v1134 = vpop.f32.mrb[0].mxu0
        %1135 = vdwg.mxu0
        %v1136 = vsel %vm898, %v727, 0
        %v1138 = vsel %vm898, %v729, 0
        %1140 = vmatprep.subr.mxu0 0.0
        %1141 = vmatpush1.msra.mxu0 %v882
        %1142 = vmatprep.subr.mxu0 0.0
        %1143 = vmatpush1.msra.mxu0 %v883
        %1144 = vmatprep.subr.mxu0 0.0
        %1145 = vmatpush1.msra.mxu0 %v884
        %1146 = vmatprep.subr.mxu0 0.0
        %1147 = vmatpush1.msra.mxu0 %v885
        %1148 = vmatprep.subr.mxu0 0.0
        %1149 = vmatpush1.msra.mxu0 0.0
        %1150 = vmatprep.subr.mxu0 0.0
        %1151 = vmatpush1.msra.mxu0 0.0
        %1152 = vmatprep.subr.mxu0 0.0
        %1153 = vmatpush1.msra.mxu0 0.0
        %1154 = vmatprep.subr.mxu0 0.0
        %1155 = vmatpush1.msra.mxu0 0.0
        %1156 = vmatprep.subr.mxu0 0.0
        %1157 = vmatpush1.msra.mxu0 0.0
        %1158 = vmatprep.subr.mxu0 0.0
        %1159 = vmatpush1.msra.mxu0 0.0
        %1160 = vmatprep.subr.mxu0 0.0
        %1161 = vmatpush1.msra.mxu0 0.0
        %1162 = vmatprep.subr.mxu0 0.0
        %1163 = vmatpush1.msra.mxu0 0.0
        %1164 = vmatprep.subr.mxu0 0.0
        %1165 = vmatpush1.msra.mxu0 0.0
        %1166 = vmatprep.subr.mxu0 0.0
        %1167 = vmatpush1.msra.mxu0 0.0
        %1168 = vmatprep.subr.mxu0 0.0
        %1169 = vmatpush1.msra.mxu0 0.0
        %1170 = vmatprep.subr.mxu0 0.0
        %1171 = vmatpush1.msra.mxu0 0.0
        %1172 = vmatprep.subr.mxu0 0.0
        %1173 = vmatpush1.msra.mxu0 0.0
        %1174 = vmatprep.subr.mxu0 0.0
        %1175 = vmatpush1.msra.mxu0 0.0
        %1176 = vmatprep.subr.mxu0 0.0
        %1177 = vmatpush1.msra.mxu0 0.0
        %1178 = vmatprep.subr.mxu0 0.0
        %1179 = vmatpush1.msra.mxu0 0.0
        %1180 = vmatprep.subr.mxu0 0.0
        %1181 = vmatpush1.msra.mxu0 0.0
        %1182 = vmatprep.subr.mxu0 0.0
        %1183 = vmatpush1.msra.mxu0 0.0
        %1184 = vmatprep.subr.mxu0 0.0
        %1185 = vmatpush1.msra.mxu0 0.0
        %1186 = vmatprep.subr.mxu0 0.0
        %1187 = vmatpush1.msra.mxu0 0.0
        %1188 = vmatprep.subr.mxu0 0.0
        %1189 = vmatpush1.msra.mxu0 0.0
        %1190 = vmatprep.subr.mxu0 0.0
        %1191 = vmatpush1.msra.mxu0 0.0
        %1192 = vmatprep.subr.mxu0 0.0
        %1193 = vmatpush1.msra.mxu0 0.0
        %1194 = vmatprep.subr.mxu0 0.0
        %1195 = vmatpush1.msra.mxu0 0.0
        %1196 = vmatprep.subr.mxu0 0.0
        %1197 = vmatpush1.msra.mxu0 0.0
        %1198 = vmatprep.subr.mxu0 0.0
        %1199 = vmatpush1.msra.mxu0 0.0
        %1200 = vmatprep.subr.mxu0 0.0
        %1201 = vmatpush1.msra.mxu0 0.0
        %1202 = vmatprep.subr.mxu0 0.0
        %1203 = vmatpush1.msra.mxu0 0.0
        %1204 = vmatprep.mubr.f32.mxu0 0.0
        %1205 = vmatmul.mubr.f32.gmra.mrb[0].mxu0 %v1136
        %v1206 = vpop.f32.mrb[0].mxu0
        %v1207 = vadd.f32 0.0, %v1206
        %v1208 = vpop.f32.mrb[0].mxu0
        %1209 = vmatprep.mubr.f32.mxu0 0.0
        %1210 = vmatmul.mubr.f32.gmra.mrb[0].mxu0 %v1138
        %v1211 = vpop.f32.mrb[0].mxu0
        %v1212 = vadd.f32 0.0, %v1211
        %v1213 = vpop.f32.mrb[0].mxu0
        %1214 = vdwg.mxu0
        %vm1215 = vcmask 130048
        %v1216 = vsel %vm1215, %v970, -inf
        %1217 = vmax.xlane.f32.xlu0 %v1216
        %v1218 = vpop.xlane.xlu0 %1217
        %v1219 = vsel %vm1215, %v975, -inf
        %1220 = vmax.xlane.f32.xlu0 %v1219
        %v1221 = vpop.xlane.xlu0 %1220
        %v1222 = vsel %vm1215, %v1049, -inf
        %1223 = vmax.xlane.f32.xlu0 %v1222
        %v1224 = vpop.xlane.xlu0 %1223
        %v1225 = vsel %vm1215, %v1054, -inf
        %1226 = vmax.xlane.f32.xlu0 %v1225
        %v1227 = vpop.xlane.xlu0 %1226
        %v1228 = vsel %vm1215, %v1128, -inf
        %1229 = vmax.xlane.f32.xlu0 %v1228
        %v1230 = vpop.xlane.xlu0 %1229
        %v1231 = vsel %vm1215, %v1133, -inf
        %1232 = vmax.xlane.f32.xlu0 %v1231
        %v1233 = vpop.xlane.xlu0 %1232
        %v1234 = vsel %vm1215, %v1207, -inf
        %1235 = vmax.xlane.f32.xlu0 %v1234
        %v1236 = vpop.xlane.xlu0 %1235
        %v1237 = vsel %vm1215, %v1212, -inf
        %1238 = vmax.xlane.f32.xlu0 %v1237
        %v1239 = vpop.xlane.xlu0 %1238
        %v1240 = vsub.f32 %v970, %v1218
        %v1241 = vsub.f32 %v975, %v1221
        %v1242 = vsub.f32 %v1049, %v1224
        %v1243 = vsub.f32 %v1054, %v1227
        %v1244 = vsub.f32 %v1128, %v1230
        %v1245 = vsub.f32 %v1133, %v1233
        %v1246 = vsub.f32 %v1207, %v1236
        %v1247 = vsub.f32 %v1212, %v1239
        %v1248 = vmul.f32 %v1240, 1.442695
        %v1249 = vpow.pop %v1248
        %v1250 = vmul.f32 %v1241, 1.442695
        %v1251 = vpow.pop %v1250
        %v1252 = vmul.f32 %v1242, 1.442695
        %v1253 = vpow.pop %v1252
        %v1254 = vmul.f32 %v1243, 1.442695
        %v1255 = vpow.pop %v1254
        %v1256 = vmul.f32 %v1244, 1.442695
        %v1257 = vpow.pop %v1256
        %v1258 = vmul.f32 %v1245, 1.442695
        %v1259 = vpow.pop %v1258
        %v1260 = vmul.f32 %v1246, 1.442695
        %v1261 = vpow.pop %v1260
        %v1262 = vmul.f32 %v1247, 1.442695
        %v1263 = vpow.pop %v1262
        %v1264 = vsel %vm1215, %v1249, 0.0
        %1265 = vadd.xlane.f32.xlu0 %v1264
        %v1266 = vpop.xlane.xlu0 %1265
        %v1267 = vsel %vm1215, %v1251, 0.0
        %1268 = vadd.xlane.f32.xlu0 %v1267
        %v1269 = vpop.xlane.xlu0 %1268
        %v1270 = vsel %vm1215, %v1253, 0.0
        %1271 = vadd.xlane.f32.xlu0 %v1270
        %v1272 = vpop.xlane.xlu0 %1271
        %v1273 = vsel %vm1215, %v1255, 0.0
        %1274 = vadd.xlane.f32.xlu0 %v1273
        %v1275 = vpop.xlane.xlu0 %1274
        %v1276 = vsel %vm1215, %v1257, 0.0
        %1277 = vadd.xlane.f32.xlu0 %v1276
        %v1278 = vpop.xlane.xlu0 %1277
        %v1279 = vsel %vm1215, %v1259, 0.0
        %1280 = vadd.xlane.f32.xlu0 %v1279
        %v1281 = vpop.xlane.xlu0 %1280
        %v1282 = vsel %vm1215, %v1261, 0.0
        %1283 = vadd.xlane.f32.xlu0 %v1282
        %v1284 = vpop.xlane.xlu0 %1283
        %v1285 = vsel %vm1215, %v1263, 0.0
        %1286 = vadd.xlane.f32.xlu0 %v1285
        %v1287 = vpop.xlane.xlu0 %1286
        %v1288 = vrcp.pop %v1266
        %v1289 = vrcp.pop %v1269
        %v1290 = vrcp.pop %v1272
        %v1291 = vrcp.pop %v1275
        %v1292 = vrcp.pop %v1278
        %v1293 = vrcp.pop %v1281
        %v1294 = vrcp.pop %v1284
        %v1295 = vrcp.pop %v1287
        %v1296 = vmul.f32 %v1249, %v1288
        %v1297 = vmul.f32 %v1251, %v1289
        %v1298 = vmul.f32 %v1253, %v1290
        %v1299 = vmul.f32 %v1255, %v1291
        %v1300 = vmul.f32 %v1257, %v1292
        %v1301 = vmul.f32 %v1259, %v1293
        %v1302 = vmul.f32 %v1261, %v1294
        %v1303 = vmul.f32 %v1263, %v1295
        %1304 = vxpose.xlu0.b32.start [1/16] %v714, 128
        %1305 = vxpose.xlu0.b32.cont [2/16] %v715, 128
        %1306 = vxpose.xlu0.b32.cont [3/16] 0.0, 128
        %1307 = vxpose.xlu0.b32.cont [4/16] 0.0, 128
        %1308 = vxpose.xlu0.b32.cont [5/16] 0.0, 128
        %1309 = vxpose.xlu0.b32.cont [6/16] 0.0, 128
        %1310 = vxpose.xlu0.b32.cont [7/16] 0.0, 128
        %1311 = vxpose.xlu0.b32.cont [8/16] 0.0, 128
        %1312 = vxpose.xlu0.b32.cont [9/16] 0.0, 128
        %1313 = vxpose.xlu0.b32.cont [10/16] 0.0, 128
        %1314 = vxpose.xlu0.b32.cont [11/16] 0.0, 128
        %1315 = vxpose.xlu0.b32.cont [12/16] 0.0, 128
        %1316 = vxpose.xlu0.b32.cont [13/16] 0.0, 128
        %1317 = vxpose.xlu0.b32.cont [14/16] 0.0, 128
        %1318 = vxpose.xlu0.b32.cont [15/16] 0.0, 128
        %1319 = vxpose.xlu0.b32.end [16/16] 0.0, 128
        %v1320 = vpop.trf.xlu0
        %v1321 = vpop.trf.xlu0
        %v1322 = vpop.trf.xlu0
        %v1323 = vpop.trf.xlu0
        %v1324 = vpop.trf.xlu0
        %v1325 = vpop.trf.xlu0
        %v1326 = vpop.trf.xlu0
        %v1327 = vpop.trf.xlu0
        %v1328 = vpop.trf.xlu0
        %v1329 = vpop.trf.xlu0
        %v1330 = vpop.trf.xlu0
        %v1331 = vpop.trf.xlu0
        %v1332 = vpop.trf.xlu0
        %v1333 = vpop.trf.xlu0
        %v1334 = vpop.trf.xlu0
        %v1335 = vpop.trf.xlu0
        %1336 = vxpose.xlu0.b32.start [1/16] %v753, 128
        %1337 = vxpose.xlu0.b32.cont [2/16] %v755, 128
        %1338 = vxpose.xlu0.b32.cont [3/16] 0.0, 128
        %1339 = vxpose.xlu0.b32.cont [4/16] 0.0, 128
        %1340 = vxpose.xlu0.b32.cont [5/16] 0.0, 128
        %1341 = vxpose.xlu0.b32.cont [6/16] 0.0, 128
        %1342 = vxpose.xlu0.b32.cont [7/16] 0.0, 128
        %1343 = vxpose.xlu0.b32.cont [8/16] 0.0, 128
        %1344 = vxpose.xlu0.b32.cont [9/16] 0.0, 128
        %1345 = vxpose.xlu0.b32.cont [10/16] 0.0, 128
        %1346 = vxpose.xlu0.b32.cont [11/16] 0.0, 128
        %1347 = vxpose.xlu0.b32.cont [12/16] 0.0, 128
        %1348 = vxpose.xlu0.b32.cont [13/16] 0.0, 128
        %1349 = vxpose.xlu0.b32.cont [14/16] 0.0, 128
        %1350 = vxpose.xlu0.b32.cont [15/16] 0.0, 128
        %1351 = vxpose.xlu0.b32.end [16/16] 0.0, 128
        %v1352 = vpop.trf.xlu0
        %v1353 = vpop.trf.xlu0
        %v1354 = vpop.trf.xlu0
        %v1355 = vpop.trf.xlu0
        %v1356 = vpop.trf.xlu0
        %v1357 = vpop.trf.xlu0
        %v1358 = vpop.trf.xlu0
        %v1359 = vpop.trf.xlu0
        %v1360 = vpop.trf.xlu0
        %v1361 = vpop.trf.xlu0
        %v1362 = vpop.trf.xlu0
        %v1363 = vpop.trf.xlu0
        %v1364 = vpop.trf.xlu0
        %v1365 = vpop.trf.xlu0
        %v1366 = vpop.trf.xlu0
        %v1367 = vpop.trf.xlu0
        %1368 = vxpose.xlu0.b32.start [1/16] %v759, 128
        %1369 = vxpose.xlu0.b32.cont [2/16] %v761, 128
        %1370 = vxpose.xlu0.b32.cont [3/16] 0.0, 128
        %1371 = vxpose.xlu0.b32.cont [4/16] 0.0, 128
        %1372 = vxpose.xlu0.b32.cont [5/16] 0.0, 128
        %1373 = vxpose.xlu0.b32.cont [6/16] 0.0, 128
        %1374 = vxpose.xlu0.b32.cont [7/16] 0.0, 128
        %1375 = vxpose.xlu0.b32.cont [8/16] 0.0, 128
        %1376 = vxpose.xlu0.b32.cont [9/16] 0.0, 128
        %1377 = vxpose.xlu0.b32.cont [10/16] 0.0, 128
        %1378 = vxpose.xlu0.b32.cont [11/16] 0.0, 128
        %1379 = vxpose.xlu0.b32.cont [12/16] 0.0, 128
        %1380 = vxpose.xlu0.b32.cont [13/16] 0.0, 128
        %1381 = vxpose.xlu0.b32.cont [14/16] 0.0, 128
        %1382 = vxpose.xlu0.b32.cont [15/16] 0.0, 128
        %1383 = vxpose.xlu0.b32.end [16/16] 0.0, 128
        %v1384 = vpop.trf.xlu0
        %v1385 = vpop.trf.xlu0
        %v1386 = vpop.trf.xlu0
        %v1387 = vpop.trf.xlu0
        %v1388 = vpop.trf.xlu0
        %v1389 = vpop.trf.xlu0
        %v1390 = vpop.trf.xlu0
        %v1391 = vpop.trf.xlu0
        %v1392 = vpop.trf.xlu0
        %v1393 = vpop.trf.xlu0
        %v1394 = vpop.trf.xlu0
        %v1395 = vpop.trf.xlu0
        %v1396 = vpop.trf.xlu0
        %v1397 = vpop.trf.xlu0
        %v1398 = vpop.trf.xlu0
        %v1399 = vpop.trf.xlu0
        %1400 = vxpose.xlu0.b32.start [1/16] %v765, 128
        %1401 = vxpose.xlu0.b32.cont [2/16] %v767, 128
        %1402 = vxpose.xlu0.b32.cont [3/16] 0.0, 128
        %1403 = vxpose.xlu0.b32.cont [4/16] 0.0, 128
        %1404 = vxpose.xlu0.b32.cont [5/16] 0.0, 128
        %1405 = vxpose.xlu0.b32.cont [6/16] 0.0, 128
        %1406 = vxpose.xlu0.b32.cont [7/16] 0.0, 128
        %1407 = vxpose.xlu0.b32.cont [8/16] 0.0, 128
        %1408 = vxpose.xlu0.b32.cont [9/16] 0.0, 128
        %1409 = vxpose.xlu0.b32.cont [10/16] 0.0, 128
        %1410 = vxpose.xlu0.b32.cont [11/16] 0.0, 128
        %1411 = vxpose.xlu0.b32.cont [12/16] 0.0, 128
        %1412 = vxpose.xlu0.b32.cont [13/16] 0.0, 128
        %1413 = vxpose.xlu0.b32.cont [14/16] 0.0, 128
        %1414 = vxpose.xlu0.b32.cont [15/16] 0.0, 128
        %1415 = vxpose.xlu0.b32.end [16/16] 0.0, 128
        %v1416 = vpop.trf.xlu0
        %v1417 = vpop.trf.xlu0
        %v1418 = vpop.trf.xlu0
        %v1419 = vpop.trf.xlu0
        %v1420 = vpop.trf.xlu0
        %v1421 = vpop.trf.xlu0
        %v1422 = vpop.trf.xlu0
        %v1423 = vpop.trf.xlu0
        %v1424 = vpop.trf.xlu0
        %v1425 = vpop.trf.xlu0
        %v1426 = vpop.trf.xlu0
        %v1427 = vpop.trf.xlu0
        %v1428 = vpop.trf.xlu0
        %v1429 = vpop.trf.xlu0
        %v1430 = vpop.trf.xlu0
        %v1431 = vpop.trf.xlu0
        %v1433 = vsel %vm1215, %v1320, 0
        %v1436 = vsel %vm1215, %v1321, 0
        %v1439 = vsel %vm1215, %v1322, 0
        %v1442 = vsel %vm1215, %v1323, 0
        %v1445 = vsel %vm1215, %v1296, 0
        %v1448 = vsel %vm1215, %v1297, 0
        %1450 = vmatprep.subr.mxu0 0.0
        %1451 = vmatpush1.xpose.msra.mxu0 %v1445
        %1452 = vmatprep.subr.mxu0 0.0
        %1453 = vmatpush1.xpose.msra.mxu0 %v1448
        %1454 = vmatprep.subr.mxu0 0.0
        %1455 = vmatpush1.xpose.msra.mxu0 0.0
        %1456 = vmatprep.subr.mxu0 0.0
        %1457 = vmatpush1.xpose.msra.mxu0 0.0
        %1458 = vmatprep.subr.mxu0 0.0
        %1459 = vmatpush1.xpose.msra.mxu0 0.0
        %1460 = vmatprep.subr.mxu0 0.0
        %1461 = vmatpush1.xpose.msra.mxu0 0.0
        %1462 = vmatprep.subr.mxu0 0.0
        %1463 = vmatpush1.xpose.msra.mxu0 0.0
        %1464 = vmatprep.subr.mxu0 0.0
        %1465 = vmatpush1.xpose.msra.mxu0 0.0
        %1466 = vmatprep.subr.mxu0 0.0
        %1467 = vmatpush1.xpose.msra.mxu0 0.0
        %1468 = vmatprep.subr.mxu0 0.0
        %1469 = vmatpush1.xpose.msra.mxu0 0.0
        %1470 = vmatprep.subr.mxu0 0.0
        %1471 = vmatpush1.xpose.msra.mxu0 0.0
        %1472 = vmatprep.subr.mxu0 0.0
        %1473 = vmatpush1.xpose.msra.mxu0 0.0
        %1474 = vmatprep.subr.mxu0 0.0
        %1475 = vmatpush1.xpose.msra.mxu0 0.0
        %1476 = vmatprep.subr.mxu0 0.0
        %1477 = vmatpush1.xpose.msra.mxu0 0.0
        %1478 = vmatprep.subr.mxu0 0.0
        %1479 = vmatpush1.xpose.msra.mxu0 0.0
        %1480 = vmatprep.subr.mxu0 0.0
        %1481 = vmatpush1.xpose.msra.mxu0 0.0
        %1482 = vmatprep.subr.mxu0 0.0
        %1483 = vmatpush1.xpose.msra.mxu0 0.0
        %1484 = vmatprep.subr.mxu0 0.0
        %1485 = vmatpush1.xpose.msra.mxu0 0.0
        %1486 = vmatprep.subr.mxu0 0.0
        %1487 = vmatpush1.xpose.msra.mxu0 0.0
        %1488 = vmatprep.subr.mxu0 0.0
        %1489 = vmatpush1.xpose.msra.mxu0 0.0
        %1490 = vmatprep.subr.mxu0 0.0
        %1491 = vmatpush1.xpose.msra.mxu0 0.0
        %1492 = vmatprep.subr.mxu0 0.0
        %1493 = vmatpush1.xpose.msra.mxu0 0.0
        %1494 = vmatprep.subr.mxu0 0.0
        %1495 = vmatpush1.xpose.msra.mxu0 0.0
        %1496 = vmatprep.subr.mxu0 0.0
        %1497 = vmatpush1.xpose.msra.mxu0 0.0
        %1498 = vmatprep.subr.mxu0 0.0
        %1499 = vmatpush1.xpose.msra.mxu0 0.0
        %1500 = vmatprep.subr.mxu0 0.0
        %1501 = vmatpush1.xpose.msra.mxu0 0.0
        %1502 = vmatprep.subr.mxu0 0.0
        %1503 = vmatpush1.xpose.msra.mxu0 0.0
        %1504 = vmatprep.subr.mxu0 0.0
        %1505 = vmatpush1.xpose.msra.mxu0 0.0
        %1506 = vmatprep.subr.mxu0 0.0
        %1507 = vmatpush1.xpose.msra.mxu0 0.0
        %1508 = vmatprep.subr.mxu0 0.0
        %1509 = vmatpush1.xpose.msra.mxu0 0.0
        %1510 = vmatprep.subr.mxu0 0.0
        %1511 = vmatpush1.xpose.msra.mxu0 0.0
        %1512 = vmatprep.subr.mxu0 0.0
        %1513 = vmatpush1.xpose.msra.mxu0 0.0
        %1514 = vmatprep.mubr.f32.mxu0 0.0
        %1515 = vmatmul.mubr.f32.gmra.mrb[0].mxu0 %v1433
        %v1516 = vpop.f32.mrb[0].mxu0
        %v1517 = vadd.f32 0.0, %v1516
        %v1518 = vpop.f32.mrb[0].mxu0
        %1519 = vmatprep.mubr.f32.mxu0 0.0
        %1520 = vmatmul.mubr.f32.gmra.mrb[0].mxu0 %v1436
        %v1521 = vpop.f32.mrb[0].mxu0
        %v1522 = vadd.f32 0.0, %v1521
        %v1523 = vpop.f32.mrb[0].mxu0
        %1524 = vmatprep.mubr.f32.mxu0 0.0
        %1525 = vmatmul.mubr.f32.gmra.mrb[0].mxu0 %v1439
        %v1526 = vpop.f32.mrb[0].mxu0
        %v1527 = vadd.f32 0.0, %v1526
        %v1528 = vpop.f32.mrb[0].mxu0
        %1529 = vmatprep.mubr.f32.mxu0 0.0
        %1530 = vmatmul.mubr.f32.gmra.mrb[0].mxu0 %v1442
        %v1531 = vpop.f32.mrb[0].mxu0
        %v1532 = vadd.f32 0.0, %v1531
        %v1533 = vpop.f32.mrb[0].mxu0
        %1534 = vdwg.mxu0
        %v1536 = vsel %vm1215, %v1352, 0
        %v1539 = vsel %vm1215, %v1353, 0
        %v1542 = vsel %vm1215, %v1354, 0
        %v1545 = vsel %vm1215, %v1355, 0
        %v1548 = vsel %vm1215, %v1298, 0
        %v1551 = vsel %vm1215, %v1299, 0
        %1553 = vmatprep.subr.mxu0 0.0
        %1554 = vmatpush1.xpose.msra.mxu0 %v1548
        %1555 = vmatprep.subr.mxu0 0.0
        %1556 = vmatpush1.xpose.msra.mxu0 %v1551
        %1557 = vmatprep.subr.mxu0 0.0
        %1558 = vmatpush1.xpose.msra.mxu0 0.0
        %1559 = vmatprep.subr.mxu0 0.0
        %1560 = vmatpush1.xpose.msra.mxu0 0.0
        %1561 = vmatprep.subr.mxu0 0.0
        %1562 = vmatpush1.xpose.msra.mxu0 0.0
        %1563 = vmatprep.subr.mxu0 0.0
        %1564 = vmatpush1.xpose.msra.mxu0 0.0
        %1565 = vmatprep.subr.mxu0 0.0
        %1566 = vmatpush1.xpose.msra.mxu0 0.0
        %1567 = vmatprep.subr.mxu0 0.0
        %1568 = vmatpush1.xpose.msra.mxu0 0.0
        %1569 = vmatprep.subr.mxu0 0.0
        %1570 = vmatpush1.xpose.msra.mxu0 0.0
        %1571 = vmatprep.subr.mxu0 0.0
        %1572 = vmatpush1.xpose.msra.mxu0 0.0
        %1573 = vmatprep.subr.mxu0 0.0
        %1574 = vmatpush1.xpose.msra.mxu0 0.0
        %1575 = vmatprep.subr.mxu0 0.0
        %1576 = vmatpush1.xpose.msra.mxu0 0.0
        %1577 = vmatprep.subr.mxu0 0.0
        %1578 = vmatpush1.xpose.msra.mxu0 0.0
        %1579 = vmatprep.subr.mxu0 0.0
        %1580 = vmatpush1.xpose.msra.mxu0 0.0
        %1581 = vmatprep.subr.mxu0 0.0
        %1582 = vmatpush1.xpose.msra.mxu0 0.0
        %1583 = vmatprep.subr.mxu0 0.0
        %1584 = vmatpush1.xpose.msra.mxu0 0.0
        %1585 = vmatprep.subr.mxu0 0.0
        %1586 = vmatpush1.xpose.msra.mxu0 0.0
        %1587 = vmatprep.subr.mxu0 0.0
        %1588 = vmatpush1.xpose.msra.mxu0 0.0
        %1589 = vmatprep.subr.mxu0 0.0
        %1590 = vmatpush1.xpose.msra.mxu0 0.0
        %1591 = vmatprep.subr.mxu0 0.0
        %1592 = vmatpush1.xpose.msra.mxu0 0.0
        %1593 = vmatprep.subr.mxu0 0.0
        %1594 = vmatpush1.xpose.msra.mxu0 0.0
        %1595 = vmatprep.subr.mxu0 0.0
        %1596 = vmatpush1.xpose.msra.mxu0 0.0
        %1597 = vmatprep.subr.mxu0 0.0
        %1598 = vmatpush1.xpose.msra.mxu0 0.0
        %1599 = vmatprep.subr.mxu0 0.0
        %1600 = vmatpush1.xpose.msra.mxu0 0.0
        %1601 = vmatprep.subr.mxu0 0.0
        %1602 = vmatpush1.xpose.msra.mxu0 0.0
        %1603 = vmatprep.subr.mxu0 0.0
        %1604 = vmatpush1.xpose.msra.mxu0 0.0
        %1605 = vmatprep.subr.mxu0 0.0
        %1606 = vmatpush1.xpose.msra.mxu0 0.0
        %1607 = vmatprep.subr.mxu0 0.0
        %1608 = vmatpush1.xpose.msra.mxu0 0.0
        %1609 = vmatprep.subr.mxu0 0.0
        %1610 = vmatpush1.xpose.msra.mxu0 0.0
        %1611 = vmatprep.subr.mxu0 0.0
        %1612 = vmatpush1.xpose.msra.mxu0 0.0
        %1613 = vmatprep.subr.mxu0 0.0
        %1614 = vmatpush1.xpose.msra.mxu0 0.0
        %1615 = vmatprep.subr.mxu0 0.0
        %1616 = vmatpush1.xpose.msra.mxu0 0.0
        %1617 = vmatprep.mubr.f32.mxu0 0.0
        %1618 = vmatmul.mubr.f32.gmra.mrb[0].mxu0 %v1536
        %v1619 = vpop.f32.mrb[0].mxu0
        %v1620 = vadd.f32 0.0, %v1619
        %v1621 = vpop.f32.mrb[0].mxu0
        %1622 = vmatprep.mubr.f32.mxu0 0.0
        %1623 = vmatmul.mubr.f32.gmra.mrb[0].mxu0 %v1539
        %v1624 = vpop.f32.mrb[0].mxu0
        %v1625 = vadd.f32 0.0, %v1624
        %v1626 = vpop.f32.mrb[0].mxu0
        %1627 = vmatprep.mubr.f32.mxu0 0.0
        %1628 = vmatmul.mubr.f32.gmra.mrb[0].mxu0 %v1542
        %v1629 = vpop.f32.mrb[0].mxu0
        %v1630 = vadd.f32 0.0, %v1629
        %v1631 = vpop.f32.mrb[0].mxu0
        %1632 = vmatprep.mubr.f32.mxu0 0.0
        %1633 = vmatmul.mubr.f32.gmra.mrb[0].mxu0 %v1545
        %v1634 = vpop.f32.mrb[0].mxu0
        %v1635 = vadd.f32 0.0, %v1634
        %v1636 = vpop.f32.mrb[0].mxu0
        %1637 = vdwg.mxu0
        %v1639 = vsel %vm1215, %v1384, 0
        %v1642 = vsel %vm1215, %v1385, 0
        %v1645 = vsel %vm1215, %v1386, 0
        %v1648 = vsel %vm1215, %v1387, 0
        %v1651 = vsel %vm1215, %v1300, 0
        %v1654 = vsel %vm1215, %v1301, 0
        %1656 = vmatprep.subr.mxu0 0.0
        %1657 = vmatpush1.xpose.msra.mxu0 %v1651
        %1658 = vmatprep.subr.mxu0 0.0
        %1659 = vmatpush1.xpose.msra.mxu0 %v1654
        %1660 = vmatprep.subr.mxu0 0.0
        %1661 = vmatpush1.xpose.msra.mxu0 0.0
        %1662 = vmatprep.subr.mxu0 0.0
        %1663 = vmatpush1.xpose.msra.mxu0 0.0
        %1664 = vmatprep.subr.mxu0 0.0
        %1665 = vmatpush1.xpose.msra.mxu0 0.0
        %1666 = vmatprep.subr.mxu0 0.0
        %1667 = vmatpush1.xpose.msra.mxu0 0.0
        %1668 = vmatprep.subr.mxu0 0.0
        %1669 = vmatpush1.xpose.msra.mxu0 0.0
        %1670 = vmatprep.subr.mxu0 0.0
        %1671 = vmatpush1.xpose.msra.mxu0 0.0
        %1672 = vmatprep.subr.mxu0 0.0
        %1673 = vmatpush1.xpose.msra.mxu0 0.0
        %1674 = vmatprep.subr.mxu0 0.0
        %1675 = vmatpush1.xpose.msra.mxu0 0.0
        %1676 = vmatprep.subr.mxu0 0.0
        %1677 = vmatpush1.xpose.msra.mxu0 0.0
        %1678 = vmatprep.subr.mxu0 0.0
        %1679 = vmatpush1.xpose.msra.mxu0 0.0
        %1680 = vmatprep.subr.mxu0 0.0
        %1681 = vmatpush1.xpose.msra.mxu0 0.0
        %1682 = vmatprep.subr.mxu0 0.0
        %1683 = vmatpush1.xpose.msra.mxu0 0.0
        %1684 = vmatprep.subr.mxu0 0.0
        %1685 = vmatpush1.xpose.msra.mxu0 0.0
        %1686 = vmatprep.subr.mxu0 0.0
        %1687 = vmatpush1.xpose.msra.mxu0 0.0
        %1688 = vmatprep.subr.mxu0 0.0
        %1689 = vmatpush1.xpose.msra.mxu0 0.0
        %1690 = vmatprep.subr.mxu0 0.0
        %1691 = vmatpush1.xpose.msra.mxu0 0.0
        %1692 = vmatprep.subr.mxu0 0.0
        %1693 = vmatpush1.xpose.msra.mxu0 0.0
        %1694 = vmatprep.subr.mxu0 0.0
        %1695 = vmatpush1.xpose.msra.mxu0 0.0
        %1696 = vmatprep.subr.mxu0 0.0
        %1697 = vmatpush1.xpose.msra.mxu0 0.0
        %1698 = vmatprep.subr.mxu0 0.0
        %1699 = vmatpush1.xpose.msra.mxu0 0.0
        %1700 = vmatprep.subr.mxu0 0.0
        %1701 = vmatpush1.xpose.msra.mxu0 0.0
        %1702 = vmatprep.subr.mxu0 0.0
        %1703 = vmatpush1.xpose.msra.mxu0 0.0
        %1704 = vmatprep.subr.mxu0 0.0
        %1705 = vmatpush1.xpose.msra.mxu0 0.0
        %1706 = vmatprep.subr.mxu0 0.0
        %1707 = vmatpush1.xpose.msra.mxu0 0.0
        %1708 = vmatprep.subr.mxu0 0.0
        %1709 = vmatpush1.xpose.msra.mxu0 0.0
        %1710 = vmatprep.subr.mxu0 0.0
        %1711 = vmatpush1.xpose.msra.mxu0 0.0
        %1712 = vmatprep.subr.mxu0 0.0
        %1713 = vmatpush1.xpose.msra.mxu0 0.0
        %1714 = vmatprep.subr.mxu0 0.0
        %1715 = vmatpush1.xpose.msra.mxu0 0.0
        %1716 = vmatprep.subr.mxu0 0.0
        %1717 = vmatpush1.xpose.msra.mxu0 0.0
        %1718 = vmatprep.subr.mxu0 0.0
        %1719 = vmatpush1.xpose.msra.mxu0 0.0
        %1720 = vmatprep.mubr.f32.mxu0 0.0
        %1721 = vmatmul.mubr.f32.gmra.mrb[0].mxu0 %v1639
        %v1722 = vpop.f32.mrb[0].mxu0
        %v1723 = vadd.f32 0.0, %v1722
        %v1724 = vpop.f32.mrb[0].mxu0
        %1725 = vmatprep.mubr.f32.mxu0 0.0
        %1726 = vmatmul.mubr.f32.gmra.mrb[0].mxu0 %v1642
        %v1727 = vpop.f32.mrb[0].mxu0
        %v1728 = vadd.f32 0.0, %v1727
        %v1729 = vpop.f32.mrb[0].mxu0
        %1730 = vmatprep.mubr.f32.mxu0 0.0
        %1731 = vmatmul.mubr.f32.gmra.mrb[0].mxu0 %v1645
        %v1732 = vpop.f32.mrb[0].mxu0
        %v1733 = vadd.f32 0.0, %v1732
        %v1734 = vpop.f32.mrb[0].mxu0
        %1735 = vmatprep.mubr.f32.mxu0 0.0
        %1736 = vmatmul.mubr.f32.gmra.mrb[0].mxu0 %v1648
        %v1737 = vpop.f32.mrb[0].mxu0
        %v1738 = vadd.f32 0.0, %v1737
        %v1739 = vpop.f32.mrb[0].mxu0
        %1740 = vdwg.mxu0
        %v1742 = vsel %vm1215, %v1416, 0
        %v1745 = vsel %vm1215, %v1417, 0
        %v1748 = vsel %vm1215, %v1418, 0
        %v1751 = vsel %vm1215, %v1419, 0
        %v1754 = vsel %vm1215, %v1302, 0
        %v1757 = vsel %vm1215, %v1303, 0
        %1759 = vmatprep.subr.mxu0 0.0
        %1760 = vmatpush1.xpose.msra.mxu0 %v1754
        %1761 = vmatprep.subr.mxu0 0.0
        %1762 = vmatpush1.xpose.msra.mxu0 %v1757
        %1763 = vmatprep.subr.mxu0 0.0
        %1764 = vmatpush1.xpose.msra.mxu0 0.0
        %1765 = vmatprep.subr.mxu0 0.0
        %1766 = vmatpush1.xpose.msra.mxu0 0.0
        %1767 = vmatprep.subr.mxu0 0.0
        %1768 = vmatpush1.xpose.msra.mxu0 0.0
        %1769 = vmatprep.subr.mxu0 0.0
        %1770 = vmatpush1.xpose.msra.mxu0 0.0
        %1771 = vmatprep.subr.mxu0 0.0
        %1772 = vmatpush1.xpose.msra.mxu0 0.0
        %1773 = vmatprep.subr.mxu0 0.0
        %1774 = vmatpush1.xpose.msra.mxu0 0.0
        %1775 = vmatprep.subr.mxu0 0.0
        %1776 = vmatpush1.xpose.msra.mxu0 0.0
        %1777 = vmatprep.subr.mxu0 0.0
        %1778 = vmatpush1.xpose.msra.mxu0 0.0
        %1779 = vmatprep.subr.mxu0 0.0
        %1780 = vmatpush1.xpose.msra.mxu0 0.0
        %1781 = vmatprep.subr.mxu0 0.0
        %1782 = vmatpush1.xpose.msra.mxu0 0.0
        %1783 = vmatprep.subr.mxu0 0.0
        %1784 = vmatpush1.xpose.msra.mxu0 0.0
        %1785 = vmatprep.subr.mxu0 0.0
        %1786 = vmatpush1.xpose.msra.mxu0 0.0
        %1787 = vmatprep.subr.mxu0 0.0
        %1788 = vmatpush1.xpose.msra.mxu0 0.0
        %1789 = vmatprep.subr.mxu0 0.0
        %1790 = vmatpush1.xpose.msra.mxu0 0.0
        %1791 = vmatprep.subr.mxu0 0.0
        %1792 = vmatpush1.xpose.msra.mxu0 0.0
        %1793 = vmatprep.subr.mxu0 0.0
        %1794 = vmatpush1.xpose.msra.mxu0 0.0
        %1795 = vmatprep.subr.mxu0 0.0
        %1796 = vmatpush1.xpose.msra.mxu0 0.0
        %1797 = vmatprep.subr.mxu0 0.0
        %1798 = vmatpush1.xpose.msra.mxu0 0.0
        %1799 = vmatprep.subr.mxu0 0.0
        %1800 = vmatpush1.xpose.msra.mxu0 0.0
        %1801 = vmatprep.subr.mxu0 0.0
        %1802 = vmatpush1.xpose.msra.mxu0 0.0
        %1803 = vmatprep.subr.mxu0 0.0
        %1804 = vmatpush1.xpose.msra.mxu0 0.0
        %1805 = vmatprep.subr.mxu0 0.0
        %1806 = vmatpush1.xpose.msra.mxu0 0.0
        %1807 = vmatprep.subr.mxu0 0.0
        %1808 = vmatpush1.xpose.msra.mxu0 0.0
        %1809 = vmatprep.subr.mxu0 0.0
        %1810 = vmatpush1.xpose.msra.mxu0 0.0
        %1811 = vmatprep.subr.mxu0 0.0
        %1812 = vmatpush1.xpose.msra.mxu0 0.0
        %1813 = vmatprep.subr.mxu0 0.0
        %1814 = vmatpush1.xpose.msra.mxu0 0.0
        %1815 = vmatprep.subr.mxu0 0.0
        %1816 = vmatpush1.xpose.msra.mxu0 0.0
        %1817 = vmatprep.subr.mxu0 0.0
        %1818 = vmatpush1.xpose.msra.mxu0 0.0
        %1819 = vmatprep.subr.mxu0 0.0
        %1820 = vmatpush1.xpose.msra.mxu0 0.0
        %1821 = vmatprep.subr.mxu0 0.0
        %1822 = vmatpush1.xpose.msra.mxu0 0.0
        %1823 = vmatprep.mubr.f32.mxu0 0.0
        %1824 = vmatmul.mubr.f32.gmra.mrb[0].mxu0 %v1742
        %v1825 = vpop.f32.mrb[0].mxu0
        %v1826 = vadd.f32 0.0, %v1825
        %v1827 = vpop.f32.mrb[0].mxu0
        %1828 = vmatprep.mubr.f32.mxu0 0.0
        %1829 = vmatmul.mubr.f32.gmra.mrb[0].mxu0 %v1745
        %v1830 = vpop.f32.mrb[0].mxu0
        %v1831 = vadd.f32 0.0, %v1830
        %v1832 = vpop.f32.mrb[0].mxu0
        %1833 = vmatprep.mubr.f32.mxu0 0.0
        %1834 = vmatmul.mubr.f32.gmra.mrb[0].mxu0 %v1748
        %v1835 = vpop.f32.mrb[0].mxu0
        %v1836 = vadd.f32 0.0, %v1835
        %v1837 = vpop.f32.mrb[0].mxu0
        %1838 = vmatprep.mubr.f32.mxu0 0.0
        %1839 = vmatmul.mubr.f32.gmra.mrb[0].mxu0 %v1751
        %v1840 = vpop.f32.mrb[0].mxu0
        %v1841 = vadd.f32 0.0, %v1840
        %v1842 = vpop.f32.mrb[0].mxu0
        %1843 = vdwg.mxu0
        %1844 = vxpose.xlu0.b32.start [1/16] %v1517, 128
        %1845 = vxpose.xlu0.b32.cont [2/16] %v1522, 128
        %1846 = vxpose.xlu0.b32.cont [3/16] %v1527, 128
        %1847 = vxpose.xlu0.b32.cont [4/16] %v1532, 128
        %1848 = vxpose.xlu0.b32.cont [5/16] 0.0, 128
        %1849 = vxpose.xlu0.b32.cont [6/16] 0.0, 128
        %1850 = vxpose.xlu0.b32.cont [7/16] 0.0, 128
        %1851 = vxpose.xlu0.b32.cont [8/16] 0.0, 128
        %1852 = vxpose.xlu0.b32.cont [9/16] 0.0, 128
        %1853 = vxpose.xlu0.b32.cont [10/16] 0.0, 128
        %1854 = vxpose.xlu0.b32.cont [11/16] 0.0, 128
        %1855 = vxpose.xlu0.b32.cont [12/16] 0.0, 128
        %1856 = vxpose.xlu0.b32.cont [13/16] 0.0, 128
        %1857 = vxpose.xlu0.b32.cont [14/16] 0.0, 128
        %1858 = vxpose.xlu0.b32.cont [15/16] 0.0, 128
        %1859 = vxpose.xlu0.b32.end [16/16] 0.0, 128
        %v1860 = vpop.trf.xlu0
        %v1861 = vpop.trf.xlu0
        %v1862 = vpop.trf.xlu0
        %v1863 = vpop.trf.xlu0
        %v1864 = vpop.trf.xlu0
        %v1865 = vpop.trf.xlu0
        %v1866 = vpop.trf.xlu0
        %v1867 = vpop.trf.xlu0
        %v1868 = vpop.trf.xlu0
        %v1869 = vpop.trf.xlu0
        %v1870 = vpop.trf.xlu0
        %v1871 = vpop.trf.xlu0
        %v1872 = vpop.trf.xlu0
        %v1873 = vpop.trf.xlu0
        %v1874 = vpop.trf.xlu0
        %v1875 = vpop.trf.xlu0
        %1876 = vxpose.xlu0.b32.start [1/16] %v1620, 128
        %1877 = vxpose.xlu0.b32.cont [2/16] %v1625, 128
        %1878 = vxpose.xlu0.b32.cont [3/16] %v1630, 128
        %1879 = vxpose.xlu0.b32.cont [4/16] %v1635, 128
        %1880 = vxpose.xlu0.b32.cont [5/16] 0.0, 128
        %1881 = vxpose.xlu0.b32.cont [6/16] 0.0, 128
        %1882 = vxpose.xlu0.b32.cont [7/16] 0.0, 128
        %1883 = vxpose.xlu0.b32.cont [8/16] 0.0, 128
        %1884 = vxpose.xlu0.b32.cont [9/16] 0.0, 128
        %1885 = vxpose.xlu0.b32.cont [10/16] 0.0, 128
        %1886 = vxpose.xlu0.b32.cont [11/16] 0.0, 128
        %1887 = vxpose.xlu0.b32.cont [12/16] 0.0, 128
        %1888 = vxpose.xlu0.b32.cont [13/16] 0.0, 128
        %1889 = vxpose.xlu0.b32.cont [14/16] 0.0, 128
        %1890 = vxpose.xlu0.b32.cont [15/16] 0.0, 128
        %1891 = vxpose.xlu0.b32.end [16/16] 0.0, 128
        %v1892 = vpop.trf.xlu0
        %v1893 = vpop.trf.xlu0
        %v1894 = vpop.trf.xlu0
        %v1895 = vpop.trf.xlu0
        %v1896 = vpop.trf.xlu0
        %v1897 = vpop.trf.xlu0
        %v1898 = vpop.trf.xlu0
        %v1899 = vpop.trf.xlu0
        %v1900 = vpop.trf.xlu0
        %v1901 = vpop.trf.xlu0
        %v1902 = vpop.trf.xlu0
        %v1903 = vpop.trf.xlu0
        %v1904 = vpop.trf.xlu0
        %v1905 = vpop.trf.xlu0
        %v1906 = vpop.trf.xlu0
        %v1907 = vpop.trf.xlu0
        %1908 = vxpose.xlu0.b32.start [1/16] %v1723, 128
        %1909 = vxpose.xlu0.b32.cont [2/16] %v1728, 128
        %1910 = vxpose.xlu0.b32.cont [3/16] %v1733, 128
        %1911 = vxpose.xlu0.b32.cont [4/16] %v1738, 128
        %1912 = vxpose.xlu0.b32.cont [5/16] 0.0, 128
        %1913 = vxpose.xlu0.b32.cont [6/16] 0.0, 128
        %1914 = vxpose.xlu0.b32.cont [7/16] 0.0, 128
        %1915 = vxpose.xlu0.b32.cont [8/16] 0.0, 128
        %1916 = vxpose.xlu0.b32.cont [9/16] 0.0, 128
        %1917 = vxpose.xlu0.b32.cont [10/16] 0.0, 128
        %1918 = vxpose.xlu0.b32.cont [11/16] 0.0, 128
        %1919 = vxpose.xlu0.b32.cont [12/16] 0.0, 128
        %1920 = vxpose.xlu0.b32.cont [13/16] 0.0, 128
        %1921 = vxpose.xlu0.b32.cont [14/16] 0.0, 128
        %1922 = vxpose.xlu0.b32.cont [15/16] 0.0, 128
        %1923 = vxpose.xlu0.b32.end [16/16] 0.0, 128
        %v1924 = vpop.trf.xlu0
        %v1925 = vpop.trf.xlu0
        %v1926 = vpop.trf.xlu0
        %v1927 = vpop.trf.xlu0
        %v1928 = vpop.trf.xlu0
        %v1929 = vpop.trf.xlu0
        %v1930 = vpop.trf.xlu0
        %v1931 = vpop.trf.xlu0
        %v1932 = vpop.trf.xlu0
        %v1933 = vpop.trf.xlu0
        %v1934 = vpop.trf.xlu0
        %v1935 = vpop.trf.xlu0
        %v1936 = vpop.trf.xlu0
        %v1937 = vpop.trf.xlu0
        %v1938 = vpop.trf.xlu0
        %v1939 = vpop.trf.xlu0
        %1940 = vxpose.xlu0.b32.start [1/16] %v1826, 128
        %1941 = vxpose.xlu0.b32.cont [2/16] %v1831, 128
        %1942 = vxpose.xlu0.b32.cont [3/16] %v1836, 128
        %1943 = vxpose.xlu0.b32.cont [4/16] %v1841, 128
        %1944 = vxpose.xlu0.b32.cont [5/16] 0.0, 128
        %1945 = vxpose.xlu0.b32.cont [6/16] 0.0, 128
        %1946 = vxpose.xlu0.b32.cont [7/16] 0.0, 128
        %1947 = vxpose.xlu0.b32.cont [8/16] 0.0, 128
        %1948 = vxpose.xlu0.b32.cont [9/16] 0.0, 128
        %1949 = vxpose.xlu0.b32.cont [10/16] 0.0, 128
        %1950 = vxpose.xlu0.b32.cont [11/16] 0.0, 128
        %1951 = vxpose.xlu0.b32.cont [12/16] 0.0, 128
        %1952 = vxpose.xlu0.b32.cont [13/16] 0.0, 128
        %1953 = vxpose.xlu0.b32.cont [14/16] 0.0, 128
        %1954 = vxpose.xlu0.b32.cont [15/16] 0.0, 128
        %1955 = vxpose.xlu0.b32.end [16/16] 0.0, 128
        %v1956 = vpop.trf.xlu0
        %v1957 = vpop.trf.xlu0
        %v1958 = vpop.trf.xlu0
        %v1959 = vpop.trf.xlu0
        %v1960 = vpop.trf.xlu0
        %v1961 = vpop.trf.xlu0
        %v1962 = vpop.trf.xlu0
        %v1963 = vpop.trf.xlu0
        %v1964 = vpop.trf.xlu0
        %v1965 = vpop.trf.xlu0
        %v1966 = vpop.trf.xlu0
        %v1967 = vpop.trf.xlu0
        %v1968 = vpop.trf.xlu0
        %v1969 = vpop.trf.xlu0
        %v1970 = vpop.trf.xlu0
        %v1971 = vpop.trf.xlu0
        %v1972 = vcombine.low %v1860, %v1924
        %v1973 = vcombine.high %v1860, %v1924
        %v1975 = vunpack.c.l.s4 1983009808
        %v1976 = vunpack.c.0.s8 %v1975
        %v1977 = vlaneseq
        %v1978 = vshrl.u32 %v1977, 7
        %v1979 = vsub.s32 %v1976, %v1978
        %v1980 = vrot.slane %v1972, %v1979
        %v1982 = vunpack.c.l.s4 1983009808
        %v1983 = vunpack.c.0.s8 %v1982
        %v1984 = vlaneseq
        %v1985 = vshrl.u32 %v1984, 7
        %v1986 = vsub.s32 %v1983, %v1985
        %v1987 = vrot.slane %v1973, %v1986
        %v1988 = vcombine.low %v1892, %v1956
        %v1989 = vcombine.high %v1892, %v1956
        %v1991 = vunpack.c.l.s4 1983009808
        %v1992 = vunpack.c.0.s8 %v1991
        %v1993 = vlaneseq
        %v1994 = vshrl.u32 %v1993, 7
        %v1995 = vsub.s32 %v1992, %v1994
        %v1996 = vrot.slane %v1988, %v1995
        %v1998 = vunpack.c.l.s4 1983009808
        %v1999 = vunpack.c.0.s8 %v1998
        %v2000 = vlaneseq
        %v2001 = vshrl.u32 %v2000, 7
        %v2002 = vsub.s32 %v1999, %v2001
        %v2003 = vrot.slane %v1989, %v2002
        %v2004 = vcombine.low %v1980, %v1996
        %v2005 = vcombine.high %v1980, %v1996
        %v2007 = vunpack.c.l.s4 1934713408
        %v2008 = vunpack.c.0.s8 %v2007
        %v2009 = vlaneseq
        %v2010 = vshrl.u32 %v2009, 7
        %v2011 = vsub.s32 %v2008, %v2010
        %v2012 = vrot.slane %v2004, %v2011
        %v2014 = vunpack.c.l.s4 1934713408
        %v2015 = vunpack.c.0.s8 %v2014
        %v2016 = vlaneseq
        %v2017 = vshrl.u32 %v2016, 7
        %v2018 = vsub.s32 %v2015, %v2017
        %v2019 = vrot.slane %v2005, %v2018
        %v2020 = vcombine.low %v1987, %v2003
        %v2021 = vcombine.high %v1987, %v2003
        %v2023 = vunpack.c.l.s4 1934713408
        %v2024 = vunpack.c.0.s8 %v2023
        %v2025 = vlaneseq
        %v2026 = vshrl.u32 %v2025, 7
        %v2027 = vsub.s32 %v2024, %v2026
        %v2028 = vrot.slane %v2020, %v2027
        %v2030 = vunpack.c.l.s4 1934713408
        %v2031 = vunpack.c.0.s8 %v2030
        %v2032 = vlaneseq
        %v2033 = vshrl.u32 %v2032, 7
        %v2034 = vsub.s32 %v2031, %v2033
        %v2035 = vrot.slane %v2021, %v2034
        %v2036 = vcombine.high %v2012, 0.0
        %v2037 = vcombine.high %v2019, 0.0
        %v2038 = vcombine.high %v2028, 0.0
        %v2039 = vcombine.high %v2035, 0.0
        %v2040 = vcombine.low %v1861, %v1925
        %v2041 = vcombine.high %v1861, %v1925
        %v2043 = vunpack.c.l.s4 1983009808
        %v2044 = vunpack.c.0.s8 %v2043
        %v2045 = vlaneseq
        %v2046 = vshrl.u32 %v2045, 7
        %v2047 = vsub.s32 %v2044, %v2046
        %v2048 = vrot.slane %v2040, %v2047
        %v2050 = vunpack.c.l.s4 1983009808
        %v2051 = vunpack.c.0.s8 %v2050
        %v2052 = vlaneseq
        %v2053 = vshrl.u32 %v2052, 7
        %v2054 = vsub.s32 %v2051, %v2053
        %v2055 = vrot.slane %v2041, %v2054
        %v2056 = vcombine.low %v1893, %v1957
        %v2057 = vcombine.high %v1893, %v1957
        %v2059 = vunpack.c.l.s4 1983009808
        %v2060 = vunpack.c.0.s8 %v2059
        %v2061 = vlaneseq
        %v2062 = vshrl.u32 %v2061, 7
        %v2063 = vsub.s32 %v2060, %v2062
        %v2064 = vrot.slane %v2056, %v2063
        %v2066 = vunpack.c.l.s4 1983009808
        %v2067 = vunpack.c.0.s8 %v2066
        %v2068 = vlaneseq
        %v2069 = vshrl.u32 %v2068, 7
        %v2070 = vsub.s32 %v2067, %v2069
        %v2071 = vrot.slane %v2057, %v2070
        %v2072 = vcombine.low %v2048, %v2064
        %v2073 = vcombine.high %v2048, %v2064
        %v2075 = vunpack.c.l.s4 1934713408
        %v2076 = vunpack.c.0.s8 %v2075
        %v2077 = vlaneseq
        %v2078 = vshrl.u32 %v2077, 7
        %v2079 = vsub.s32 %v2076, %v2078
        %v2080 = vrot.slane %v2072, %v2079
        %v2082 = vunpack.c.l.s4 1934713408
        %v2083 = vunpack.c.0.s8 %v2082
        %v2084 = vlaneseq
        %v2085 = vshrl.u32 %v2084, 7
        %v2086 = vsub.s32 %v2083, %v2085
        %v2087 = vrot.slane %v2073, %v2086
        %v2088 = vcombine.low %v2055, %v2071
        %v2089 = vcombine.high %v2055, %v2071
        %v2091 = vunpack.c.l.s4 1934713408
        %v2092 = vunpack.c.0.s8 %v2091
        %v2093 = vlaneseq
        %v2094 = vshrl.u32 %v2093, 7
        %v2095 = vsub.s32 %v2092, %v2094
        %v2096 = vrot.slane %v2088, %v2095
        %v2098 = vunpack.c.l.s4 1934713408
        %v2099 = vunpack.c.0.s8 %v2098
        %v2100 = vlaneseq
        %v2101 = vshrl.u32 %v2100, 7
        %v2102 = vsub.s32 %v2099, %v2101
        %v2103 = vrot.slane %v2089, %v2102
        %v2104 = vcombine.high %v2080, 0.0
        %v2105 = vcombine.high %v2087, 0.0
        %v2106 = vcombine.high %v2096, 0.0
        %v2107 = vcombine.high %v2103, 0.0
        %v2108 = vcombine.low %v2012, %v2019
        %v2110 = vunpack.c.l.s4 1983009808
        %v2111 = vunpack.c.0.s8 %v2110
        %v2112 = vlaneseq
        %v2113 = vshrl.u32 %v2112, 7
        %v2114 = vsub.s32 %v2111, %v2113
        %v2115 = vrot.slane %v2108, %v2114
        %v2116 = vcombine.low %v2036, %v2037
        %v2118 = vunpack.c.l.s4 1983009808
        %v2119 = vunpack.c.0.s8 %v2118
        %v2120 = vlaneseq
        %v2121 = vshrl.u32 %v2120, 7
        %v2122 = vsub.s32 %v2119, %v2121
        %v2123 = vrot.slane %v2116, %v2122
        %v2124 = vcombine.low %v2028, %v2035
        %v2126 = vunpack.c.l.s4 1983009808
        %v2127 = vunpack.c.0.s8 %v2126
        %v2128 = vlaneseq
        %v2129 = vshrl.u32 %v2128, 7
        %v2130 = vsub.s32 %v2127, %v2129
        %v2131 = vrot.slane %v2124, %v2130
        %v2132 = vcombine.low %v2038, %v2039
        %v2134 = vunpack.c.l.s4 1983009808
        %v2135 = vunpack.c.0.s8 %v2134
        %v2136 = vlaneseq
        %v2137 = vshrl.u32 %v2136, 7
        %v2138 = vsub.s32 %v2135, %v2137
        %v2139 = vrot.slane %v2132, %v2138
        %v2140 = vcombine.low %v2115, %v2123
        %v2141 = vcombine.high %v2115, %v2123
        %v2143 = vunpack.c.l.s4 1934713408
        %v2144 = vunpack.c.0.s8 %v2143
        %v2145 = vlaneseq
        %v2146 = vshrl.u32 %v2145, 7
        %v2147 = vsub.s32 %v2144, %v2146
        %v2148 = vrot.slane %v2140, %v2147
        %v2150 = vunpack.c.l.s4 1934713408
        %v2151 = vunpack.c.0.s8 %v2150
        %v2152 = vlaneseq
        %v2153 = vshrl.u32 %v2152, 7
        %v2154 = vsub.s32 %v2151, %v2153
        %v2155 = vrot.slane %v2141, %v2154
        %v2156 = vcombine.low %v2131, %v2139
        %v2157 = vcombine.high %v2131, %v2139
        %v2159 = vunpack.c.l.s4 1934713408
        %v2160 = vunpack.c.0.s8 %v2159
        %v2161 = vlaneseq
        %v2162 = vshrl.u32 %v2161, 7
        %v2163 = vsub.s32 %v2160, %v2162
        %v2164 = vrot.slane %v2156, %v2163
        %v2166 = vunpack.c.l.s4 1934713408
        %v2167 = vunpack.c.0.s8 %v2166
        %v2168 = vlaneseq
        %v2169 = vshrl.u32 %v2168, 7
        %v2170 = vsub.s32 %v2167, %v2169
        %v2171 = vrot.slane %v2157, %v2170
        %v2172 = vcombine.low %v2148, %v2164
        %v2173 = vcombine.high %v2148, %v2164
        %v2174 = vcombine.low %v2155, %v2171
        %v2175 = vcombine.high %v2155, %v2171
        %v2176 = vcombine.low %v2080, %v2087
        %v2178 = vunpack.c.l.s4 1983009808
        %v2179 = vunpack.c.0.s8 %v2178
        %v2180 = vlaneseq
        %v2181 = vshrl.u32 %v2180, 7
        %v2182 = vsub.s32 %v2179, %v2181
        %v2183 = vrot.slane %v2176, %v2182
        %v2184 = vcombine.low %v2104, %v2105
        %v2186 = vunpack.c.l.s4 1983009808
        %v2187 = vunpack.c.0.s8 %v2186
        %v2188 = vlaneseq
        %v2189 = vshrl.u32 %v2188, 7
        %v2190 = vsub.s32 %v2187, %v2189
        %v2191 = vrot.slane %v2184, %v2190
        %v2192 = vcombine.low %v2096, %v2103
        %v2194 = vunpack.c.l.s4 1983009808
        %v2195 = vunpack.c.0.s8 %v2194
        %v2196 = vlaneseq
        %v2197 = vshrl.u32 %v2196, 7
        %v2198 = vsub.s32 %v2195, %v2197
        %v2199 = vrot.slane %v2192, %v2198
        %v2200 = vcombine.low %v2106, %v2107
        %v2202 = vunpack.c.l.s4 1983009808
        %v2203 = vunpack.c.0.s8 %v2202
        %v2204 = vlaneseq
        %v2205 = vshrl.u32 %v2204, 7
        %v2206 = vsub.s32 %v2203, %v2205
        %v2207 = vrot.slane %v2200, %v2206
        %v2208 = vcombine.low %v2183, %v2191
        %v2209 = vcombine.high %v2183, %v2191
        %v2211 = vunpack.c.l.s4 1934713408
        %v2212 = vunpack.c.0.s8 %v2211
        %v2213 = vlaneseq
        %v2214 = vshrl.u32 %v2213, 7
        %v2215 = vsub.s32 %v2212, %v2214
        %v2216 = vrot.slane %v2208, %v2215
        %v2218 = vunpack.c.l.s4 1934713408
        %v2219 = vunpack.c.0.s8 %v2218
        %v2220 = vlaneseq
        %v2221 = vshrl.u32 %v2220, 7
        %v2222 = vsub.s32 %v2219, %v2221
        %v2223 = vrot.slane %v2209, %v2222
        %v2224 = vcombine.low %v2199, %v2207
        %v2225 = vcombine.high %v2199, %v2207
        %v2227 = vunpack.c.l.s4 1934713408
        %v2228 = vunpack.c.0.s8 %v2227
        %v2229 = vlaneseq
        %v2230 = vshrl.u32 %v2229, 7
        %v2231 = vsub.s32 %v2228, %v2230
        %v2232 = vrot.slane %v2224, %v2231
        %v2234 = vunpack.c.l.s4 1934713408
        %v2235 = vunpack.c.0.s8 %v2234
        %v2236 = vlaneseq
        %v2237 = vshrl.u32 %v2236, 7
        %v2238 = vsub.s32 %v2235, %v2237
        %v2239 = vrot.slane %v2225, %v2238
        %v2240 = vcombine.low %v2216, %v2232
        %v2241 = vcombine.high %v2216, %v2232
        %v2242 = vcombine.low %v2223, %v2239
        %v2243 = vcombine.high %v2223, %v2239
        %2246 = vrot.lane.b32.xlu0 %v2173, 32
        %v2247 = vpop.permute.xlu0 %2246
        %2248 = vrot.lane.b32.xlu0 %v2241, 32
        %v2249 = vpop.permute.xlu0 %2248
        %2254 = vrot.lane.b32.xlu0 %v2174, 64
        %v2255 = vpop.permute.xlu0 %2254
        %2256 = vrot.lane.b32.xlu0 %v2242, 64
        %v2257 = vpop.permute.xlu0 %2256
        %2262 = vrot.lane.b32.xlu0 %v2175, 96
        %v2263 = vpop.permute.xlu0 %2262
        %2264 = vrot.lane.b32.xlu0 %v2243, 96
        %v2265 = vpop.permute.xlu0 %2264
        %v2268 = vsel %vm898, %v2172, %v2247
        %v2269 = vsel %vm898, %v2240, %v2249
        %vm2270 = vcmask 523264
        %v2271 = vsel %vm2270, %v2268, %v2255
        %v2272 = vsel %vm2270, %v2269, %v2257
        %vm2273 = vcmask 785408
        %v2274 = vsel %vm2273, %v2271, %v2263
        %v2275 = vsel %vm2273, %v2272, %v2265
        %v2276 = vld [vmem:[#allocation11] sm:$0xff]
        %v2277 = vld [vmem:[#allocation11 + $0x8] sm:$0xff]
        %v2278 = vld [vmem:[#allocation11 + $0x10] sm:$0xff]
        %v2279 = vld [vmem:[#allocation11 + $0x18] sm:$0xff]
        %v2280 = vld [vmem:[#allocation11 + $0x20] sm:$0xff]
        %v2281 = vld [vmem:[#allocation11 + $0x28] sm:$0xff]
        %v2282 = vld [vmem:[#allocation11 + $0x30] sm:$0xff]
        %v2283 = vld [vmem:[#allocation11 + $0x38] sm:$0xff]
        %v2284 = vld [vmem:[#allocation11 + $0x40] sm:$0xff]
        %v2285 = vld [vmem:[#allocation11 + $0x48] sm:$0xff]
        %v2286 = vld [vmem:[#allocation11 + $0x50] sm:$0xff]
        %v2287 = vld [vmem:[#allocation11 + $0x58] sm:$0xff]
        %v2288 = vld [vmem:[#allocation11 + $0x60] sm:$0xff]
        %v2289 = vld [vmem:[#allocation11 + $0x68] sm:$0xff]
        %v2290 = vld [vmem:[#allocation11 + $0x70] sm:$0xff]
        %v2291 = vld [vmem:[#allocation11 + $0x78] sm:$0xff]
        %v2292 = vld [vmem:[%s7] sm:$0x1]
        %v2294 = vlaneseq
        %v2295 = vshrl.u32 %v2294, 7
        %v2296 = vsub.s32 0, %v2295
        %v2297 = vrot.slane %v2292, %v2296
        %2299 = vmatprep.subr.mxu0 0.0
        %2300 = vmatpush1.msra.mxu0 %v2276
        %2301 = vmatprep.subr.mxu0 0.0
        %2302 = vmatpush1.msra.mxu0 %v2277
        %2303 = vmatprep.subr.mxu0 0.0
        %2304 = vmatpush1.msra.mxu0 %v2278
        %2305 = vmatprep.subr.mxu0 0.0
        %2306 = vmatpush1.msra.mxu0 %v2279
        %2307 = vmatprep.subr.mxu0 0.0
        %2308 = vmatpush1.msra.mxu0 %v2280
        %2309 = vmatprep.subr.mxu0 0.0
        %2310 = vmatpush1.msra.mxu0 %v2281
        %2311 = vmatprep.subr.mxu0 0.0
        %2312 = vmatpush1.msra.mxu0 %v2282
        %2313 = vmatprep.subr.mxu0 0.0
        %2314 = vmatpush1.msra.mxu0 %v2283
        %2315 = vmatprep.subr.mxu0 0.0
        %2316 = vmatpush1.msra.mxu0 %v2284
        %2317 = vmatprep.subr.mxu0 0.0
        %2318 = vmatpush1.msra.mxu0 %v2285
        %2319 = vmatprep.subr.mxu0 0.0
        %2320 = vmatpush1.msra.mxu0 %v2286
        %2321 = vmatprep.subr.mxu0 0.0
        %2322 = vmatpush1.msra.mxu0 %v2287
        %2323 = vmatprep.subr.mxu0 0.0
        %2324 = vmatpush1.msra.mxu0 %v2288
        %2325 = vmatprep.subr.mxu0 0.0
        %2326 = vmatpush1.msra.mxu0 %v2289
        %2327 = vmatprep.subr.mxu0 0.0
        %2328 = vmatpush1.msra.mxu0 %v2290
        %2329 = vmatprep.subr.mxu0 0.0
        %2330 = vmatpush1.msra.mxu0 %v2291
        %2331 = vmatprep.subr.mxu0 0.0
        %2332 = vmatpush1.msra.mxu0 0.0
        %2333 = vmatprep.subr.mxu0 0.0
        %2334 = vmatpush1.msra.mxu0 0.0
        %2335 = vmatprep.subr.mxu0 0.0
        %2336 = vmatpush1.msra.mxu0 0.0
        %2337 = vmatprep.subr.mxu0 0.0
        %2338 = vmatpush1.msra.mxu0 0.0
        %2339 = vmatprep.subr.mxu0 0.0
        %2340 = vmatpush1.msra.mxu0 0.0
        %2341 = vmatprep.subr.mxu0 0.0
        %2342 = vmatpush1.msra.mxu0 0.0
        %2343 = vmatprep.subr.mxu0 0.0
        %2344 = vmatpush1.msra.mxu0 0.0
        %2345 = vmatprep.subr.mxu0 0.0
        %2346 = vmatpush1.msra.mxu0 0.0
        %2347 = vmatprep.subr.mxu0 0.0
        %2348 = vmatpush1.msra.mxu0 0.0
        %2349 = vmatprep.subr.mxu0 0.0
        %2350 = vmatpush1.msra.mxu0 0.0
        %2351 = vmatprep.subr.mxu0 0.0
        %2352 = vmatpush1.msra.mxu0 0.0
        %2353 = vmatprep.subr.mxu0 0.0
        %2354 = vmatpush1.msra.mxu0 0.0
        %2355 = vmatprep.subr.mxu0 0.0
        %2356 = vmatpush1.msra.mxu0 0.0
        %2357 = vmatprep.subr.mxu0 0.0
        %2358 = vmatpush1.msra.mxu0 0.0
        %2359 = vmatprep.subr.mxu0 0.0
        %2360 = vmatpush1.msra.mxu0 0.0
        %2361 = vmatprep.subr.mxu0 0.0
        %2362 = vmatpush1.msra.mxu0 0.0
        %2363 = vmatprep.mubr.f32.mxu0 0.0
        %2364 = vmatmul.mubr.f32.gmra.mrb[0].mxu0 %v2274
        %v2365 = vpop.f32.mrb[0].mxu0
        %v2366 = vadd.f32 %v2297, %v2365
        %v2367 = vpop.f32.mrb[0].mxu0
        %2368 = vmatprep.mubr.f32.mxu0 0.0
        %2369 = vmatmul.mubr.f32.gmra.mrb[0].mxu0 %v2275
        %v2370 = vpop.f32.mrb[0].mxu0
        %v2371 = vadd.f32 %v2297, %v2370
        %v2372 = vpop.f32.mrb[0].mxu0
        %2373 = vdwg.mxu0
        %v2374 = vadd.f32 %v2366, %v481
        %v2375 = vadd.f32 %v2371, %v482
        %2376 = vadd.xlane.f32.xlu0 %v2374
        %v2377 = vpop.xlane.xlu0 %2376
        %2378 = vadd.xlane.f32.xlu0 %v2375
        %v2379 = vpop.xlane.xlu0 %2378
        %v2380 = vrcp.pop 128.0
        %v2381 = vmul.f32 %v2377, %v2380
        %v2382 = vmul.f32 %v2379, %v2380
        %v2383 = vsub.f32 %v2374, %v2381
        %v2384 = vsub.f32 %v2375, %v2382
        %v2385 = vmul.f32 %v2383, %v2383
        %v2386 = vmul.f32 %v2384, %v2384
        %2387 = vadd.xlane.f32.xlu0 %v2385
        %v2388 = vpop.xlane.xlu0 %2387
        %2389 = vadd.xlane.f32.xlu0 %v2386
        %v2390 = vpop.xlane.xlu0 %2389
        %v2391 = vmul.f32 %v2388, %v2380
        %v2392 = vmul.f32 %v2390, %v2380
        %v2393 = vadd.f32 %v2391, 1e-05
        %v2394 = vadd.f32 %v2392, 1e-05
        %v2395 = vrsqrt.pop %v2393
        %v2396 = vrsqrt.pop %v2394
        %v2397 = vmul.f32 %v2383, %v2395
        %v2398 = vmul.f32 %v2384, %v2396
        %v2399 = vld [vmem:[%s8] sm:$0x1]
        %v2401 = vlaneseq
        %v2402 = vshrl.u32 %v2401, 7
        %v2403 = vsub.s32 0, %v2402
        %v2404 = vrot.slane %v2399, %v2403
        %v2406 = vmul.f32 %v2397, %v2404
        %v2407 = vmul.f32 %v2398, %v2404
        %v2408 = vld [vmem:[%s9] sm:$0x1]
        %v2410 = vlaneseq
        %v2411 = vshrl.u32 %v2410, 7
        %v2412 = vsub.s32 0, %v2411
        %v2413 = vrot.slane %v2408, %v2412
        %v2415 = vadd.f32 %v2406, %v2413
        %v2416 = vadd.f32 %v2407, %v2413
        %2417 = vst [vmem:[%s478] sm:$0xff] %v2415
        %2418 = vst [vmem:[%s478 + $0x8] sm:$0xff] %v2416
        %s2419 = sand.u32 %s275, 1
        %s2420 = scalar_lea.sflag [#allocation5], %s2419
        %s2421 = sand.u32 %s275, 1
        %s2422 = smul.addr %s2421, 16
        %s2423 = scalar_lea.vmem [#allocation12], %s2422
        // Predicated region
        $region85: #{tpu_custom_call.1} parent=59 // pred_check
          %p2424 = pneg %p285
        $region86: #{tpu_custom_call.1} parent=59 // pred_check_branch
          %2426 = sbr.rel (%p2424) target = $region88
        $region87: #{tpu_custom_call.1} parent=59 // pred_region
          %s2427 = smul.u32 2, %s36
          %s2429 = ssub.s32 256, 256
          %2430 = vsyncadd %s2420, %s2429
          %s2431 = smul.addr %s35, 2
          %s2432 = sadd.s32 %s2427, %s2431
          %s2433 = smul.addr %s2432, 128
          %s2434 = scalar_lea.hbm %s10, %s2433
          %s2435 = sshll.u32 %s2423, 4
          %s2436 = int_to_ptr.vmem [resolvable:$true] %s2435
          %2441 = dma.vmem_to_hbm [thread:$0]  %s2436, 256, %s2434, %s2420, 128, 128, 8
        $region88: #{tpu_custom_call.1} parent=59 // pred_fallthru
          _
      $region60: #{tpu_custom_call.1} parent=5 // pred_fallthru
        _
      %p2442 = scmp.le.s32.totalorder 2, %s26
      // Predicated region
      $region89: #{tpu_custom_call.1} parent=5 // pred_check
        %p2443 = pneg %p2442
      $region90: #{tpu_custom_call.1} parent=5 // pred_check_branch
        %2445 = sbr.rel (%p2443) target = $region92
      $region91: #{tpu_custom_call.1} parent=5 // pred_region
        %s2446 = ssub.s32 %s26, 2
        // Predicated region
        $region93: #{tpu_custom_call.1} parent=91 // pred_check
          %p2447 = pneg %p291
        $region94: #{tpu_custom_call.1} parent=91 // pred_check_branch
          %2449 = sbr.rel (%p2447) target = $region96
        $region95: #{tpu_custom_call.1} parent=91 // pred_region
          %s2450 = sand.u32 %s276, 1
          %s2451 = scalar_lea.sflag [#allocation5], %s2450
          %s2452 = sand.u32 %s276, 1
          %s2453 = smul.addr %s2452, 16
          %s2454 = scalar_lea.vmem [#allocation12], %s2453
          %2455 = dma.done %s2451, 256
        $region96: #{tpu_custom_call.1} parent=91 // pred_fallthru
          _
      $region92: #{tpu_custom_call.1} parent=5 // pred_fallthru
        _
    $region6: #{tpu_custom_call.1} parent=1 // loop_footer
      %s30 = sadd.s32 1, %s26
    $region7: #{tpu_custom_call.1} parent=1 // loop_footer_branch
      %25 = sbr.rel target = $region3
    $region8: #{tpu_custom_call.1} parent=1 // loop_exit
      _
    %2456 = vsyncpa [#allocation4], 1
    %s2457 = scalar_lea.sflag [#allocation4], 1
    %2458 = vsyncpa %s2457, 1
    %2459 = vsyncpa [#allocation7], 1
    %s2460 = scalar_lea.sflag [#allocation7], 1
    %2461 = vsyncpa %s2460, 1
    %2462 = vsyncpa [#allocation10], 1
    %2463 = vsyncpa [#allocation5], 1
    %s2464 = scalar_lea.sflag [#allocation5], 1
    %2465 = vsyncpa %s2464, 1

// kernel: tpu_custom_call.1
$region0: #{tpu_custom_call.1}
  #allocation0 [shape = 'u32[]', space=smem, size = 0x4, offset = 0x4, fixed_abs, tag = 'smem constant byte address 0x4 - core index']
  #allocation1 [shape = 'u32[144,128]{1,0:T(1,128)}', space=vmem, size = 0x12000, scoped, tag = 'internal scratch']
  #allocation2 [shape = 'f32[16,256]{1,0:T(8,128)}', space=vmem, size = 0x4000, scoped, tag = 'scratch operand']
  %s0 = inlined_call_operand.hbm [shape: f32[2,16,128], index: 0, kind: input, shape index: {}]
  %s1 = inlined_call_operand.hbm [shape: f32[2,16,128], index: 1, kind: input, shape index: {}]
  %s2 = inlined_call_operand.hbm [shape: f32[128,128], index: 2, kind: input, shape index: {}]
  %s3 = inlined_call_operand.vmem [shape: f32[1,128], index: 3, kind: input, shape index: {}]
  %s4 = inlined_call_operand.hbm [shape: f32[128,256], index: 4, kind: input, shape index: {}]
  %s5 = inlined_call_operand.vmem [shape: f32[1,256], index: 5, kind: input, shape index: {}]
  %s6 = inlined_call_operand.hbm [shape: f32[128,128], index: 6, kind: input, shape index: {}]
  %s7 = inlined_call_operand.vmem [shape: f32[1,128], index: 7, kind: input, shape index: {}]
  %s8 = inlined_call_operand.vmem [shape: f32[1,128], index: 8, kind: input, shape index: {}]
  %s9 = inlined_call_operand.vmem [shape: f32[1,128], index: 9, kind: input, shape index: {}]
  %s10 = inlined_call_operand.hbm [shape: f32[2,16,128], index: 10, kind: output, shape index: {}]
  %s11 = sld [smem:[#allocation0]]
  $region97: #{tpu_custom_call.1} parent=0
    _
  %s13 = ssub.s32 1, %s11
  %s14 = scalar_select 0, %s13, %s11
  $region1: #{tpu_custom_call.1} parent=0
    #allocation3 [shape = 'u8[16384]{0}', space=vmem, size = 0x4000, scoped, tag = 'input window, operand 0']
    #allocation4 [shape = 's32[2]{0}', space=sflag, size = 0x8, scoped, tag = 'scoped memory for tpu_custom_call.1']
    #allocation5 [shape = 's32[2]{0}', space=sflag, size = 0x8, scoped, tag = 'scoped memory for tpu_custom_call.1']
    #allocation6 [shape = 'u8[16384]{0}', space=vmem, size = 0x4000, scoped, tag = 'input window, operand 1']
    #allocation7 [shape = 's32[2]{0}', space=sflag, size = 0x8, scoped, tag = 'scoped memory for tpu_custom_call.1']
    #allocation8 [shape = 'u8[65536]{0}', space=vmem, size = 0x10000, scoped, tag = 'input window, operand 2, single buffered']
    #allocation9 [shape = 'u8[131072]{0}', space=vmem, size = 0x20000, scoped, tag = 'input window, operand 4, single buffered']
    #allocation10 [shape = 's32[1]{0}', space=sflag, size = 0x4, scoped, tag = 'scoped memory for tpu_custom_call.1']
    #allocation11 [shape = 'u8[65536]{0}', space=vmem, size = 0x10000, scoped, tag = 'input window, operand 6, single buffered']
    #allocation12 [shape = 'u8[16384]{0}', space=vmem, size = 0x4000, scoped, tag = 'output window, operand 0']
    %15 = vsyncpa [#allocation4], 0
    %s16 = scalar_lea.sflag [#allocation4], 1
    %17 = vsyncpa %s16, 0
    %18 = vsyncpa [#allocation7], 0
    %s19 = scalar_lea.sflag [#allocation7], 1
    %20 = vsyncpa %s19, 0
    %21 = vsyncpa [#allocation10], 0
    %22 = vsyncpa [#allocation5], 0
    %s23 = scalar_lea.sflag [#allocation5], 1
    %24 = vsyncpa %s23, 0
    loop: start=0, step=1, limit=4
    $region2: #{tpu_custom_call.1} parent=1 // loop_pre_header
      _
    $region3: #{tpu_custom_call.1} parent=1 // loop_header
      %s26 = sphi 0, %s30
      %p27 = scmp.ge.s32.totalorder %s26, 4
      %s33 = sphi 0, %s45
      %s34 = sphi 0, %s41
      %s35 = sphi 0, %s33
      %s36 = sphi 0, %s34
      %s37 = sphi 0, %s35
      %s38 = sphi 0, %s36
      %s50 = sphi 0, %s52
      %s53 = sphi 0, %s50
      %s54 = sphi 0, %s53
      %s70 = sphi 0, %s54
      %s76 = sphi 0, %s78
      %s79 = sphi 0, %s76
      %s80 = sphi 0, %s79
      %s96 = sphi 0, %s80
      %s100 = sphi 0, %s100
      %s102 = sphi 0, %s100
      %s103 = sphi 0, %s102
      %s117 = sphi 0, %s103
      %s121 = sphi 0, %s121
      %s123 = sphi 0, %s121
      %s124 = sphi 0, %s123
      %s138 = sphi 0, %s124
      %s142 = sphi 0, %s142
      %s144 = sphi 0, %s142
      %s145 = sphi 0, %s144
      %s159 = sphi 0, %s145
      %s163 = sphi 0, %s163
      %s165 = sphi 0, %s163
      %s166 = sphi 0, %s165
      %s180 = sphi 0, %s166
      %s184 = sphi 0, %s184
      %s186 = sphi 0, %s184
      %s187 = sphi 0, %s186
      %s201 = sphi 0, %s187
      %s205 = sphi 0, %s205
      %s207 = sphi 0, %s205
      %s208 = sphi 0, %s207
      %s222 = sphi 0, %s208
      %s226 = sphi 0, %s226
      %s228 = sphi 0, %s226
      %s229 = sphi 0, %s228
      %s243 = sphi 0, %s229
      %s247 = sphi 0, %s247
      %s249 = sphi 0, %s247
      %s250 = sphi 0, %s249
      %s264 = sphi 0, %s250
      %s272 = sphi 0, %s274
      %s275 = sphi 0, %s272
      %s276 = sphi 0, %s275
      %s292 = sphi 0, %s276
    $region4: #{tpu_custom_call.1} parent=1 // loop_header_branch
      %29 = sbr.rel (%p27) target = $region8
    $region5: #{tpu_custom_call.1} parent=1 // loop_body
      %s31 = ssub.s32 %s26, 1
      %s32 = ssub.s32 %s26, 2
      %s39 = sadd.s32 1, %s34
      %p40 = scmp.ge.s32.totalorder %s39, 1
      %s41 = scalar_select %p40, 0, %s39
      %s42 = sadd.s32 1, %s33
      %s43 = scalar_select %p40, %s42, %s33
      %p44 = scmp.ge.s32.totalorder %s43, 2
      %s45 = scalar_select %p44, 0, %s43
      %s46 = ssub.s32 %s33, %s45
      %s47 = ssub.s32 %s34, %s41
      %s48 = sor.u32 %s46, %s47
      %p49 = scmp.eq.s32.totalorder %s48, 0
      %s51 = sadd.s32 %s50, 1
      %s52 = scalar_select %p49, %s50, %s51
      %p55 = pneg %p49
      %p56 = scmp.eq.s32.totalorder %s26, 1
      %p57 = por %p55, %p56
      %p58 = scmp.ne.s32.totalorder %s50, %s53
      %p59 = scmp.eq.s32.totalorder %s26, 0
      %p60 = por %p58, %p59
      %p61 = scmp.ne.s32.totalorder %s50, %s53
      %p62 = scmp.eq.s32.totalorder %s31, 1
      %p63 = por %p61, %p62
      %p64 = scmp.ne.s32.totalorder %s53, %s54
      %p65 = scmp.eq.s32.totalorder %s31, 0
      %p66 = por %p64, %p65
      %p67 = scmp.ne.s32.totalorder %s53, %s54
      %p68 = scmp.eq.s32.totalorder %s32, 1
      %p69 = por %p67, %p68
      %p71 = scmp.ne.s32.totalorder %s54, %s70
      %p72 = scmp.eq.s32.totalorder %s32, 0
      %p73 = por %p71, %p72
      %s74 = ssub.s32 %s33, %s45
      %p75 = scmp.eq.s32.totalorder %s74, 0
      %s77 = sadd.s32 %s76, 1
      %s78 = scalar_select %p75, %s76, %s77
      %p81 = pneg %p75
      %p82 = scmp.eq.s32.totalorder %s26, 1
      %p83 = por %p81, %p82
      %p84 = scmp.ne.s32.totalorder %s76, %s79
      %p85 = scmp.eq.s32.totalorder %s26, 0
      %p86 = por %p84, %p85
      %p87 = scmp.ne.s32.totalorder %s76, %s79
      %p88 = scmp.eq.s32.totalorder %s31, 1
      %p89 = por %p87, %p88
      %p90 = scmp.ne.s32.totalorder %s79, %s80
      %p91 = scmp.eq.s32.totalorder %s31, 0
      %p92 = por %p90, %p91
      %p93 = scmp.ne.s32.totalorder %s79, %s80
      %p94 = scmp.eq.s32.totalorder %s32, 1
      %p95 = por %p93, %p94
      %p97 = scmp.ne.s32.totalorder %s80, %s96
      %p98 = scmp.eq.s32.totalorder %s32, 0
      %p99 = por %p97, %p98
      %s101 = sadd.s32 %s100, 1
      %p104 = scmp.eq.s32.totalorder %s26, 1
      %p105 = scmp.ne.s32.totalorder %s100, %s102
      %p106 = scmp.eq.s32.totalorder %s26, 0
      %p107 = por %p105, %p106
      %p108 = scmp.ne.s32.totalorder %s100, %s102
      %p109 = scmp.eq.s32.totalorder %s31, 1
      %p110 = por %p108, %p109
      %p111 = scmp.ne.s32.totalorder %s102, %s103
      %p112 = scmp.eq.s32.totalorder %s31, 0
      %p113 = por %p111, %p112
      %p114 = scmp.ne.s32.totalorder %s102, %s103
      %p115 = scmp.eq.s32.totalorder %s32, 1
      %p116 = por %p114, %p115
      %p118 = scmp.ne.s32.totalorder %s103, %s117
      %p119 = scmp.eq.s32.totalorder %s32, 0
      %p120 = por %p118, %p119
      %s122 = sadd.s32 %s121, 1
      %p125 = scmp.eq.s32.totalorder %s26, 1
      %p126 = scmp.ne.s32.totalorder %s121, %s123
      %p127 = scmp.eq.s32.totalorder %s26, 0
      %p128 = por %p126, %p127
      %p129 = scmp.ne.s32.totalorder %s121, %s123
      %p130 = scmp.eq.s32.totalorder %s31, 1
      %p131 = por %p129, %p130
      %p132 = scmp.ne.s32.totalorder %s123, %s124
      %p133 = scmp.eq.s32.totalorder %s31, 0
      %p134 = por %p132, %p133
      %p135 = scmp.ne.s32.totalorder %s123, %s124
      %p136 = scmp.eq.s32.totalorder %s32, 1
      %p137 = por %p135, %p136
      %p139 = scmp.ne.s32.totalorder %s124, %s138
      %p140 = scmp.eq.s32.totalorder %s32, 0
      %p141 = por %p139, %p140
      %s143 = sadd.s32 %s142, 1
      %p146 = scmp.eq.s32.totalorder %s26, 1
      %p147 = scmp.ne.s32.totalorder %s142, %s144
      %p148 = scmp.eq.s32.totalorder %s26, 0
      %p149 = por %p147, %p148
      %p150 = scmp.ne.s32.totalorder %s142, %s144
      %p151 = scmp.eq.s32.totalorder %s31, 1
      %p152 = por %p150, %p151
      %p153 = scmp.ne.s32.totalorder %s144, %s145
      %p154 = scmp.eq.s32.totalorder %s31, 0
      %p155 = por %p153, %p154
      %p156 = scmp.ne.s32.totalorder %s144, %s145
      %p157 = scmp.eq.s32.totalorder %s32, 1
      %p158 = por %p156, %p157
      %p160 = scmp.ne.s32.totalorder %s145, %s159
      %p161 = scmp.eq.s32.totalorder %s32, 0
      %p162 = por %p160, %p161
      %s164 = sadd.s32 %s163, 1
      %p167 = scmp.eq.s32.totalorder %s26, 1
      %p168 = scmp.ne.s32.totalorder %s163, %s165
      %p169 = scmp.eq.s32.totalorder %s26, 0
      %p170 = por %p168, %p169
      %p171 = scmp.ne.s32.totalorder %s163, %s165
      %p172 = scmp.eq.s32.totalorder %s31, 1
      %p173 = por %p171, %p172
      %p174 = scmp.ne.s32.totalorder %s165, %s166
      %p175 = scmp.eq.s32.totalorder %s31, 0
      %p176 = por %p174, %p175
      %p177 = scmp.ne.s32.totalorder %s165, %s166
      %p178 = scmp.eq.s32.totalorder %s32, 1
      %p179 = por %p177, %p178
      %p181 = scmp.ne.s32.totalorder %s166, %s180
      %p182 = scmp.eq.s32.totalorder %s32, 0
      %p183 = por %p181, %p182
      %s185 = sadd.s32 %s184, 1
      %p188 = scmp.eq.s32.totalorder %s26, 1
      %p189 = scmp.ne.s32.totalorder %s184, %s186
      %p190 = scmp.eq.s32.totalorder %s26, 0
      %p191 = por %p189, %p190
      %p192 = scmp.ne.s32.totalorder %s184, %s186
      %p193 = scmp.eq.s32.totalorder %s31, 1
      %p194 = por %p192, %p193
      %p195 = scmp.ne.s32.totalorder %s186, %s187
      %p196 = scmp.eq.s32.totalorder %s31, 0
      %p197 = por %p195, %p196
      %p198 = scmp.ne.s32.totalorder %s186, %s187
      %p199 = scmp.eq.s32.totalorder %s32, 1
      %p200 = por %p198, %p199
      %p202 = scmp.ne.s32.totalorder %s187, %s201
      %p203 = scmp.eq.s32.totalorder %s32, 0
      %p204 = por %p202, %p203
      %s206 = sadd.s32 %s205, 1
      %p209 = scmp.eq.s32.totalorder %s26, 1
      %p210 = scmp.ne.s32.totalorder %s205, %s207
      %p211 = scmp.eq.s32.totalorder %s26, 0
      %p212 = por %p210, %p211
      %p213 = scmp.ne.s32.totalorder %s205, %s207
      %p214 = scmp.eq.s32.totalorder %s31, 1
      %p215 = por %p213, %p214
      %p216 = scmp.ne.s32.totalorder %s207, %s208
      %p217 = scmp.eq.s32.totalorder %s31, 0
      %p218 = por %p216, %p217
      %p219 = scmp.ne.s32.totalorder %s207, %s208
      %p220 = scmp.eq.s32.totalorder %s32, 1
      %p221 = por %p219, %p220
      %p223 = scmp.ne.s32.totalorder %s208, %s222
      %p224 = scmp.eq.s32.totalorder %s32, 0
      %p225 = por %p223, %p224
      %s227 = sadd.s32 %s226, 1
      %p230 = scmp.eq.s32.totalorder %s26, 1
      %p231 = scmp.ne.s32.totalorder %s226, %s228
      %p232 = scmp.eq.s32.totalorder %s26, 0
      %p233 = por %p231, %p232
      %p234 = scmp.ne.s32.totalorder %s226, %s228
      %p235 = scmp.eq.s32.totalorder %s31, 1
      %p236 = por %p234, %p235
      %p237 = scmp.ne.s32.totalorder %s228, %s229
      %p238 = scmp.eq.s32.totalorder %s31, 0
      %p239 = por %p237, %p238
      %p240 = scmp.ne.s32.totalorder %s228, %s229
      %p241 = scmp.eq.s32.totalorder %s32, 1
      %p242 = por %p240, %p241
      %p244 = scmp.ne.s32.totalorder %s229, %s243
      %p245 = scmp.eq.s32.totalorder %s32, 0
      %p246 = por %p244, %p245
      %s248 = sadd.s32 %s247, 1
      %p251 = scmp.eq.s32.totalorder %s26, 1
      %p252 = scmp.ne.s32.totalorder %s247, %s249
      %p253 = scmp.eq.s32.totalorder %s26, 0
      %p254 = por %p252, %p253
      %p255 = scmp.ne.s32.totalorder %s247, %s249
      %p256 = scmp.eq.s32.totalorder %s31, 1
      %p257 = por %p255, %p256
      %p258 = scmp.ne.s32.totalorder %s249, %s250
      %p259 = scmp.eq.s32.totalorder %s31, 0
      %p260 = por %p258, %p259
      %p261 = scmp.ne.s32.totalorder %s249, %s250
      %p262 = scmp.eq.s32.totalorder %s32, 1
      %p263 = por %p261, %p262
      %p265 = scmp.ne.s32.totalorder %s250, %s264
      %p266 = scmp.eq.s32.totalorder %s32, 0
      %p267 = por %p265, %p266
      %s268 = ssub.s32 %s33, %s45
      %s269 = ssub.s32 %s34, %s41
      %s270 = sor.u32 %s268, %s269
      %p271 = scmp.eq.s32.totalorder %s270, 0
      %s273 = sadd.s32 %s272, 1
      %s274 = scalar_select %p271, %s272, %s273
      %p277 = pneg %p271
      %p278 = scmp.eq.s32.totalorder %s26, 1
      %p279 = por %p277, %p278
      %p280 = scmp.ne.s32.totalorder %s272, %s275
      %p281 = scmp.eq.s32.totalorder %s26, 0
      %p282 = por %p280, %p281
      %p283 = scmp.ne.s32.totalorder %s272, %s275
      %p284 = scmp.eq.s32.totalorder %s31, 1
      %p285 = por %p283, %p284
      %p286 = scmp.ne.s32.totalorder %s275, %s276
      %p287 = scmp.eq.s32.totalorder %s31, 0
      %p288 = por %p286, %p287
      %p289 = scmp.ne.s32.totalorder %s275, %s276
      %p290 = scmp.eq.s32.totalorder %s32, 1
      %p291 = por %p289, %p290
      %p293 = scmp.ne.s32.totalorder %s276, %s292
      %p294 = scmp.eq.s32.totalorder %s32, 0
      %p295 = por %p293, %p294
      %p296 = scmp.le.s32.totalorder 1, %s26
      %p297 = scmp.lt.s32.totalorder %s26, 3
      %p298 = pnand %p296, %p297
      %p299 = pneg %p298
      // Predicated region
      $region9: #{tpu_custom_call.1} parent=5 // pred_check
        _
      $region10: #{tpu_custom_call.1} parent=5 // pred_check_branch
        %301 = sbr.rel (%p298) target = $region12
      $region11: #{tpu_custom_call.1} parent=5 // pred_region
        %s302 = ssub.s32 %s26, 1
        // Predicated region
        $region13: #{tpu_custom_call.1} parent=11 // pred_check
          %p303 = pneg %p113
        $region14: #{tpu_custom_call.1} parent=11 // pred_check_branch
          %305 = sbr.rel (%p303) target = $region16
        $region15: #{tpu_custom_call.1} parent=11 // pred_region
          %s307 = ssub.s32 2048, 2048
          %308 = vsyncadd [#allocation7], %s307
          %s309 = sshll.u32 [#allocation8], 4
          %s310 = int_to_ptr.vmem [resolvable:$true] %s309
          %315 = dma.hbm_to_vmem [thread:$0]  %s2, 2048, %s310, [#allocation7], 128, 128, 8
        $region16: #{tpu_custom_call.1} parent=11 // pred_fallthru
          _
        // Predicated region
        $region17: #{tpu_custom_call.1} parent=11 // pred_check
          %p316 = pneg %p134
        $region18: #{tpu_custom_call.1} parent=11 // pred_check_branch
          %318 = sbr.rel (%p316) target = $region20
        $region19: #{tpu_custom_call.1} parent=11 // pred_region
          _
        $region20: #{tpu_custom_call.1} parent=11 // pred_fallthru
          _
        // Predicated region
        $region21: #{tpu_custom_call.1} parent=11 // pred_check
          %p319 = pneg %p155
        $region22: #{tpu_custom_call.1} parent=11 // pred_check_branch
          %321 = sbr.rel (%p319) target = $region24
        $region23: #{tpu_custom_call.1} parent=11 // pred_region
          %s323 = ssub.s32 4096, 4096
          %324 = vsyncadd [#allocation10], %s323
          %s325 = sshll.u32 [#allocation9], 4
          %s326 = int_to_ptr.vmem [resolvable:$true] %s325
          %331 = dma.hbm_to_vmem [thread:$0]  %s4, 4096, %s326, [#allocation10], 256, 256, 16
        $region24: #{tpu_custom_call.1} parent=11 // pred_fallthru
          _
        // Predicated region
        $region25: #{tpu_custom_call.1} parent=11 // pred_check
          %p332 = pneg %p176
        $region26: #{tpu_custom_call.1} parent=11 // pred_check_branch
          %334 = sbr.rel (%p332) target = $region28
        $region27: #{tpu_custom_call.1} parent=11 // pred_region
          _
        $region28: #{tpu_custom_call.1} parent=11 // pred_fallthru
          _
        // Predicated region
        $region29: #{tpu_custom_call.1} parent=11 // pred_check
          %p335 = pneg %p197
        $region30: #{tpu_custom_call.1} parent=11 // pred_check_branch
          %337 = sbr.rel (%p335) target = $region32
        $region31: #{tpu_custom_call.1} parent=11 // pred_region
          %s339 = ssub.s32 2048, 2048
          %340 = vsyncadd [#allocation10], %s339
          %s341 = sshll.u32 [#allocation11], 4
          %s342 = int_to_ptr.vmem [resolvable:$true] %s341
          %347 = dma.hbm_to_vmem [thread:$0]  %s6, 2048, %s342, [#allocation10], 128, 128, 8
        $region32: #{tpu_custom_call.1} parent=11 // pred_fallthru
          _
        // Predicated region
        $region33: #{tpu_custom_call.1} parent=11 // pred_check
          %p348 = pneg %p218
        $region34: #{tpu_custom_call.1} parent=11 // pred_check_branch
          %350 = sbr.rel (%p348) target = $region36
        $region35: #{tpu_custom_call.1} parent=11 // pred_region
          _
        $region36: #{tpu_custom_call.1} parent=11 // pred_fallthru
          _
        // Predicated region
        $region37: #{tpu_custom_call.1} parent=11 // pred_check
          %p351 = pneg %p239
        $region38: #{tpu_custom_call.1} parent=11 // pred_check_branch
          %353 = sbr.rel (%p351) target = $region40
        $region39: #{tpu_custom_call.1} parent=11 // pred_region
          _
        $region40: #{tpu_custom_call.1} parent=11 // pred_fallthru
          _
        // Predicated region
        $region41: #{tpu_custom_call.1} parent=11 // pred_check
          %p354 = pneg %p260
        $region42: #{tpu_custom_call.1} parent=11 // pred_check_branch
          %356 = sbr.rel (%p354) target = $region44
        $region43: #{tpu_custom_call.1} parent=11 // pred_region
          _
        $region44: #{tpu_custom_call.1} parent=11 // pred_fallthru
          _
      $region12: #{tpu_custom_call.1} parent=5 // pred_fallthru
        _
      %p357 = scmp.lt.s32.totalorder %s26, 2
      // Predicated region
      $region45: #{tpu_custom_call.1} parent=5 // pred_check
        %p358 = pneg %p357
      $region46: #{tpu_custom_call.1} parent=5 // pred_check_branch
        %360 = sbr.rel (%p358) target = $region48
      $region47: #{tpu_custom_call.1} parent=5 // pred_region
        // Predicated region
        $region49: #{tpu_custom_call.1} parent=47 // pred_check
          %p361 = pneg %p60
        $region50: #{tpu_custom_call.1} parent=47 // pred_check_branch
          %363 = sbr.rel (%p361) target = $region52
        $region51: #{tpu_custom_call.1} parent=47 // pred_region
          %s364 = sand.u32 %s50, 1
          %s365 = scalar_lea.sflag [#allocation4], %s364
          %s366 = sand.u32 %s50, 1
          %s367 = smul.addr %s366, 16
          %s368 = scalar_lea.vmem [#allocation3], %s367
          %s369 = smul.u32 2, %s34
          %s371 = ssub.s32 256, 256
          %372 = vsyncadd %s365, %s371
          %s373 = smul.addr %s33, 2
          %s374 = sadd.s32 %s369, %s373
          %s375 = smul.addr %s374, 128
          %s376 = scalar_lea.hbm %s0, %s375
          %s377 = sshll.u32 %s368, 4
          %s378 = int_to_ptr.vmem [resolvable:$true] %s377
          %383 = dma.hbm_to_vmem [thread:$0]  %s376, 256, %s378, %s365, 128, 128, 8
        $region52: #{tpu_custom_call.1} parent=47 // pred_fallthru
          _
        // Predicated region
        $region53: #{tpu_custom_call.1} parent=47 // pred_check
          %p384 = pneg %p86
        $region54: #{tpu_custom_call.1} parent=47 // pred_check_branch
          %386 = sbr.rel (%p384) target = $region56
        $region55: #{tpu_custom_call.1} parent=47 // pred_region
          %s387 = sand.u32 %s26, 1
          %s388 = scalar_lea.sflag [#allocation7], %s387
          %s389 = sand.u32 %s76, 1
          %s390 = smul.addr %s389, 16
          %s391 = scalar_lea.vmem [#allocation6], %s390
          %s393 = ssub.s32 256, 256
          %394 = vsyncadd %s388, %s393
          %s395 = smul.addr %s33, 2
          %s396 = smul.addr %s395, 128
          %s397 = scalar_lea.hbm %s1, %s396
          %s398 = sshll.u32 %s391, 4
          %s399 = int_to_ptr.vmem [resolvable:$true] %s398
          %404 = dma.hbm_to_vmem [thread:$0]  %s397, 256, %s399, %s388, 128, 128, 8
        $region56: #{tpu_custom_call.1} parent=47 // pred_fallthru
          _
      $region48: #{tpu_custom_call.1} parent=5 // pred_fallthru
        _
      %p405 = scmp.le.s32.totalorder 1, %s26
      %p406 = scmp.lt.s32.totalorder %s26, 3
      %p407 = pnand %p405, %p406
      %p408 = pneg %p407
      // Predicated region
      $region57: #{tpu_custom_call.1} parent=5 // pred_check
        _
      $region58: #{tpu_custom_call.1} parent=5 // pred_check_branch
        %410 = sbr.rel (%p407) target = $region60
      $region59: #{tpu_custom_call.1} parent=5 // pred_region
        %s411 = ssub.s32 %s26, 1
        %s412 = sand.u32 %s53, 1
        %s413 = scalar_lea.sflag [#allocation4], %s412
        %s414 = sand.u32 %s53, 1
        %s415 = smul.addr %s414, 16
        %s416 = scalar_lea.vmem [#allocation3], %s415
        // Predicated region
        $region61: #{tpu_custom_call.1} parent=59 // pred_check
          %p417 = pneg %p66
        $region62: #{tpu_custom_call.1} parent=59 // pred_check_branch
          %419 = sbr.rel (%p417) target = $region64
        $region63: #{tpu_custom_call.1} parent=59 // pred_region
          %420 = dma.done %s413, 256
        $region64: #{tpu_custom_call.1} parent=59 // pred_fallthru
          _
        %s421 = sand.u32 %s31, 1
        %s422 = scalar_lea.sflag [#allocation7], %s421
        %s423 = sand.u32 %s79, 1
        %s424 = smul.addr %s423, 16
        %s425 = scalar_lea.vmem [#allocation6], %s424
        // Predicated region
        $region65: #{tpu_custom_call.1} parent=59 // pred_check
          %p426 = pneg %p92
        $region66: #{tpu_custom_call.1} parent=59 // pred_check_branch
          %428 = sbr.rel (%p426) target = $region68
        $region67: #{tpu_custom_call.1} parent=59 // pred_region
          %429 = dma.done %s422, 256
        $region68: #{tpu_custom_call.1} parent=59 // pred_fallthru
          _
        // Predicated region
        $region69: #{tpu_custom_call.1} parent=59 // pred_check
          %p430 = pneg %p113
        $region70: #{tpu_custom_call.1} parent=59 // pred_check_branch
          %432 = sbr.rel (%p430) target = $region72
        $region71: #{tpu_custom_call.1} parent=59 // pred_region
          %433 = dma.done [#allocation7], 2048
        $region72: #{tpu_custom_call.1} parent=59 // pred_fallthru
          _
        // Predicated region
        $region73: #{tpu_custom_call.1} parent=59 // pred_check
          %p434 = pneg %p155
        $region74: #{tpu_custom_call.1} parent=59 // pred_check_branch
          %436 = sbr.rel (%p434) target = $region76
        $region75: #{tpu_custom_call.1} parent=59 // pred_region
          %437 = dma.done [#allocation10], 4096
        $region76: #{tpu_custom_call.1} parent=59 // pred_fallthru
          _
        // Predicated region
        $region77: #{tpu_custom_call.1} parent=59 // pred_check
          %p438 = pneg %p197
        $region78: #{tpu_custom_call.1} parent=59 // pred_check_branch
          %440 = sbr.rel (%p438) target = $region80
        $region79: #{tpu_custom_call.1} parent=59 // pred_region
          %441 = dma.done [#allocation10], 2048
        $region80: #{tpu_custom_call.1} parent=59 // pred_fallthru
          _
        %s442 = sand.u32 %s53, 1
        %s443 = scalar_lea.sflag [#allocation4], %s442
        %s444 = sand.u32 %s53, 1
        %s445 = smul.addr %s444, 16
        %s446 = scalar_lea.vmem [#allocation3], %s445
        %p447 = pneg %p66
        %p448 = pneg %p63
        %s449 = sand.u32 %s31, 1
        %s450 = scalar_lea.sflag [#allocation7], %s449
        %s451 = sand.u32 %s79, 1
        %s452 = smul.addr %s451, 16
        %s453 = scalar_lea.vmem [#allocation6], %s452
        %p454 = pneg %p92
        %p455 = pneg %p89
        %p456 = pneg %p113
        %p457 = pneg %p110
        %p458 = pneg %p134
        %p459 = pneg %p131
        %p460 = pneg %p155
        %p461 = pneg %p152
        %p462 = pneg %p176
        %p463 = pneg %p173
        %p464 = pneg %p197
        %p465 = pneg %p194
        %p466 = pneg %p218
        %p467 = pneg %p215
        %p468 = pneg %p239
        %p469 = pneg %p236
        %p470 = pneg %p260
        %p471 = pneg %p257
        %p472 = pneg %p288
        %p473 = pneg %p285
        %s474 = sand.u32 %s275, 1
        %s475 = scalar_lea.sflag [#allocation5], %s474
        %s476 = sand.u32 %s275, 1
        %s477 = smul.addr %s476, 16
        %s478 = scalar_lea.vmem [#allocation12], %s477
        %s479 = smul.u32 2, %s36
        %s480 = smul.u32 2, %s36
        %v481 = vld [vmem:[%s416] sm:$0xff]
        %v482 = vld [vmem:[%s416 + $0x8] sm:$0xff]
        %p483 = scmp.eq.s32.totalorder %s36, 0
        // Predicated region
        $region81: #{tpu_custom_call.1} parent=59 // pred_check
          %p484 = pneg %p483
        $region82: #{tpu_custom_call.1} parent=59 // pred_check_branch
          %486 = sbr.rel (%p484) target = $region84
        $region83: #{tpu_custom_call.1} parent=59 // pred_region
          %v487 = vld [vmem:[%s425] sm:$0xff]
          %v488 = vld [vmem:[%s425 + $0x8] sm:$0xff]
          %v489 = vld [vmem:[#allocation9] sm:$0xff]
          %v490 = vld [vmem:[#allocation9 + $0x8] sm:$0xff]
          %v491 = vld [vmem:[#allocation9 + $0x10] sm:$0xff]
          %v492 = vld [vmem:[#allocation9 + $0x18] sm:$0xff]
          %v493 = vld [vmem:[#allocation9 + $0x20] sm:$0xff]
          %v494 = vld [vmem:[#allocation9 + $0x28] sm:$0xff]
          %v495 = vld [vmem:[#allocation9 + $0x30] sm:$0xff]
          %v496 = vld [vmem:[#allocation9 + $0x38] sm:$0xff]
          %v497 = vld [vmem:[#allocation9 + $0x40] sm:$0xff]
          %v498 = vld [vmem:[#allocation9 + $0x48] sm:$0xff]
          %v499 = vld [vmem:[#allocation9 + $0x50] sm:$0xff]
          %v500 = vld [vmem:[#allocation9 + $0x58] sm:$0xff]
          %v501 = vld [vmem:[#allocation9 + $0x60] sm:$0xff]
          %v502 = vld [vmem:[#allocation9 + $0x68] sm:$0xff]
          %v503 = vld [vmem:[#allocation9 + $0x70] sm:$0xff]
          %v504 = vld [vmem:[#allocation9 + $0x78] sm:$0xff]
          %v505 = vld [vmem:[#allocation9 + $0x80] sm:$0xff]
          %v506 = vld [vmem:[#allocation9 + $0x88] sm:$0xff]
          %v507 = vld [vmem:[#allocation9 + $0x90] sm:$0xff]
          %v508 = vld [vmem:[#allocation9 + $0x98] sm:$0xff]
          %v509 = vld [vmem:[#allocation9 + $0xa0] sm:$0xff]
          %v510 = vld [vmem:[#allocation9 + $0xa8] sm:$0xff]
          %v511 = vld [vmem:[#allocation9 + $0xb0] sm:$0xff]
          %v512 = vld [vmem:[#allocation9 + $0xb8] sm:$0xff]
          %v513 = vld [vmem:[#allocation9 + $0xc0] sm:$0xff]
          %v514 = vld [vmem:[#allocation9 + $0xc8] sm:$0xff]
          %v515 = vld [vmem:[#allocation9 + $0xd0] sm:$0xff]
          %v516 = vld [vmem:[#allocation9 + $0xd8] sm:$0xff]
          %v517 = vld [vmem:[#allocation9 + $0xe0] sm:$0xff]
          %v518 = vld [vmem:[#allocation9 + $0xe8] sm:$0xff]
          %v519 = vld [vmem:[#allocation9 + $0xf0] sm:$0xff]
          %v520 = vld [vmem:[#allocation9 + $0xf8] sm:$0xff]
          %v521 = vld [vmem:[%s5] sm:$0x3]
          %v523 = vlaneseq
          %v524 = vshrl.u32 %v523, 7
          %v525 = vsub.s32 0, %v524
          %v526 = vrot.slane %v521, %v525
          %v527 = vlaneseq
          %v528 = vshrl.u32 %v527, 7
          %v529 = vsub.s32 1, %v528
          %v530 = vrot.slane %v521, %v529
          %533 = vmatprep.subr.mxu0 %v490
          %534 = vmatpush1.msra.mxu0 %v489
          %535 = vmatprep.subr.mxu0 %v492
          %536 = vmatpush1.msra.mxu0 %v491
          %537 = vmatprep.subr.mxu0 %v494
          %538 = vmatpush1.msra.mxu0 %v493
          %539 = vmatprep.subr.mxu0 %v496
          %540 = vmatpush1.msra.mxu0 %v495
          %541 = vmatprep.subr.mxu0 %v498
          %542 = vmatpush1.msra.mxu0 %v497
          %543 = vmatprep.subr.mxu0 %v500
          %544 = vmatpush1.msra.mxu0 %v499
          %545 = vmatprep.subr.mxu0 %v502
          %546 = vmatpush1.msra.mxu0 %v501
          %547 = vmatprep.subr.mxu0 %v504
          %548 = vmatpush1.msra.mxu0 %v503
          %549 = vmatprep.subr.mxu0 %v506
          %550 = vmatpush1.msra.mxu0 %v505
          %551 = vmatprep.subr.mxu0 %v508
          %552 = vmatpush1.msra.mxu0 %v507
          %553 = vmatprep.subr.mxu0 %v510
          %554 = vmatpush1.msra.mxu0 %v509
          %555 = vmatprep.subr.mxu0 %v512
          %556 = vmatpush1.msra.mxu0 %v511
          %557 = vmatprep.subr.mxu0 %v514
          %558 = vmatpush1.msra.mxu0 %v513
          %559 = vmatprep.subr.mxu0 %v516
          %560 = vmatpush1.msra.mxu0 %v515
          %561 = vmatprep.subr.mxu0 %v518
          %562 = vmatpush1.msra.mxu0 %v517
          %563 = vmatprep.subr.mxu0 %v520
          %564 = vmatpush1.msra.mxu0 %v519
          %565 = vmatprep.subr.mxu0 0.0
          %566 = vmatpush1.msra.mxu0 0.0
          %567 = vmatprep.subr.mxu0 0.0
          %568 = vmatpush1.msra.mxu0 0.0
          %569 = vmatprep.subr.mxu0 0.0
          %570 = vmatpush1.msra.mxu0 0.0
          %571 = vmatprep.subr.mxu0 0.0
          %572 = vmatpush1.msra.mxu0 0.0
          %573 = vmatprep.subr.mxu0 0.0
          %574 = vmatpush1.msra.mxu0 0.0
          %575 = vmatprep.subr.mxu0 0.0
          %576 = vmatpush1.msra.mxu0 0.0
          %577 = vmatprep.subr.mxu0 0.0
          %578 = vmatpush1.msra.mxu0 0.0
          %579 = vmatprep.subr.mxu0 0.0
          %580 = vmatpush1.msra.mxu0 0.0
          %581 = vmatprep.subr.mxu0 0.0
          %582 = vmatpush1.msra.mxu0 0.0
          %583 = vmatprep.subr.mxu0 0.0
          %584 = vmatpush1.msra.mxu0 0.0
          %585 = vmatprep.subr.mxu0 0.0
          %586 = vmatpush1.msra.mxu0 0.0
          %587 = vmatprep.subr.mxu0 0.0
          %588 = vmatpush1.msra.mxu0 0.0
          %589 = vmatprep.subr.mxu0 0.0
          %590 = vmatpush1.msra.mxu0 0.0
          %591 = vmatprep.subr.mxu0 0.0
          %592 = vmatpush1.msra.mxu0 0.0
          %593 = vmatprep.subr.mxu0 0.0
          %594 = vmatpush1.msra.mxu0 0.0
          %595 = vmatprep.subr.mxu0 0.0
          %596 = vmatpush1.msra.mxu0 0.0
          %597 = vmatprep.mubr.f32.mxu0 0.0
          %598 = vmatmul.mubr.f32.gmra.mrb[0].mxu0 %v487
          %v599 = vpop.f32.mrb[0].mxu0
          %v600 = vadd.f32 %v526, %v599
          %v601 = vpop.f32.mrb[0].mxu0
          %v602 = vadd.f32 %v530, %v601
          %603 = vmatprep.mubr.f32.mxu0 0.0
          %604 = vmatmul.mubr.f32.gmra.mrb[0].mxu0 %v488
          %v605 = vpop.f32.mrb[0].mxu0
          %v606 = vadd.f32 %v526, %v605
          %v607 = vpop.f32.mrb[0].mxu0
          %v608 = vadd.f32 %v530, %v607
          %609 = vdwg.mxu0
          %610 = vst [vmem:[#allocation2] sm:$0xff] %v600
          %611 = vst [vmem:[#allocation2 + $0x8] sm:$0xff] %v602
          %612 = vst [vmem:[#allocation2 + $0x10] sm:$0xff] %v606
          %613 = vst [vmem:[#allocation2 + $0x18] sm:$0xff] %v608
        $region84: #{tpu_custom_call.1} parent=59 // pred_fallthru
          _
        %v614 = vld [vmem:[#allocation8] sm:$0xff]
        %v615 = vld [vmem:[#allocation8 + $0x8] sm:$0xff]
        %v616 = vld [vmem:[#allocation8 + $0x10] sm:$0xff]
        %v617 = vld [vmem:[#allocation8 + $0x18] sm:$0xff]
        %v618 = vld [vmem:[#allocation8 + $0x20] sm:$0xff]
        %v619 = vld [vmem:[#allocation8 + $0x28] sm:$0xff]
        %v620 = vld [vmem:[#allocation8 + $0x30] sm:$0xff]
        %v621 = vld [vmem:[#allocation8 + $0x38] sm:$0xff]
        %v622 = vld [vmem:[#allocation8 + $0x40] sm:$0xff]
        %v623 = vld [vmem:[#allocation8 + $0x48] sm:$0xff]
        %v624 = vld [vmem:[#allocation8 + $0x50] sm:$0xff]
        %v625 = vld [vmem:[#allocation8 + $0x58] sm:$0xff]
        %v626 = vld [vmem:[#allocation8 + $0x60] sm:$0xff]
        %v627 = vld [vmem:[#allocation8 + $0x68] sm:$0xff]
        %v628 = vld [vmem:[#allocation8 + $0x70] sm:$0xff]
        %v629 = vld [vmem:[#allocation8 + $0x78] sm:$0xff]
        %v630 = vld [vmem:[%s3] sm:$0x1]
        %v632 = vlaneseq
        %v633 = vshrl.u32 %v632, 7
        %v634 = vsub.s32 0, %v633
        %v635 = vrot.slane %v630, %v634
        %637 = vmatprep.subr.mxu0 0.0
        %638 = vmatpush1.msra.mxu0 %v614
        %639 = vmatprep.subr.mxu0 0.0
        %640 = vmatpush1.msra.mxu0 %v615
        %641 = vmatprep.subr.mxu0 0.0
        %642 = vmatpush1.msra.mxu0 %v616
        %643 = vmatprep.subr.mxu0 0.0
        %644 = vmatpush1.msra.mxu0 %v617
        %645 = vmatprep.subr.mxu0 0.0
        %646 = vmatpush1.msra.mxu0 %v618
        %647 = vmatprep.subr.mxu0 0.0
        %648 = vmatpush1.msra.mxu0 %v619
        %649 = vmatprep.subr.mxu0 0.0
        %650 = vmatpush1.msra.mxu0 %v620
        %651 = vmatprep.subr.mxu0 0.0
        %652 = vmatpush1.msra.mxu0 %v621
        %653 = vmatprep.subr.mxu0 0.0
        %654 = vmatpush1.msra.mxu0 %v622
        %655 = vmatprep.subr.mxu0 0.0
        %656 = vmatpush1.msra.mxu0 %v623
        %657 = vmatprep.subr.mxu0 0.0
        %658 = vmatpush1.msra.mxu0 %v624
        %659 = vmatprep.subr.mxu0 0.0
        %660 = vmatpush1.msra.mxu0 %v625
        %661 = vmatprep.subr.mxu0 0.0
        %662 = vmatpush1.msra.mxu0 %v626
        %663 = vmatprep.subr.mxu0 0.0
        %664 = vmatpush1.msra.mxu0 %v627
        %665 = vmatprep.subr.mxu0 0.0
        %666 = vmatpush1.msra.mxu0 %v628
        %667 = vmatprep.subr.mxu0 0.0
        %668 = vmatpush1.msra.mxu0 %v629
        %669 = vmatprep.subr.mxu0 0.0
        %670 = vmatpush1.msra.mxu0 0.0
        %671 = vmatprep.subr.mxu0 0.0
        %672 = vmatpush1.msra.mxu0 0.0
        %673 = vmatprep.subr.mxu0 0.0
        %674 = vmatpush1.msra.mxu0 0.0
        %675 = vmatprep.subr.mxu0 0.0
        %676 = vmatpush1.msra.mxu0 0.0
        %677 = vmatprep.subr.mxu0 0.0
        %678 = vmatpush1.msra.mxu0 0.0
        %679 = vmatprep.subr.mxu0 0.0
        %680 = vmatpush1.msra.mxu0 0.0
        %681 = vmatprep.subr.mxu0 0.0
        %682 = vmatpush1.msra.mxu0 0.0
        %683 = vmatprep.subr.mxu0 0.0
        %684 = vmatpush1.msra.mxu0 0.0
        %685 = vmatprep.subr.mxu0 0.0
        %686 = vmatpush1.msra.mxu0 0.0
        %687 = vmatprep.subr.mxu0 0.0
        %688 = vmatpush1.msra.mxu0 0.0
        %689 = vmatprep.subr.mxu0 0.0
        %690 = vmatpush1.msra.mxu0 0.0
        %691 = vmatprep.subr.mxu0 0.0
        %692 = vmatpush1.msra.mxu0 0.0
        %693 = vmatprep.subr.mxu0 0.0
        %694 = vmatpush1.msra.mxu0 0.0
        %695 = vmatprep.subr.mxu0 0.0
        %696 = vmatpush1.msra.mxu0 0.0
        %697 = vmatprep.subr.mxu0 0.0
        %698 = vmatpush1.msra.mxu0 0.0
        %699 = vmatprep.subr.mxu0 0.0
        %700 = vmatpush1.msra.mxu0 0.0
        %701 = vmatprep.mubr.f32.mxu0 0.0
        %702 = vmatmul.mubr.f32.gmra.mrb[0].mxu0 %v481
        %v703 = vpop.f32.mrb[0].mxu0
        %v704 = vadd.f32 %v635, %v703
        %v705 = vpop.f32.mrb[0].mxu0
        %706 = vmatprep.mubr.f32.mxu0 0.0
        %707 = vmatmul.mubr.f32.gmra.mrb[0].mxu0 %v482
        %v708 = vpop.f32.mrb[0].mxu0
        %v709 = vadd.f32 %v635, %v708
        %v710 = vpop.f32.mrb[0].mxu0
        %711 = vdwg.mxu0
        %v712 = vld [vmem:[#allocation2] sm:$0xff]
        %v713 = vld [vmem:[#allocation2 + $0x10] sm:$0xff]
        %v714 = vld [vmem:[#allocation2 + $0x8] sm:$0xff]
        %v715 = vld [vmem:[#allocation2 + $0x18] sm:$0xff]
        %718 = vrot.lane.b32.xlu0 %v704, 96
        %v719 = vpop.permute.xlu0 %718
        %720 = vrot.lane.b32.xlu0 %v709, 96
        %v721 = vpop.permute.xlu0 %720
        %722 = vrot.lane.b32.xlu0 %v704, 64
        %v723 = vpop.permute.xlu0 %722
        %724 = vrot.lane.b32.xlu0 %v709, 64
        %v725 = vpop.permute.xlu0 %724
        %726 = vrot.lane.b32.xlu0 %v704, 32
        %v727 = vpop.permute.xlu0 %726
        %728 = vrot.lane.b32.xlu0 %v709, 32
        %v729 = vpop.permute.xlu0 %728
        %732 = vrot.lane.b32.xlu0 %v712, 96
        %v733 = vpop.permute.xlu0 %732
        %734 = vrot.lane.b32.xlu0 %v713, 96
        %v735 = vpop.permute.xlu0 %734
        %738 = vrot.lane.b32.xlu0 %v712, 64
        %v739 = vpop.permute.xlu0 %738
        %740 = vrot.lane.b32.xlu0 %v713, 64
        %v741 = vpop.permute.xlu0 %740
        %744 = vrot.lane.b32.xlu0 %v712, 32
        %v745 = vpop.permute.xlu0 %744
        %746 = vrot.lane.b32.xlu0 %v713, 32
        %v747 = vpop.permute.xlu0 %746
        %752 = vrot.lane.b32.xlu0 %v714, 96
        %v753 = vpop.permute.xlu0 %752
        %754 = vrot.lane.b32.xlu0 %v715, 96
        %v755 = vpop.permute.xlu0 %754
        %758 = vrot.lane.b32.xlu0 %v714, 64
        %v759 = vpop.permute.xlu0 %758
        %760 = vrot.lane.b32.xlu0 %v715, 64
        %v761 = vpop.permute.xlu0 %760
        %764 = vrot.lane.b32.xlu0 %v714, 32
        %v765 = vpop.permute.xlu0 %764
        %766 = vrot.lane.b32.xlu0 %v715, 32
        %v767 = vpop.permute.xlu0 %766
        %770 = vxpose.xlu0.b32.start [1/16] %v712, 128
        %771 = vxpose.xlu0.b32.cont [2/16] %v713, 128
        %772 = vxpose.xlu0.b32.cont [3/16] 0.0, 128
        %773 = vxpose.xlu0.b32.cont [4/16] 0.0, 128
        %774 = vxpose.xlu0.b32.cont [5/16] 0.0, 128
        %775 = vxpose.xlu0.b32.cont [6/16] 0.0, 128
        %776 = vxpose.xlu0.b32.cont [7/16] 0.0, 128
        %777 = vxpose.xlu0.b32.cont [8/16] 0.0, 128
        %778 = vxpose.xlu0.b32.cont [9/16] 0.0, 128
        %779 = vxpose.xlu0.b32.cont [10/16] 0.0, 128
        %780 = vxpose.xlu0.b32.cont [11/16] 0.0, 128
        %781 = vxpose.xlu0.b32.cont [12/16] 0.0, 128
        %782 = vxpose.xlu0.b32.cont [13/16] 0.0, 128
        %783 = vxpose.xlu0.b32.cont [14/16] 0.0, 128
        %784 = vxpose.xlu0.b32.cont [15/16] 0.0, 128
        %785 = vxpose.xlu0.b32.end [16/16] 0.0, 128
        %v786 = vpop.trf.xlu0
        %v787 = vpop.trf.xlu0
        %v788 = vpop.trf.xlu0
        %v789 = vpop.trf.xlu0
        %v790 = vpop.trf.xlu0
        %v791 = vpop.trf.xlu0
        %v792 = vpop.trf.xlu0
        %v793 = vpop.trf.xlu0
        %v794 = vpop.trf.xlu0
        %v795 = vpop.trf.xlu0
        %v796 = vpop.trf.xlu0
        %v797 = vpop.trf.xlu0
        %v798 = vpop.trf.xlu0
        %v799 = vpop.trf.xlu0
        %v800 = vpop.trf.xlu0
        %v801 = vpop.trf.xlu0
        %802 = vxpose.xlu0.b32.start [1/16] %v733, 128
        %803 = vxpose.xlu0.b32.cont [2/16] %v735, 128
        %804 = vxpose.xlu0.b32.cont [3/16] 0.0, 128
        %805 = vxpose.xlu0.b32.cont [4/16] 0.0, 128
        %806 = vxpose.xlu0.b32.cont [5/16] 0.0, 128
        %807 = vxpose.xlu0.b32.cont [6/16] 0.0, 128
        %808 = vxpose.xlu0.b32.cont [7/16] 0.0, 128
        %809 = vxpose.xlu0.b32.cont [8/16] 0.0, 128
        %810 = vxpose.xlu0.b32.cont [9/16] 0.0, 128
        %811 = vxpose.xlu0.b32.cont [10/16] 0.0, 128
        %812 = vxpose.xlu0.b32.cont [11/16] 0.0, 128
        %813 = vxpose.xlu0.b32.cont [12/16] 0.0, 128
        %814 = vxpose.xlu0.b32.cont [13/16] 0.0, 128
        %815 = vxpose.xlu0.b32.cont [14/16] 0.0, 128
        %816 = vxpose.xlu0.b32.cont [15/16] 0.0, 128
        %817 = vxpose.xlu0.b32.end [16/16] 0.0, 128
        %v818 = vpop.trf.xlu0
        %v819 = vpop.trf.xlu0
        %v820 = vpop.trf.xlu0
        %v821 = vpop.trf.xlu0
        %v822 = vpop.trf.xlu0
        %v823 = vpop.trf.xlu0
        %v824 = vpop.trf.xlu0
        %v825 = vpop.trf.xlu0
        %v826 = vpop.trf.xlu0
        %v827 = vpop.trf.xlu0
        %v828 = vpop.trf.xlu0
        %v829 = vpop.trf.xlu0
        %v830 = vpop.trf.xlu0
        %v831 = vpop.trf.xlu0
        %v832 = vpop.trf.xlu0
        %v833 = vpop.trf.xlu0
        %834 = vxpose.xlu0.b32.start [1/16] %v739, 128
        %835 = vxpose.xlu0.b32.cont [2/16] %v741, 128
        %836 = vxpose.xlu0.b32.cont [3/16] 0.0, 128
        %837 = vxpose.xlu0.b32.cont [4/16] 0.0, 128
        %838 = vxpose.xlu0.b32.cont [5/16] 0.0, 128
        %839 = vxpose.xlu0.b32.cont [6/16] 0.0, 128
        %840 = vxpose.xlu0.b32.cont [7/16] 0.0, 128
        %841 = vxpose.xlu0.b32.cont [8/16] 0.0, 128
        %842 = vxpose.xlu0.b32.cont [9/16] 0.0, 128
        %843 = vxpose.xlu0.b32.cont [10/16] 0.0, 128
        %844 = vxpose.xlu0.b32.cont [11/16] 0.0, 128
        %845 = vxpose.xlu0.b32.cont [12/16] 0.0, 128
        %846 = vxpose.xlu0.b32.cont [13/16] 0.0, 128
        %847 = vxpose.xlu0.b32.cont [14/16] 0.0, 128
        %848 = vxpose.xlu0.b32.cont [15/16] 0.0, 128
        %849 = vxpose.xlu0.b32.end [16/16] 0.0, 128
        %v850 = vpop.trf.xlu0
        %v851 = vpop.trf.xlu0
        %v852 = vpop.trf.xlu0
        %v853 = vpop.trf.xlu0
        %v854 = vpop.trf.xlu0
        %v855 = vpop.trf.xlu0
        %v856 = vpop.trf.xlu0
        %v857 = vpop.trf.xlu0
        %v858 = vpop.trf.xlu0
        %v859 = vpop.trf.xlu0
        %v860 = vpop.trf.xlu0
        %v861 = vpop.trf.xlu0
        %v862 = vpop.trf.xlu0
        %v863 = vpop.trf.xlu0
        %v864 = vpop.trf.xlu0
        %v865 = vpop.trf.xlu0
        %866 = vxpose.xlu0.b32.start [1/16] %v745, 128
        %867 = vxpose.xlu0.b32.cont [2/16] %v747, 128
        %868 = vxpose.xlu0.b32.cont [3/16] 0.0, 128
        %869 = vxpose.xlu0.b32.cont [4/16] 0.0, 128
        %870 = vxpose.xlu0.b32.cont [5/16] 0.0, 128
        %871 = vxpose.xlu0.b32.cont [6/16] 0.0, 128
        %872 = vxpose.xlu0.b32.cont [7/16] 0.0, 128
        %873 = vxpose.xlu0.b32.cont [8/16] 0.0, 128
        %874 = vxpose.xlu0.b32.cont [9/16] 0.0, 128
        %875 = vxpose.xlu0.b32.cont [10/16] 0.0, 128
        %876 = vxpose.xlu0.b32.cont [11/16] 0.0, 128
        %877 = vxpose.xlu0.b32.cont [12/16] 0.0, 128
        %878 = vxpose.xlu0.b32.cont [13/16] 0.0, 128
        %879 = vxpose.xlu0.b32.cont [14/16] 0.0, 128
        %880 = vxpose.xlu0.b32.cont [15/16] 0.0, 128
        %881 = vxpose.xlu0.b32.end [16/16] 0.0, 128
        %v882 = vpop.trf.xlu0
        %v883 = vpop.trf.xlu0
        %v884 = vpop.trf.xlu0
        %v885 = vpop.trf.xlu0
        %v886 = vpop.trf.xlu0
        %v887 = vpop.trf.xlu0
        %v888 = vpop.trf.xlu0
        %v889 = vpop.trf.xlu0
        %v890 = vpop.trf.xlu0
        %v891 = vpop.trf.xlu0
        %v892 = vpop.trf.xlu0
        %v893 = vpop.trf.xlu0
        %v894 = vpop.trf.xlu0
        %v895 = vpop.trf.xlu0
        %v896 = vpop.trf.xlu0
        %v897 = vpop.trf.xlu0
        %vm898 = vcmask 261120
        %v899 = vsel %vm898, %v704, 0
        %v901 = vsel %vm898, %v709, 0
        %903 = vmatprep.subr.mxu0 0.0
        %904 = vmatpush1.msra.mxu0 %v786
        %905 = vmatprep.subr.mxu0 0.0
        %906 = vmatpush1.msra.mxu0 %v787
        %907 = vmatprep.subr.mxu0 0.0
        %908 = vmatpush1.msra.mxu0 %v788
        %909 = vmatprep.subr.mxu0 0.0
        %910 = vmatpush1.msra.mxu0 %v789
        %911 = vmatprep.subr.mxu0 0.0
        %912 = vmatpush1.msra.mxu0 0.0
        %913 = vmatprep.subr.mxu0 0.0
        %914 = vmatpush1.msra.mxu0 0.0
        %915 = vmatprep.subr.mxu0 0.0
        %916 = vmatpush1.msra.mxu0 0.0
        %917 = vmatprep.subr.mxu0 0.0
        %918 = vmatpush1.msra.mxu0 0.0
        %919 = vmatprep.subr.mxu0 0.0
        %920 = vmatpush1.msra.mxu0 0.0
        %921 = vmatprep.subr.mxu0 0.0
        %922 = vmatpush1.msra.mxu0 0.0
        %923 = vmatprep.subr.mxu0 0.0
        %924 = vmatpush1.msra.mxu0 0.0
        %925 = vmatprep.subr.mxu0 0.0
        %926 = vmatpush1.msra.mxu0 0.0
        %927 = vmatprep.subr.mxu0 0.0
        %928 = vmatpush1.msra.mxu0 0.0
        %929 = vmatprep.subr.mxu0 0.0
        %930 = vmatpush1.msra.mxu0 0.0
        %931 = vmatprep.subr.mxu0 0.0
        %932 = vmatpush1.msra.mxu0 0.0
        %933 = vmatprep.subr.mxu0 0.0
        %934 = vmatpush1.msra.mxu0 0.0
        %935 = vmatprep.subr.mxu0 0.0
        %936 = vmatpush1.msra.mxu0 0.0
        %937 = vmatprep.subr.mxu0 0.0
        %938 = vmatpush1.msra.mxu0 0.0
        %939 = vmatprep.subr.mxu0 0.0
        %940 = vmatpush1.msra.mxu0 0.0
        %941 = vmatprep.subr.mxu0 0.0
        %942 = vmatpush1.msra.mxu0 0.0
        %943 = vmatprep.subr.mxu0 0.0
        %944 = vmatpush1.msra.mxu0 0.0
        %945 = vmatprep.subr.mxu0 0.0
        %946 = vmatpush1.msra.mxu0 0.0
        %947 = vmatprep.subr.mxu0 0.0
        %948 = vmatpush1.msra.mxu0 0.0
        %949 = vmatprep.subr.mxu0 0.0
        %950 = vmatpush1.msra.mxu0 0.0
        %951 = vmatprep.subr.mxu0 0.0
        %952 = vmatpush1.msra.mxu0 0.0
        %953 = vmatprep.subr.mxu0 0.0
        %954 = vmatpush1.msra.mxu0 0.0
        %955 = vmatprep.subr.mxu0 0.0
        %956 = vmatpush1.msra.mxu0 0.0
        %957 = vmatprep.subr.mxu0 0.0
        %958 = vmatpush1.msra.mxu0 0.0
        %959 = vmatprep.subr.mxu0 0.0
        %960 = vmatpush1.msra.mxu0 0.0
        %961 = vmatprep.subr.mxu0 0.0
        %962 = vmatpush1.msra.mxu0 0.0
        %963 = vmatprep.subr.mxu0 0.0
        %964 = vmatpush1.msra.mxu0 0.0
        %965 = vmatprep.subr.mxu0 0.0
        %966 = vmatpush1.msra.mxu0 0.0
        %967 = vmatprep.mubr.f32.mxu0 0.0
        %968 = vmatmul.mubr.f32.gmra.mrb[0].mxu0 %v899
        %v969 = vpop.f32.mrb[0].mxu0
        %v970 = vadd.f32 0.0, %v969
        %v971 = vpop.f32.mrb[0].mxu0
        %972 = vmatprep.mubr.f32.mxu0 0.0
        %973 = vmatmul.mubr.f32.gmra.mrb[0].mxu0 %v901
        %v974 = vpop.f32.mrb[0].mxu0
        %v975 = vadd.f32 0.0, %v974
        %v976 = vpop.f32.mrb[0].mxu0
        %977 = vdwg.mxu0
        %v978 = vsel %vm898, %v719, 0
        %v980 = vsel %vm898, %v721, 0
        %982 = vmatprep.subr.mxu0 0.0
        %983 = vmatpush1.msra.mxu0 %v818
        %984 = vmatprep.subr.mxu0 0.0
        %985 = vmatpush1.msra.mxu0 %v819
        %986 = vmatprep.subr.mxu0 0.0
        %987 = vmatpush1.msra.mxu0 %v820
        %988 = vmatprep.subr.mxu0 0.0
        %989 = vmatpush1.msra.mxu0 %v821
        %990 = vmatprep.subr.mxu0 0.0
        %991 = vmatpush1.msra.mxu0 0.0
        %992 = vmatprep.subr.mxu0 0.0
        %993 = vmatpush1.msra.mxu0 0.0
        %994 = vmatprep.subr.mxu0 0.0
        %995 = vmatpush1.msra.mxu0 0.0
        %996 = vmatprep.subr.mxu0 0.0
        %997 = vmatpush1.msra.mxu0 0.0
        %998 = vmatprep.subr.mxu0 0.0
        %999 = vmatpush1.msra.mxu0 0.0
        %1000 = vmatprep.subr.mxu0 0.0
        %1001 = vmatpush1.msra.mxu0 0.0
        %1002 = vmatprep.subr.mxu0 0.0
        %1003 = vmatpush1.msra.mxu0 0.0
        %1004 = vmatprep.subr.mxu0 0.0
        %1005 = vmatpush1.msra.mxu0 0.0
        %1006 = vmatprep.subr.mxu0 0.0
        %1007 = vmatpush1.msra.mxu0 0.0
        %1008 = vmatprep.subr.mxu0 0.0
        %1009 = vmatpush1.msra.mxu0 0.0
        %1010 = vmatprep.subr.mxu0 0.0
        %1011 = vmatpush1.msra.mxu0 0.0
        %1012 = vmatprep.subr.mxu0 0.0
        %1013 = vmatpush1.msra.mxu0 0.0
        %1014 = vmatprep.subr.mxu0 0.0
        %1015 = vmatpush1.msra.mxu0 0.0
        %1016 = vmatprep.subr.mxu0 0.0
        %1017 = vmatpush1.msra.mxu0 0.0
        %1018 = vmatprep.subr.mxu0 0.0
        %1019 = vmatpush1.msra.mxu0 0.0
        %1020 = vmatprep.subr.mxu0 0.0
        %1021 = vmatpush1.msra.mxu0 0.0
        %1022 = vmatprep.subr.mxu0 0.0
        %1023 = vmatpush1.msra.mxu0 0.0
        %1024 = vmatprep.subr.mxu0 0.0
        %1025 = vmatpush1.msra.mxu0 0.0
        %1026 = vmatprep.subr.mxu0 0.0
        %1027 = vmatpush1.msra.mxu0 0.0
        %1028 = vmatprep.subr.mxu0 0.0
        %1029 = vmatpush1.msra.mxu0 0.0
        %1030 = vmatprep.subr.mxu0 0.0
        %1031 = vmatpush1.msra.mxu0 0.0
        %1032 = vmatprep.subr.mxu0 0.0
        %1033 = vmatpush1.msra.mxu0 0.0
        %1034 = vmatprep.subr.mxu0 0.0
        %1035 = vmatpush1.msra.mxu0 0.0
        %1036 = vmatprep.subr.mxu0 0.0
        %1037 = vmatpush1.msra.mxu0 0.0
        %1038 = vmatprep.subr.mxu0 0.0
        %1039 = vmatpush1.msra.mxu0 0.0
        %1040 = vmatprep.subr.mxu0 0.0
        %1041 = vmatpush1.msra.mxu0 0.0
        %1042 = vmatprep.subr.mxu0 0.0
        %1043 = vmatpush1.msra.mxu0 0.0
        %1044 = vmatprep.subr.mxu0 0.0
        %1045 = vmatpush1.msra.mxu0 0.0
        %1046 = vmatprep.mubr.f32.mxu0 0.0
        %1047 = vmatmul.mubr.f32.gmra.mrb[0].mxu0 %v978
        %v1048 = vpop.f32.mrb[0].mxu0
        %v1049 = vadd.f32 0.0, %v1048
        %v1050 = vpop.f32.mrb[0].mxu0
        %1051 = vmatprep.mubr.f32.mxu0 0.0
        %1052 = vmatmul.mubr.f32.gmra.mrb[0].mxu0 %v980
        %v1053 = vpop.f32.mrb[0].mxu0
        %v1054 = vadd.f32 0.0, %v1053
        %v1055 = vpop.f32.mrb[0].mxu0
        %1056 = vdwg.mxu0
        %v1057 = vsel %vm898, %v723, 0
        %v1059 = vsel %vm898, %v725, 0
        %1061 = vmatprep.subr.mxu0 0.0
        %1062 = vmatpush1.msra.mxu0 %v850
        %1063 = vmatprep.subr.mxu0 0.0
        %1064 = vmatpush1.msra.mxu0 %v851
        %1065 = vmatprep.subr.mxu0 0.0
        %1066 = vmatpush1.msra.mxu0 %v852
        %1067 = vmatprep.subr.mxu0 0.0
        %1068 = vmatpush1.msra.mxu0 %v853
        %1069 = vmatprep.subr.mxu0 0.0
        %1070 = vmatpush1.msra.mxu0 0.0
        %1071 = vmatprep.subr.mxu0 0.0
        %1072 = vmatpush1.msra.mxu0 0.0
        %1073 = vmatprep.subr.mxu0 0.0
        %1074 = vmatpush1.msra.mxu0 0.0
        %1075 = vmatprep.subr.mxu0 0.0
        %1076 = vmatpush1.msra.mxu0 0.0
        %1077 = vmatprep.subr.mxu0 0.0
        %1078 = vmatpush1.msra.mxu0 0.0
        %1079 = vmatprep.subr.mxu0 0.0
        %1080 = vmatpush1.msra.mxu0 0.0
        %1081 = vmatprep.subr.mxu0 0.0
        %1082 = vmatpush1.msra.mxu0 0.0
        %1083 = vmatprep.subr.mxu0 0.0
        %1084 = vmatpush1.msra.mxu0 0.0
        %1085 = vmatprep.subr.mxu0 0.0
        %1086 = vmatpush1.msra.mxu0 0.0
        %1087 = vmatprep.subr.mxu0 0.0
        %1088 = vmatpush1.msra.mxu0 0.0
        %1089 = vmatprep.subr.mxu0 0.0
        %1090 = vmatpush1.msra.mxu0 0.0
        %1091 = vmatprep.subr.mxu0 0.0
        %1092 = vmatpush1.msra.mxu0 0.0
        %1093 = vmatprep.subr.mxu0 0.0
        %1094 = vmatpush1.msra.mxu0 0.0
        %1095 = vmatprep.subr.mxu0 0.0
        %1096 = vmatpush1.msra.mxu0 0.0
        %1097 = vmatprep.subr.mxu0 0.0
        %1098 = vmatpush1.msra.mxu0 0.0
        %1099 = vmatprep.subr.mxu0 0.0
        %1100 = vmatpush1.msra.mxu0 0.0
        %1101 = vmatprep.subr.mxu0 0.0
        %1102 = vmatpush1.msra.mxu0 0.0
        %1103 = vmatprep.subr.mxu0 0.0
        %1104 = vmatpush1.msra.mxu0 0.0
        %1105 = vmatprep.subr.mxu0 0.0
        %1106 = vmatpush1.msra.mxu0 0.0
        %1107 = vmatprep.subr.mxu0 0.0
        %1108 = vmatpush1.msra.mxu0 0.0
        %1109 = vmatprep.subr.mxu0 0.0
        %1110 = vmatpush1.msra.mxu0 0.0
        %1111 = vmatprep.subr.mxu0 0.0
        %1112 = vmatpush1.msra.mxu0 0.0
        %1113 = vmatprep.subr.mxu0 0.0
        %1114 = vmatpush1.msra.mxu0 0.0
        %1115 = vmatprep.subr.mxu0 0.0
        %1116 = vmatpush1.msra.mxu0 0.0
        %1117 = vmatprep.subr.mxu0 0.0
        %1118 = vmatpush1.msra.mxu0 0.0
        %1119 = vmatprep.subr.mxu0 0.0
        %1120 = vmatpush1.msra.mxu0 0.0
        %1121 = vmatprep.subr.mxu0 0.0
        %1122 = vmatpush1.msra.mxu0 0.0
        %1123 = vmatprep.subr.mxu0 0.0
        %1124 = vmatpush1.msra.mxu0 0.0
        %1125 = vmatprep.mubr.f32.mxu0 0.0
        %1126 = vmatmul.mubr.f32.gmra.mrb[0].mxu0 %v1057
        %v1127 = vpop.f32.mrb[0].mxu0
        %v1128 = vadd.f32 0.0, %v1127
        %v1129 = vpop.f32.mrb[0].mxu0
        %1130 = vmatprep.mubr.f32.mxu0 0.0
        %1131 = vmatmul.mubr.f32.gmra.mrb[0].mxu0 %v1059
        %v1132 = vpop.f32.mrb[0].mxu0
        %v1133 = vadd.f32 0.0, %v1132
        %v1134 = vpop.f32.mrb[0].mxu0
        %1135 = vdwg.mxu0
        %v1136 = vsel %vm898, %v727, 0
        %v1138 = vsel %vm898, %v729, 0
        %1140 = vmatprep.subr.mxu0 0.0
        %1141 = vmatpush1.msra.mxu0 %v882
        %1142 = vmatprep.subr.mxu0 0.0
        %1143 = vmatpush1.msra.mxu0 %v883
        %1144 = vmatprep.subr.mxu0 0.0
        %1145 = vmatpush1.msra.mxu0 %v884
        %1146 = vmatprep.subr.mxu0 0.0
        %1147 = vmatpush1.msra.mxu0 %v885
        %1148 = vmatprep.subr.mxu0 0.0
        %1149 = vmatpush1.msra.mxu0 0.0
        %1150 = vmatprep.subr.mxu0 0.0
        %1151 = vmatpush1.msra.mxu0 0.0
        %1152 = vmatprep.subr.mxu0 0.0
        %1153 = vmatpush1.msra.mxu0 0.0
        %1154 = vmatprep.subr.mxu0 0.0
        %1155 = vmatpush1.msra.mxu0 0.0
        %1156 = vmatprep.subr.mxu0 0.0
        %1157 = vmatpush1.msra.mxu0 0.0
        %1158 = vmatprep.subr.mxu0 0.0
        %1159 = vmatpush1.msra.mxu0 0.0
        %1160 = vmatprep.subr.mxu0 0.0
        %1161 = vmatpush1.msra.mxu0 0.0
        %1162 = vmatprep.subr.mxu0 0.0
        %1163 = vmatpush1.msra.mxu0 0.0
        %1164 = vmatprep.subr.mxu0 0.0
        %1165 = vmatpush1.msra.mxu0 0.0
        %1166 = vmatprep.subr.mxu0 0.0
        %1167 = vmatpush1.msra.mxu0 0.0
        %1168 = vmatprep.subr.mxu0 0.0
        %1169 = vmatpush1.msra.mxu0 0.0
        %1170 = vmatprep.subr.mxu0 0.0
        %1171 = vmatpush1.msra.mxu0 0.0
        %1172 = vmatprep.subr.mxu0 0.0
        %1173 = vmatpush1.msra.mxu0 0.0
        %1174 = vmatprep.subr.mxu0 0.0
        %1175 = vmatpush1.msra.mxu0 0.0
        %1176 = vmatprep.subr.mxu0 0.0
        %1177 = vmatpush1.msra.mxu0 0.0
        %1178 = vmatprep.subr.mxu0 0.0
        %1179 = vmatpush1.msra.mxu0 0.0
        %1180 = vmatprep.subr.mxu0 0.0
        %1181 = vmatpush1.msra.mxu0 0.0
        %1182 = vmatprep.subr.mxu0 0.0
        %1183 = vmatpush1.msra.mxu0 0.0
        %1184 = vmatprep.subr.mxu0 0.0
        %1185 = vmatpush1.msra.mxu0 0.0
        %1186 = vmatprep.subr.mxu0 0.0
        %1187 = vmatpush1.msra.mxu0 0.0
        %1188 = vmatprep.subr.mxu0 0.0
        %1189 = vmatpush1.msra.mxu0 0.0
        %1190 = vmatprep.subr.mxu0 0.0
        %1191 = vmatpush1.msra.mxu0 0.0
        %1192 = vmatprep.subr.mxu0 0.0
        %1193 = vmatpush1.msra.mxu0 0.0
        %1194 = vmatprep.subr.mxu0 0.0
        %1195 = vmatpush1.msra.mxu0 0.0
        %1196 = vmatprep.subr.mxu0 0.0
        %1197 = vmatpush1.msra.mxu0 0.0
        %1198 = vmatprep.subr.mxu0 0.0
        %1199 = vmatpush1.msra.mxu0 0.0
        %1200 = vmatprep.subr.mxu0 0.0
        %1201 = vmatpush1.msra.mxu0 0.0
        %1202 = vmatprep.subr.mxu0 0.0
        %1203 = vmatpush1.msra.mxu0 0.0
        %1204 = vmatprep.mubr.f32.mxu0 0.0
        %1205 = vmatmul.mubr.f32.gmra.mrb[0].mxu0 %v1136
        %v1206 = vpop.f32.mrb[0].mxu0
        %v1207 = vadd.f32 0.0, %v1206
        %v1208 = vpop.f32.mrb[0].mxu0
        %1209 = vmatprep.mubr.f32.mxu0 0.0
        %1210 = vmatmul.mubr.f32.gmra.mrb[0].mxu0 %v1138
        %v1211 = vpop.f32.mrb[0].mxu0
        %v1212 = vadd.f32 0.0, %v1211
        %v1213 = vpop.f32.mrb[0].mxu0
        %1214 = vdwg.mxu0
        %vm1215 = vcmask 130048
        %v1216 = vsel %vm1215, %v970, -inf
        %1217 = vmax.xlane.f32.xlu0 %v1216
        %v1218 = vpop.xlane.xlu0 %1217
        %v1219 = vsel %vm1215, %v975, -inf
        %1220 = vmax.xlane.f32.xlu0 %v1219
        %v1221 = vpop.xlane.xlu0 %1220
        %v1222 = vsel %vm1215, %v1049, -inf
        %1223 = vmax.xlane.f32.xlu0 %v1222
        %v1224 = vpop.xlane.xlu0 %1223
        %v1225 = vsel %vm1215, %v1054, -inf
        %1226 = vmax.xlane.f32.xlu0 %v1225
        %v1227 = vpop.xlane.xlu0 %1226
        %v1228 = vsel %vm1215, %v1128, -inf
        %1229 = vmax.xlane.f32.xlu0 %v1228
        %v1230 = vpop.xlane.xlu0 %1229
        %v1231 = vsel %vm1215, %v1133, -inf
        %1232 = vmax.xlane.f32.xlu0 %v1231
        %v1233 = vpop.xlane.xlu0 %1232
        %v1234 = vsel %vm1215, %v1207, -inf
        %1235 = vmax.xlane.f32.xlu0 %v1234
        %v1236 = vpop.xlane.xlu0 %1235
        %v1237 = vsel %vm1215, %v1212, -inf
        %1238 = vmax.xlane.f32.xlu0 %v1237
        %v1239 = vpop.xlane.xlu0 %1238
        %v1240 = vsub.f32 %v970, %v1218
        %v1241 = vsub.f32 %v975, %v1221
        %v1242 = vsub.f32 %v1049, %v1224
        %v1243 = vsub.f32 %v1054, %v1227
        %v1244 = vsub.f32 %v1128, %v1230
        %v1245 = vsub.f32 %v1133, %v1233
        %v1246 = vsub.f32 %v1207, %v1236
        %v1247 = vsub.f32 %v1212, %v1239
        %v1248 = vmul.f32 %v1240, 1.442695
        %v1249 = vpow.pop %v1248
        %v1250 = vmul.f32 %v1241, 1.442695
        %v1251 = vpow.pop %v1250
        %v1252 = vmul.f32 %v1242, 1.442695
        %v1253 = vpow.pop %v1252
        %v1254 = vmul.f32 %v1243, 1.442695
        %v1255 = vpow.pop %v1254
        %v1256 = vmul.f32 %v1244, 1.442695
        %v1257 = vpow.pop %v1256
        %v1258 = vmul.f32 %v1245, 1.442695
        %v1259 = vpow.pop %v1258
        %v1260 = vmul.f32 %v1246, 1.442695
        %v1261 = vpow.pop %v1260
        %v1262 = vmul.f32 %v1247, 1.442695
        %v1263 = vpow.pop %v1262
        %v1264 = vsel %vm1215, %v1249, 0.0
        %1265 = vadd.xlane.f32.xlu0 %v1264
        %v1266 = vpop.xlane.xlu0 %1265
        %v1267 = vsel %vm1215, %v1251, 0.0
        %1268 = vadd.xlane.f32.xlu0 %v1267
        %v1269 = vpop.xlane.xlu0 %1268
        %v1270 = vsel %vm1215, %v1253, 0.0
        %1271 = vadd.xlane.f32.xlu0 %v1270
        %v1272 = vpop.xlane.xlu0 %1271
        %v1273 = vsel %vm1215, %v1255, 0.0
        %1274 = vadd.xlane.f32.xlu0 %v1273
        %v1275 = vpop.xlane.xlu0 %1274
        %v1276 = vsel %vm1215, %v1257, 0.0
        %1277 = vadd.xlane.f32.xlu0 %v1276
        %v1278 = vpop.xlane.xlu0 %1277
        %v1279 = vsel %vm1215, %v1259, 0.0
        %1280 = vadd.xlane.f32.xlu0 %v1279
        %v1281 = vpop.xlane.xlu0 %1280
        %v1282 = vsel %vm1215, %v1261, 0.0
        %1283 = vadd.xlane.f32.xlu0 %v1282
        %v1284 = vpop.xlane.xlu0 %1283
        %v1285 = vsel %vm1215, %v1263, 0.0
        %1286 = vadd.xlane.f32.xlu0 %v1285
        %v1287 = vpop.xlane.xlu0 %1286
        %v1288 = vrcp.pop %v1266
        %v1289 = vrcp.pop %v1269
        %v1290 = vrcp.pop %v1272
        %v1291 = vrcp.pop %v1275
        %v1292 = vrcp.pop %v1278
        %v1293 = vrcp.pop %v1281
        %v1294 = vrcp.pop %v1284
        %v1295 = vrcp.pop %v1287
        %v1296 = vmul.f32 %v1249, %v1288
        %v1297 = vmul.f32 %v1251, %v1289
        %v1298 = vmul.f32 %v1253, %v1290
        %v1299 = vmul.f32 %v1255, %v1291
        %v1300 = vmul.f32 %v1257, %v1292
        %v1301 = vmul.f32 %v1259, %v1293
        %v1302 = vmul.f32 %v1261, %v1294
        %v1303 = vmul.f32 %v1263, %v1295
        %1304 = vxpose.xlu0.b32.start [1/16] %v714, 128
        %1305 = vxpose.xlu0.b32.cont [2/16] %v715, 128
        %1306 = vxpose.xlu0.b32.cont [3/16] 0.0, 128
        %1307 = vxpose.xlu0.b32.cont [4/16] 0.0, 128
        %1308 = vxpose.xlu0.b32.cont [5/16] 0.0, 128
        %1309 = vxpose.xlu0.b32.cont [6/16] 0.0, 128
        %1310 = vxpose.xlu0.b32.cont [7/16] 0.0, 128
        %1311 = vxpose.xlu0.b32.cont [8/16] 0.0, 128
        %1312 = vxpose.xlu0.b32.cont [9/16] 0.0, 128
        %1313 = vxpose.xlu0.b32.cont [10/16] 0.0, 128
        %1314 = vxpose.xlu0.b32.cont [11/16] 0.0, 128
        %1315 = vxpose.xlu0.b32.cont [12/16] 0.0, 128
        %1316 = vxpose.xlu0.b32.cont [13/16] 0.0, 128
        %1317 = vxpose.xlu0.b32.cont [14/16] 0.0, 128
        %1318 = vxpose.xlu0.b32.cont [15/16] 0.0, 128
        %1319 = vxpose.xlu0.b32.end [16/16] 0.0, 128
        %v1320 = vpop.trf.xlu0
        %v1321 = vpop.trf.xlu0
        %v1322 = vpop.trf.xlu0
        %v1323 = vpop.trf.xlu0
        %v1324 = vpop.trf.xlu0
        %v1325 = vpop.trf.xlu0
        %v1326 = vpop.trf.xlu0
        %v1327 = vpop.trf.xlu0
        %v1328 = vpop.trf.xlu0
        %v1329 = vpop.trf.xlu0
        %v1330 = vpop.trf.xlu0
        %v1331 = vpop.trf.xlu0
        %v1332 = vpop.trf.xlu0
        %v1333 = vpop.trf.xlu0
        %v1334 = vpop.trf.xlu0
        %v1335 = vpop.trf.xlu0
        %1336 = vxpose.xlu0.b32.start [1/16] %v753, 128
        %1337 = vxpose.xlu0.b32.cont [2/16] %v755, 128
        %1338 = vxpose.xlu0.b32.cont [3/16] 0.0, 128
        %1339 = vxpose.xlu0.b32.cont [4/16] 0.0, 128
        %1340 = vxpose.xlu0.b32.cont [5/16] 0.0, 128
        %1341 = vxpose.xlu0.b32.cont [6/16] 0.0, 128
        %1342 = vxpose.xlu0.b32.cont [7/16] 0.0, 128
        %1343 = vxpose.xlu0.b32.cont [8/16] 0.0, 128
        %1344 = vxpose.xlu0.b32.cont [9/16] 0.0, 128
        %1345 = vxpose.xlu0.b32.cont [10/16] 0.0, 128
        %1346 = vxpose.xlu0.b32.cont [11/16] 0.0, 128
        %1347 = vxpose.xlu0.b32.cont [12/16] 0.0, 128
        %1348 = vxpose.xlu0.b32.cont [13/16] 0.0, 128
        %1349 = vxpose.xlu0.b32.cont [14/16] 0.0, 128
        %1350 = vxpose.xlu0.b32.cont [15/16] 0.0, 128
        %1351 = vxpose.xlu0.b32.end [16/16] 0.0, 128
        %v1352 = vpop.trf.xlu0
        %v1353 = vpop.trf.xlu0
        %v1354 = vpop.trf.xlu0
        %v1355 = vpop.trf.xlu0
        %v1356 = vpop.trf.xlu0
        %v1357 = vpop.trf.xlu0
        %v1358 = vpop.trf.xlu0
        %v1359 = vpop.trf.xlu0
        %v1360 = vpop.trf.xlu0
        %v1361 = vpop.trf.xlu0
        %v1362 = vpop.trf.xlu0
        %v1363 = vpop.trf.xlu0
        %v1364 = vpop.trf.xlu0
        %v1365 = vpop.trf.xlu0
        %v1366 = vpop.trf.xlu0
        %v1367 = vpop.trf.xlu0
        %1368 = vxpose.xlu0.b32.start [1/16] %v759, 128
        %1369 = vxpose.xlu0.b32.cont [2/16] %v761, 128
        %1370 = vxpose.xlu0.b32.cont [3/16] 0.0, 128
        %1371 = vxpose.xlu0.b32.cont [4/16] 0.0, 128
        %1372 = vxpose.xlu0.b32.cont [5/16] 0.0, 128
        %1373 = vxpose.xlu0.b32.cont [6/16] 0.0, 128
        %1374 = vxpose.xlu0.b32.cont [7/16] 0.0, 128
        %1375 = vxpose.xlu0.b32.cont [8/16] 0.0, 128
        %1376 = vxpose.xlu0.b32.cont [9/16] 0.0, 128
        %1377 = vxpose.xlu0.b32.cont [10/16] 0.0, 128
        %1378 = vxpose.xlu0.b32.cont [11/16] 0.0, 128
        %1379 = vxpose.xlu0.b32.cont [12/16] 0.0, 128
        %1380 = vxpose.xlu0.b32.cont [13/16] 0.0, 128
        %1381 = vxpose.xlu0.b32.cont [14/16] 0.0, 128
        %1382 = vxpose.xlu0.b32.cont [15/16] 0.0, 128
        %1383 = vxpose.xlu0.b32.end [16/16] 0.0, 128
        %v1384 = vpop.trf.xlu0
        %v1385 = vpop.trf.xlu0
        %v1386 = vpop.trf.xlu0
        %v1387 = vpop.trf.xlu0
        %v1388 = vpop.trf.xlu0
        %v1389 = vpop.trf.xlu0
        %v1390 = vpop.trf.xlu0
        %v1391 = vpop.trf.xlu0
        %v1392 = vpop.trf.xlu0
        %v1393 = vpop.trf.xlu0
        %v1394 = vpop.trf.xlu0
        %v1395 = vpop.trf.xlu0
        %v1396 = vpop.trf.xlu0
        %v1397 = vpop.trf.xlu0
        %v1398 = vpop.trf.xlu0
        %v1399 = vpop.trf.xlu0
        %1400 = vxpose.xlu0.b32.start [1/16] %v765, 128
        %1401 = vxpose.xlu0.b32.cont [2/16] %v767, 128
        %1402 = vxpose.xlu0.b32.cont [3/16] 0.0, 128
        %1403 = vxpose.xlu0.b32.cont [4/16] 0.0, 128
        %1404 = vxpose.xlu0.b32.cont [5/16] 0.0, 128
        %1405 = vxpose.xlu0.b32.cont [6/16] 0.0, 128
        %1406 = vxpose.xlu0.b32.cont [7/16] 0.0, 128
        %1407 = vxpose.xlu0.b32.cont [8/16] 0.0, 128
        %1408 = vxpose.xlu0.b32.cont [9/16] 0.0, 128
        %1409 = vxpose.xlu0.b32.cont [10/16] 0.0, 128
        %1410 = vxpose.xlu0.b32.cont [11/16] 0.0, 128
        %1411 = vxpose.xlu0.b32.cont [12/16] 0.0, 128
        %1412 = vxpose.xlu0.b32.cont [13/16] 0.0, 128
        %1413 = vxpose.xlu0.b32.cont [14/16] 0.0, 128
        %1414 = vxpose.xlu0.b32.cont [15/16] 0.0, 128
        %1415 = vxpose.xlu0.b32.end [16/16] 0.0, 128
        %v1416 = vpop.trf.xlu0
        %v1417 = vpop.trf.xlu0
        %v1418 = vpop.trf.xlu0
        %v1419 = vpop.trf.xlu0
        %v1420 = vpop.trf.xlu0
        %v1421 = vpop.trf.xlu0
        %v1422 = vpop.trf.xlu0
        %v1423 = vpop.trf.xlu0
        %v1424 = vpop.trf.xlu0
        %v1425 = vpop.trf.xlu0
        %v1426 = vpop.trf.xlu0
        %v1427 = vpop.trf.xlu0
        %v1428 = vpop.trf.xlu0
        %v1429 = vpop.trf.xlu0
        %v1430 = vpop.trf.xlu0
        %v1431 = vpop.trf.xlu0
        %v1433 = vsel %vm1215, %v1320, 0
        %v1436 = vsel %vm1215, %v1321, 0
        %v1439 = vsel %vm1215, %v1322, 0
        %v1442 = vsel %vm1215, %v1323, 0
        %v1445 = vsel %vm1215, %v1296, 0
        %v1448 = vsel %vm1215, %v1297, 0
        %1450 = vmatprep.subr.mxu0 0.0
        %1451 = vmatpush1.xpose.msra.mxu0 %v1445
        %1452 = vmatprep.subr.mxu0 0.0
        %1453 = vmatpush1.xpose.msra.mxu0 %v1448
        %1454 = vmatprep.subr.mxu0 0.0
        %1455 = vmatpush1.xpose.msra.mxu0 0.0
        %1456 = vmatprep.subr.mxu0 0.0
        %1457 = vmatpush1.xpose.msra.mxu0 0.0
        %1458 = vmatprep.subr.mxu0 0.0
        %1459 = vmatpush1.xpose.msra.mxu0 0.0
        %1460 = vmatprep.subr.mxu0 0.0
        %1461 = vmatpush1.xpose.msra.mxu0 0.0
        %1462 = vmatprep.subr.mxu0 0.0
        %1463 = vmatpush1.xpose.msra.mxu0 0.0
        %1464 = vmatprep.subr.mxu0 0.0
        %1465 = vmatpush1.xpose.msra.mxu0 0.0
        %1466 = vmatprep.subr.mxu0 0.0
        %1467 = vmatpush1.xpose.msra.mxu0 0.0
        %1468 = vmatprep.subr.mxu0 0.0
        %1469 = vmatpush1.xpose.msra.mxu0 0.0
        %1470 = vmatprep.subr.mxu0 0.0
        %1471 = vmatpush1.xpose.msra.mxu0 0.0
        %1472 = vmatprep.subr.mxu0 0.0
        %1473 = vmatpush1.xpose.msra.mxu0 0.0
        %1474 = vmatprep.subr.mxu0 0.0
        %1475 = vmatpush1.xpose.msra.mxu0 0.0
        %1476 = vmatprep.subr.mxu0 0.0
        %1477 = vmatpush1.xpose.msra.mxu0 0.0
        %1478 = vmatprep.subr.mxu0 0.0
        %1479 = vmatpush1.xpose.msra.mxu0 0.0
        %1480 = vmatprep.subr.mxu0 0.0
        %1481 = vmatpush1.xpose.msra.mxu0 0.0
        %1482 = vmatprep.subr.mxu0 0.0
        %1483 = vmatpush1.xpose.msra.mxu0 0.0
        %1484 = vmatprep.subr.mxu0 0.0
        %1485 = vmatpush1.xpose.msra.mxu0 0.0
        %1486 = vmatprep.subr.mxu0 0.0
        %1487 = vmatpush1.xpose.msra.mxu0 0.0
        %1488 = vmatprep.subr.mxu0 0.0
        %1489 = vmatpush1.xpose.msra.mxu0 0.0
        %1490 = vmatprep.subr.mxu0 0.0
        %1491 = vmatpush1.xpose.msra.mxu0 0.0
        %1492 = vmatprep.subr.mxu0 0.0
        %1493 = vmatpush1.xpose.msra.mxu0 0.0
        %1494 = vmatprep.subr.mxu0 0.0
        %1495 = vmatpush1.xpose.msra.mxu0 0.0
        %1496 = vmatprep.subr.mxu0 0.0
        %1497 = vmatpush1.xpose.msra.mxu0 0.0
        %1498 = vmatprep.subr.mxu0 0.0
        %1499 = vmatpush1.xpose.msra.mxu0 0.0
        %1500 = vmatprep.subr.mxu0 0.0
        %1501 = vmatpush1.xpose.msra.mxu0 0.0
        %1502 = vmatprep.subr.mxu0 0.0
        %1503 = vmatpush1.xpose.msra.mxu0 0.0
        %1504 = vmatprep.subr.mxu0 0.0
        %1505 = vmatpush1.xpose.msra.mxu0 0.0
        %1506 = vmatprep.subr.mxu0 0.0
        %1507 = vmatpush1.xpose.msra.mxu0 0.0
        %1508 = vmatprep.subr.mxu0 0.0
        %1509 = vmatpush1.xpose.msra.mxu0 0.0
        %1510 = vmatprep.subr.mxu0 0.0
        %1511 = vmatpush1.xpose.msra.mxu0 0.0
        %1512 = vmatprep.subr.mxu0 0.0
        %1513 = vmatpush1.xpose.msra.mxu0 0.0
        %1514 = vmatprep.mubr.f32.mxu0 0.0
        %1515 = vmatmul.mubr.f32.gmra.mrb[0].mxu0 %v1433
        %v1516 = vpop.f32.mrb[0].mxu0
        %v1517 = vadd.f32 0.0, %v1516
        %v1518 = vpop.f32.mrb[0].mxu0
        %1519 = vmatprep.mubr.f32.mxu0 0.0
        %1520 = vmatmul.mubr.f32.gmra.mrb[0].mxu0 %v1436
        %v1521 = vpop.f32.mrb[0].mxu0
        %v1522 = vadd.f32 0.0, %v1521
        %v1523 = vpop.f32.mrb[0].mxu0
        %1524 = vmatprep.mubr.f32.mxu0 0.0
        %1525 = vmatmul.mubr.f32.gmra.mrb[0].mxu0 %v1439
        %v1526 = vpop.f32.mrb[0].mxu0
        %v1527 = vadd.f32 0.0, %v1526
        %v1528 = vpop.f32.mrb[0].mxu0
        %1529 = vmatprep.mubr.f32.mxu0 0.0
        %1530 = vmatmul.mubr.f32.gmra.mrb[0].mxu0 %v1442
        %v1531 = vpop.f32.mrb[0].mxu0
        %v1532 = vadd.f32 0.0, %v1531
        %v1533 = vpop.f32.mrb[0].mxu0
        %1534 = vdwg.mxu0
        %v1536 = vsel %vm1215, %v1352, 0
        %v1539 = vsel %vm1215, %v1353, 0
        %v1542 = vsel %vm1215, %v1354, 0
        %v1545 = vsel %vm1215, %v1355, 0
        %v1548 = vsel %vm1215, %v1298, 0
        %v1551 = vsel %vm1215, %v1299, 0
        %1553 = vmatprep.subr.mxu0 0.0
        %1554 = vmatpush1.xpose.msra.mxu0 %v1548
        %1555 = vmatprep.subr.mxu0 0.0
        %1556 = vmatpush1.xpose.msra.mxu0 %v1551
        %1557 = vmatprep.subr.mxu0 0.0
        %1558 = vmatpush1.xpose.msra.mxu0 0.0
        %1559 = vmatprep.subr.mxu0 0.0
        %1560 = vmatpush1.xpose.msra.mxu0 0.0
        %1561 = vmatprep.subr.mxu0 0.0
        %1562 = vmatpush1.xpose.msra.mxu0 0.0
        %1563 = vmatprep.subr.mxu0 0.0
        %1564 = vmatpush1.xpose.msra.mxu0 0.0
        %1565 = vmatprep.subr.mxu0 0.0
        %1566 = vmatpush1.xpose.msra.mxu0 0.0
        %1567 = vmatprep.subr.mxu0 0.0
        %1568 = vmatpush1.xpose.msra.mxu0 0.0
        %1569 = vmatprep.subr.mxu0 0.0
        %1570 = vmatpush1.xpose.msra.mxu0 0.0
        %1571 = vmatprep.subr.mxu0 0.0
        %1572 = vmatpush1.xpose.msra.mxu0 0.0
        %1573 = vmatprep.subr.mxu0 0.0
        %1574 = vmatpush1.xpose.msra.mxu0 0.0
        %1575 = vmatprep.subr.mxu0 0.0
        %1576 = vmatpush1.xpose.msra.mxu0 0.0
        %1577 = vmatprep.subr.mxu0 0.0
        %1578 = vmatpush1.xpose.msra.mxu0 0.0
        %1579 = vmatprep.subr.mxu0 0.0
        %1580 = vmatpush1.xpose.msra.mxu0 0.0
        %1581 = vmatprep.subr.mxu0 0.0
        %1582 = vmatpush1.xpose.msra.mxu0 0.0
        %1583 = vmatprep.subr.mxu0 0.0
        %1584 = vmatpush1.xpose.msra.mxu0 0.0
        %1585 = vmatprep.subr.mxu0 0.0
        %1586 = vmatpush1.xpose.msra.mxu0 0.0
        %1587 = vmatprep.subr.mxu0 0.0
        %1588 = vmatpush1.xpose.msra.mxu0 0.0
        %1589 = vmatprep.subr.mxu0 0.0
        %1590 = vmatpush1.xpose.msra.mxu0 0.0
        %1591 = vmatprep.subr.mxu0 0.0
        %1592 = vmatpush1.xpose.msra.mxu0 0.0
        %1593 = vmatprep.subr.mxu0 0.0
        %1594 = vmatpush1.xpose.msra.mxu0 0.0
        %1595 = vmatprep.subr.mxu0 0.0
        %1596 = vmatpush1.xpose.msra.mxu0 0.0
        %1597 = vmatprep.subr.mxu0 0.0
        %1598 = vmatpush1.xpose.msra.mxu0 0.0
        %1599 = vmatprep.subr.mxu0 0.0
        %1600 = vmatpush1.xpose.msra.mxu0 0.0
        %1601 = vmatprep.subr.mxu0 0.0
        %1602 = vmatpush1.xpose.msra.mxu0 0.0
        %1603 = vmatprep.subr.mxu0 0.0
        %1604 = vmatpush1.xpose.msra.mxu0 0.0
        %1605 = vmatprep.subr.mxu0 0.0
        %1606 = vmatpush1.xpose.msra.mxu0 0.0
        %1607 = vmatprep.subr.mxu0 0.0
        %1608 = vmatpush1.xpose.msra.mxu0 0.0
        %1609 = vmatprep.subr.mxu0 0.0
        %1610 = vmatpush1.xpose.msra.mxu0 0.0
        %1611 = vmatprep.subr.mxu0 0.0
        %1612 = vmatpush1.xpose.msra.mxu0 0.0
        %1613 = vmatprep.subr.mxu0 0.0
        %1614 = vmatpush1.xpose.msra.mxu0 0.0
        %1615 = vmatprep.subr.mxu0 0.0
        %1616 = vmatpush1.xpose.msra.mxu0 0.0
        %1617 = vmatprep.mubr.f32.mxu0 0.0
        %1618 = vmatmul.mubr.f32.gmra.mrb[0].mxu0 %v1536
        %v1619 = vpop.f32.mrb[0].mxu0
        %v1620 = vadd.f32 0.0, %v1619
        %v1621 = vpop.f32.mrb[0].mxu0
        %1622 = vmatprep.mubr.f32.mxu0 0.0
        %1623 = vmatmul.mubr.f32.gmra.mrb[0].mxu0 %v1539
        %v1624 = vpop.f32.mrb[0].mxu0
        %v1625 = vadd.f32 0.0, %v1624
        %v1626 = vpop.f32.mrb[0].mxu0
        %1627 = vmatprep.mubr.f32.mxu0 0.0
        %1628 = vmatmul.mubr.f32.gmra.mrb[0].mxu0 %v1542
        %v1629 = vpop.f32.mrb[0].mxu0
        %v1630 = vadd.f32 0.0, %v1629
        %v1631 = vpop.f32.mrb[0].mxu0
        %1632 = vmatprep.mubr.f32.mxu0 0.0
        %1633 = vmatmul.mubr.f32.gmra.mrb[0].mxu0 %v1545
        %v1634 = vpop.f32.mrb[0].mxu0
        %v1635 = vadd.f32 0.0, %v1634
        %v1636 = vpop.f32.mrb[0].mxu0
        %1637 = vdwg.mxu0
        %v1639 = vsel %vm1215, %v1384, 0
        %v1642 = vsel %vm1215, %v1385, 0
        %v1645 = vsel %vm1215, %v1386, 0
        %v1648 = vsel %vm1215, %v1387, 0
        %v1651 = vsel %vm1215, %v1300, 0
        %v1654 = vsel %vm1215, %v1301, 0
        %1656 = vmatprep.subr.mxu0 0.0
        %1657 = vmatpush1.xpose.msra.mxu0 %v1651
        %1658 = vmatprep.subr.mxu0 0.0
        %1659 = vmatpush1.xpose.msra.mxu0 %v1654
        %1660 = vmatprep.subr.mxu0 0.0
        %1661 = vmatpush1.xpose.msra.mxu0 0.0
        %1662 = vmatprep.subr.mxu0 0.0
        %1663 = vmatpush1.xpose.msra.mxu0 0.0
        %1664 = vmatprep.subr.mxu0 0.0
        %1665 = vmatpush1.xpose.msra.mxu0 0.0
        %1666 = vmatprep.subr.mxu0 0.0
        %1667 = vmatpush1.xpose.msra.mxu0 0.0
        %1668 = vmatprep.subr.mxu0 0.0
        %1669 = vmatpush1.xpose.msra.mxu0 0.0
        %1670 = vmatprep.subr.mxu0 0.0
        %1671 = vmatpush1.xpose.msra.mxu0 0.0
        %1672 = vmatprep.subr.mxu0 0.0
        %1673 = vmatpush1.xpose.msra.mxu0 0.0
        %1674 = vmatprep.subr.mxu0 0.0
        %1675 = vmatpush1.xpose.msra.mxu0 0.0
        %1676 = vmatprep.subr.mxu0 0.0
        %1677 = vmatpush1.xpose.msra.mxu0 0.0
        %1678 = vmatprep.subr.mxu0 0.0
        %1679 = vmatpush1.xpose.msra.mxu0 0.0
        %1680 = vmatprep.subr.mxu0 0.0
        %1681 = vmatpush1.xpose.msra.mxu0 0.0
        %1682 = vmatprep.subr.mxu0 0.0
        %1683 = vmatpush1.xpose.msra.mxu0 0.0
        %1684 = vmatprep.subr.mxu0 0.0
        %1685 = vmatpush1.xpose.msra.mxu0 0.0
        %1686 = vmatprep.subr.mxu0 0.0
        %1687 = vmatpush1.xpose.msra.mxu0 0.0
        %1688 = vmatprep.subr.mxu0 0.0
        %1689 = vmatpush1.xpose.msra.mxu0 0.0
        %1690 = vmatprep.subr.mxu0 0.0
        %1691 = vmatpush1.xpose.msra.mxu0 0.0
        %1692 = vmatprep.subr.mxu0 0.0
        %1693 = vmatpush1.xpose.msra.mxu0 0.0
        %1694 = vmatprep.subr.mxu0 0.0
        %1695 = vmatpush1.xpose.msra.mxu0 0.0
        %1696 = vmatprep.subr.mxu0 0.0
        %1697 = vmatpush1.xpose.msra.mxu0 0.0
        %1698 = vmatprep.subr.mxu0 0.0
        %1699 = vmatpush1.xpose.msra.mxu0 0.0
        %1700 = vmatprep.subr.mxu0 0.0
        %1701 = vmatpush1.xpose.msra.mxu0 0.0
        %1702 = vmatprep.subr.mxu0 0.0
        %1703 = vmatpush1.xpose.msra.mxu0 0.0
        %1704 = vmatprep.subr.mxu0 0.0
        %1705 = vmatpush1.xpose.msra.mxu0 0.0
        %1706 = vmatprep.subr.mxu0 0.0
        %1707 = vmatpush1.xpose.msra.mxu0 0.0
        %1708 = vmatprep.subr.mxu0 0.0
        %1709 = vmatpush1.xpose.msra.mxu0 0.0
        %1710 = vmatprep.subr.mxu0 0.0
        %1711 = vmatpush1.xpose.msra.mxu0 0.0
        %1712 = vmatprep.subr.mxu0 0.0
        %1713 = vmatpush1.xpose.msra.mxu0 0.0
        %1714 = vmatprep.subr.mxu0 0.0
        %1715 = vmatpush1.xpose.msra.mxu0 0.0
        %1716 = vmatprep.subr.mxu0 0.0
        %1717 = vmatpush1.xpose.msra.mxu0 0.0
        %1718 = vmatprep.subr.mxu0 0.0
        %1719 = vmatpush1.xpose.msra.mxu0 0.0
        %1720 = vmatprep.mubr.f32.mxu0 0.0
        %1721 = vmatmul.mubr.f32.gmra.mrb[0].mxu0 %v1639
        %v1722 = vpop.f32.mrb[0].mxu0
        %v1723 = vadd.f32 0.0, %v1722
        %v1724 = vpop.f32.mrb[0].mxu0
        %1725 = vmatprep.mubr.f32.mxu0 0.0
        %1726 = vmatmul.mubr.f32.gmra.mrb[0].mxu0 %v1642
        %v1727 = vpop.f32.mrb[0].mxu0
        %v1728 = vadd.f32 0.0, %v1727
        %v1729 = vpop.f32.mrb[0].mxu0
        %1730 = vmatprep.mubr.f32.mxu0 0.0
        %1731 = vmatmul.mubr.f32.gmra.mrb[0].mxu0 %v1645
        %v1732 = vpop.f32.mrb[0].mxu0
        %v1733 = vadd.f32 0.0, %v1732
        %v1734 = vpop.f32.mrb[0].mxu0
        %1735 = vmatprep.mubr.f32.mxu0 0.0
        %1736 = vmatmul.mubr.f32.gmra.mrb[0].mxu0 %v1648
        %v1737 = vpop.f32.mrb[0].mxu0
        %v1738 = vadd.f32 0.0, %v1737
        %v1739 = vpop.f32.mrb[0].mxu0
        %1740 = vdwg.mxu0
        %v1742 = vsel %vm1215, %v1416, 0
        %v1745 = vsel %vm1215, %v1417, 0
        %v1748 = vsel %vm1215, %v1418, 0
        %v1751 = vsel %vm1215, %v1419, 0
        %v1754 = vsel %vm1215, %v1302, 0
        %v1757 = vsel %vm1215, %v1303, 0
        %1759 = vmatprep.subr.mxu0 0.0
        %1760 = vmatpush1.xpose.msra.mxu0 %v1754
        %1761 = vmatprep.subr.mxu0 0.0
        %1762 = vmatpush1.xpose.msra.mxu0 %v1757
        %1763 = vmatprep.subr.mxu0 0.0
        %1764 = vmatpush1.xpose.msra.mxu0 0.0
        %1765 = vmatprep.subr.mxu0 0.0
        %1766 = vmatpush1.xpose.msra.mxu0 0.0
        %1767 = vmatprep.subr.mxu0 0.0
        %1768 = vmatpush1.xpose.msra.mxu0 0.0
        %1769 = vmatprep.subr.mxu0 0.0
        %1770 = vmatpush1.xpose.msra.mxu0 0.0
        %1771 = vmatprep.subr.mxu0 0.0
        %1772 = vmatpush1.xpose.msra.mxu0 0.0
        %1773 = vmatprep.subr.mxu0 0.0
        %1774 = vmatpush1.xpose.msra.mxu0 0.0
        %1775 = vmatprep.subr.mxu0 0.0
        %1776 = vmatpush1.xpose.msra.mxu0 0.0
        %1777 = vmatprep.subr.mxu0 0.0
        %1778 = vmatpush1.xpose.msra.mxu0 0.0
        %1779 = vmatprep.subr.mxu0 0.0
        %1780 = vmatpush1.xpose.msra.mxu0 0.0
        %1781 = vmatprep.subr.mxu0 0.0
        %1782 = vmatpush1.xpose.msra.mxu0 0.0
        %1783 = vmatprep.subr.mxu0 0.0
        %1784 = vmatpush1.xpose.msra.mxu0 0.0
        %1785 = vmatprep.subr.mxu0 0.0
        %1786 = vmatpush1.xpose.msra.mxu0 0.0
        %1787 = vmatprep.subr.mxu0 0.0
        %1788 = vmatpush1.xpose.msra.mxu0 0.0
        %1789 = vmatprep.subr.mxu0 0.0
        %1790 = vmatpush1.xpose.msra.mxu0 0.0
        %1791 = vmatprep.subr.mxu0 0.0
        %1792 = vmatpush1.xpose.msra.mxu0 0.0
        %1793 = vmatprep.subr.mxu0 0.0
        %1794 = vmatpush1.xpose.msra.mxu0 0.0
        %1795 = vmatprep.subr.mxu0 0.0
        %1796 = vmatpush1.xpose.msra.mxu0 0.0
        %1797 = vmatprep.subr.mxu0 0.0
        %1798 = vmatpush1.xpose.msra.mxu0 0.0
        %1799 = vmatprep.subr.mxu0 0.0
        %1800 = vmatpush1.xpose.msra.mxu0 0.0
        %1801 = vmatprep.subr.mxu0 0.0
        %1802 = vmatpush1.xpose.msra.mxu0 0.0
        %1803 = vmatprep.subr.mxu0 0.0
        %1804 = vmatpush1.xpose.msra.mxu0 0.0
        %1805 = vmatprep.subr.mxu0 0.0
        %1806 = vmatpush1.xpose.msra.mxu0 0.0
        %1807 = vmatprep.subr.mxu0 0.0
        %1808 = vmatpush1.xpose.msra.mxu0 0.0
        %1809 = vmatprep.subr.mxu0 0.0
        %1810 = vmatpush1.xpose.msra.mxu0 0.0
        %1811 = vmatprep.subr.mxu0 0.0
        %1812 = vmatpush1.xpose.msra.mxu0 0.0
        %1813 = vmatprep.subr.mxu0 0.0
        %1814 = vmatpush1.xpose.msra.mxu0 0.0
        %1815 = vmatprep.subr.mxu0 0.0
        %1816 = vmatpush1.xpose.msra.mxu0 0.0
        %1817 = vmatprep.subr.mxu0 0.0
        %1818 = vmatpush1.xpose.msra.mxu0 0.0
        %1819 = vmatprep.subr.mxu0 0.0
        %1820 = vmatpush1.xpose.msra.mxu0 0.0
        %1821 = vmatprep.subr.mxu0 0.0
        %1822 = vmatpush1.xpose.msra.mxu0 0.0
        %1823 = vmatprep.mubr.f32.mxu0 0.0
        %1824 = vmatmul.mubr.f32.gmra.mrb[0].mxu0 %v1742
        %v1825 = vpop.f32.mrb[0].mxu0
        %v1826 = vadd.f32 0.0, %v1825
        %v1827 = vpop.f32.mrb[0].mxu0
        %1828 = vmatprep.mubr.f32.mxu0 0.0
        %1829 = vmatmul.mubr.f32.gmra.mrb[0].mxu0 %v1745
        %v1830 = vpop.f32.mrb[0].mxu0
        %v1831 = vadd.f32 0.0, %v1830
        %v1832 = vpop.f32.mrb[0].mxu0
        %1833 = vmatprep.mubr.f32.mxu0 0.0
        %1834 = vmatmul.mubr.f32.gmra.mrb[0].mxu0 %v1748
        %v1835 = vpop.f32.mrb[0].mxu0
        %v1836 = vadd.f32 0.0, %v1835
        %v1837 = vpop.f32.mrb[0].mxu0
        %1838 = vmatprep.mubr.f32.mxu0 0.0
        %1839 = vmatmul.mubr.f32.gmra.mrb[0].mxu0 %v1751
        %v1840 = vpop.f32.mrb[0].mxu0
        %v1841 = vadd.f32 0.0, %v1840
        %v1842 = vpop.f32.mrb[0].mxu0
        %1843 = vdwg.mxu0
        %1844 = vxpose.xlu0.b32.start [1/16] %v1517, 128
        %1845 = vxpose.xlu0.b32.cont [2/16] %v1522, 128
        %1846 = vxpose.xlu0.b32.cont [3/16] %v1527, 128
        %1847 = vxpose.xlu0.b32.cont [4/16] %v1532, 128
        %1848 = vxpose.xlu0.b32.cont [5/16] 0.0, 128
        %1849 = vxpose.xlu0.b32.cont [6/16] 0.0, 128
        %1850 = vxpose.xlu0.b32.cont [7/16] 0.0, 128
        %1851 = vxpose.xlu0.b32.cont [8/16] 0.0, 128
        %1852 = vxpose.xlu0.b32.cont [9/16] 0.0, 128
        %1853 = vxpose.xlu0.b32.cont [10/16] 0.0, 128
        %1854 = vxpose.xlu0.b32.cont [11/16] 0.0, 128
        %1855 = vxpose.xlu0.b32.cont [12/16] 0.0, 128
        %1856 = vxpose.xlu0.b32.cont [13/16] 0.0, 128
        %1857 = vxpose.xlu0.b32.cont [14/16] 0.0, 128
        %1858 = vxpose.xlu0.b32.cont [15/16] 0.0, 128
        %1859 = vxpose.xlu0.b32.end [16/16] 0.0, 128
        %v1860 = vpop.trf.xlu0
        %v1861 = vpop.trf.xlu0
        %v1862 = vpop.trf.xlu0
        %v1863 = vpop.trf.xlu0
        %v1864 = vpop.trf.xlu0
        %v1865 = vpop.trf.xlu0
        %v1866 = vpop.trf.xlu0
        %v1867 = vpop.trf.xlu0
        %v1868 = vpop.trf.xlu0
        %v1869 = vpop.trf.xlu0
        %v1870 = vpop.trf.xlu0
        %v1871 = vpop.trf.xlu0
        %v1872 = vpop.trf.xlu0
        %v1873 = vpop.trf.xlu0
        %v1874 = vpop.trf.xlu0
        %v1875 = vpop.trf.xlu0
        %1876 = vxpose.xlu0.b32.start [1/16] %v1620, 128
        %1877 = vxpose.xlu0.b32.cont [2/16] %v1625, 128
        %1878 = vxpose.xlu0.b32.cont [3/16] %v1630, 128
        %1879 = vxpose.xlu0.b32.cont [4/16] %v1635, 128
        %1880 = vxpose.xlu0.b32.cont [5/16] 0.0, 128
        %1881 = vxpose.xlu0.b32.cont [6/16] 0.0, 128
        %1882 = vxpose.xlu0.b32.cont [7/16] 0.0, 128
        %1883 = vxpose.xlu0.b32.cont [8/16] 0.0, 128
        %1884 = vxpose.xlu0.b32.cont [9/16] 0.0, 128
        %1885 = vxpose.xlu0.b32.cont [10/16] 0.0, 128
        %1886 = vxpose.xlu0.b32.cont [11/16] 0.0, 128
        %1887 = vxpose.xlu0.b32.cont [12/16] 0.0, 128
        %1888 = vxpose.xlu0.b32.cont [13/16] 0.0, 128
        %1889 = vxpose.xlu0.b32.cont [14/16] 0.0, 128
        %1890 = vxpose.xlu0.b32.cont [15/16] 0.0, 128
        %1891 = vxpose.xlu0.b32.end [16/16] 0.0, 128
        %v1892 = vpop.trf.xlu0
        %v1893 = vpop.trf.xlu0
        %v1894 = vpop.trf.xlu0
        %v1895 = vpop.trf.xlu0
        %v1896 = vpop.trf.xlu0
        %v1897 = vpop.trf.xlu0
        %v1898 = vpop.trf.xlu0
        %v1899 = vpop.trf.xlu0
        %v1900 = vpop.trf.xlu0
        %v1901 = vpop.trf.xlu0
        %v1902 = vpop.trf.xlu0
        %v1903 = vpop.trf.xlu0
        %v1904 = vpop.trf.xlu0
        %v1905 = vpop.trf.xlu0
        %v1906 = vpop.trf.xlu0
        %v1907 = vpop.trf.xlu0
        %1908 = vxpose.xlu0.b32.start [1/16] %v1723, 128
        %1909 = vxpose.xlu0.b32.cont [2/16] %v1728, 128
        %1910 = vxpose.xlu0.b32.cont [3/16] %v1733, 128
        %1911 = vxpose.xlu0.b32.cont [4/16] %v1738, 128
        %1912 = vxpose.xlu0.b32.cont [5/16] 0.0, 128
        %1913 = vxpose.xlu0.b32.cont [6/16] 0.0, 128
        %1914 = vxpose.xlu0.b32.cont [7/16] 0.0, 128
        %1915 = vxpose.xlu0.b32.cont [8/16] 0.0, 128
        %1916 = vxpose.xlu0.b32.cont [9/16] 0.0, 128
        %1917 = vxpose.xlu0.b32.cont [10/16] 0.0, 128
        %1918 = vxpose.xlu0.b32.cont [11/16] 0.0, 128
        %1919 = vxpose.xlu0.b32.cont [12/16] 0.0, 128
        %1920 = vxpose.xlu0.b32.cont [13/16] 0.0, 128
        %1921 = vxpose.xlu0.b32.cont [14/16] 0.0, 128
        %1922 = vxpose.xlu0.b32.cont [15/16] 0.0, 128
        %1923 = vxpose.xlu0.b32.end [16/16] 0.0, 128
        %v1924 = vpop.trf.xlu0
        %v1925 = vpop.trf.xlu0
        %v1926 = vpop.trf.xlu0
        %v1927 = vpop.trf.xlu0
        %v1928 = vpop.trf.xlu0
        %v1929 = vpop.trf.xlu0
        %v1930 = vpop.trf.xlu0
        %v1931 = vpop.trf.xlu0
        %v1932 = vpop.trf.xlu0
        %v1933 = vpop.trf.xlu0
        %v1934 = vpop.trf.xlu0
        %v1935 = vpop.trf.xlu0
        %v1936 = vpop.trf.xlu0
        %v1937 = vpop.trf.xlu0
        %v1938 = vpop.trf.xlu0
        %v1939 = vpop.trf.xlu0
        %1940 = vxpose.xlu0.b32.start [1/16] %v1826, 128
        %1941 = vxpose.xlu0.b32.cont [2/16] %v1831, 128
        %1942 = vxpose.xlu0.b32.cont [3/16] %v1836, 128
        %1943 = vxpose.xlu0.b32.cont [4/16] %v1841, 128
        %1944 = vxpose.xlu0.b32.cont [5/16] 0.0, 128
        %1945 = vxpose.xlu0.b32.cont [6/16] 0.0, 128
        %1946 = vxpose.xlu0.b32.cont [7/16] 0.0, 128
        %1947 = vxpose.xlu0.b32.cont [8/16] 0.0, 128
        %1948 = vxpose.xlu0.b32.cont [9/16] 0.0, 128
        %1949 = vxpose.xlu0.b32.cont [10/16] 0.0, 128
        %1950 = vxpose.xlu0.b32.cont [11/16] 0.0, 128
        %1951 = vxpose.xlu0.b32.cont [12/16] 0.0, 128
        %1952 = vxpose.xlu0.b32.cont [13/16] 0.0, 128
        %1953 = vxpose.xlu0.b32.cont [14/16] 0.0, 128
        %1954 = vxpose.xlu0.b32.cont [15/16] 0.0, 128
        %1955 = vxpose.xlu0.b32.end [16/16] 0.0, 128
        %v1956 = vpop.trf.xlu0
        %v1957 = vpop.trf.xlu0
        %v1958 = vpop.trf.xlu0
        %v1959 = vpop.trf.xlu0
        %v1960 = vpop.trf.xlu0
        %v1961 = vpop.trf.xlu0
        %v1962 = vpop.trf.xlu0
        %v1963 = vpop.trf.xlu0
        %v1964 = vpop.trf.xlu0
        %v1965 = vpop.trf.xlu0
        %v1966 = vpop.trf.xlu0
        %v1967 = vpop.trf.xlu0
        %v1968 = vpop.trf.xlu0
        %v1969 = vpop.trf.xlu0
        %v1970 = vpop.trf.xlu0
        %v1971 = vpop.trf.xlu0
        %v1972 = vcombine.low %v1860, %v1924
        %v1973 = vcombine.high %v1860, %v1924
        %v1975 = vunpack.c.l.s4 1983009808
        %v1976 = vunpack.c.0.s8 %v1975
        %v1977 = vlaneseq
        %v1978 = vshrl.u32 %v1977, 7
        %v1979 = vsub.s32 %v1976, %v1978
        %v1980 = vrot.slane %v1972, %v1979
        %v1982 = vunpack.c.l.s4 1983009808
        %v1983 = vunpack.c.0.s8 %v1982
        %v1984 = vlaneseq
        %v1985 = vshrl.u32 %v1984, 7
        %v1986 = vsub.s32 %v1983, %v1985
        %v1987 = vrot.slane %v1973, %v1986
        %v1988 = vcombine.low %v1892, %v1956
        %v1989 = vcombine.high %v1892, %v1956
        %v1991 = vunpack.c.l.s4 1983009808
        %v1992 = vunpack.c.0.s8 %v1991
        %v1993 = vlaneseq
        %v1994 = vshrl.u32 %v1993, 7
        %v1995 = vsub.s32 %v1992, %v1994
        %v1996 = vrot.slane %v1988, %v1995
        %v1998 = vunpack.c.l.s4 1983009808
        %v1999 = vunpack.c.0.s8 %v1998
        %v2000 = vlaneseq
        %v2001 = vshrl.u32 %v2000, 7
        %v2002 = vsub.s32 %v1999, %v2001
        %v2003 = vrot.slane %v1989, %v2002
        %v2004 = vcombine.low %v1980, %v1996
        %v2005 = vcombine.high %v1980, %v1996
        %v2007 = vunpack.c.l.s4 1934713408
        %v2008 = vunpack.c.0.s8 %v2007
        %v2009 = vlaneseq
        %v2010 = vshrl.u32 %v2009, 7
        %v2011 = vsub.s32 %v2008, %v2010
        %v2012 = vrot.slane %v2004, %v2011
        %v2014 = vunpack.c.l.s4 1934713408
        %v2015 = vunpack.c.0.s8 %v2014
        %v2016 = vlaneseq
        %v2017 = vshrl.u32 %v2016, 7
        %v2018 = vsub.s32 %v2015, %v2017
        %v2019 = vrot.slane %v2005, %v2018
        %v2020 = vcombine.low %v1987, %v2003
        %v2021 = vcombine.high %v1987, %v2003
        %v2023 = vunpack.c.l.s4 1934713408
        %v2024 = vunpack.c.0.s8 %v2023
        %v2025 = vlaneseq
        %v2026 = vshrl.u32 %v2025, 7
        %v2027 = vsub.s32 %v2024, %v2026
        %v2028 = vrot.slane %v2020, %v2027
        %v2030 = vunpack.c.l.s4 1934713408
        %v2031 = vunpack.c.0.s8 %v2030
        %v2032 = vlaneseq
        %v2033 = vshrl.u32 %v2032, 7
        %v2034 = vsub.s32 %v2031, %v2033
        %v2035 = vrot.slane %v2021, %v2034
        %v2036 = vcombine.high %v2012, 0.0
        %v2037 = vcombine.high %v2019, 0.0
        %v2038 = vcombine.high %v2028, 0.0
        %v2039 = vcombine.high %v2035, 0.0
        %v2040 = vcombine.low %v1861, %v1925
        %v2041 = vcombine.high %v1861, %v1925
        %v2043 = vunpack.c.l.s4 1983009808
        %v2044 = vunpack.c.0.s8 %v2043
        %v2045 = vlaneseq
        %v2046 = vshrl.u32 %v2045, 7
        %v2047 = vsub.s32 %v2044, %v2046
        %v2048 = vrot.slane %v2040, %v2047
        %v2050 = vunpack.c.l.s4 1983009808
        %v2051 = vunpack.c.0.s8 %v2050
        %v2052 = vlaneseq
        %v2053 = vshrl.u32 %v2052, 7
        %v2054 = vsub.s32 %v2051, %v2053
        %v2055 = vrot.slane %v2041, %v2054
        %v2056 = vcombine.low %v1893, %v1957
        %v2057 = vcombine.high %v1893, %v1957
        %v2059 = vunpack.c.l.s4 1983009808
        %v2060 = vunpack.c.0.s8 %v2059
        %v2061 = vlaneseq
        %v2062 = vshrl.u32 %v2061, 7
        %v2063 = vsub.s32 %v2060, %v2062
        %v2064 = vrot.slane %v2056, %v2063
        %v2066 = vunpack.c.l.s4 1983009808
        %v2067 = vunpack.c.0.s8 %v2066
        %v2068 = vlaneseq
        %v2069 = vshrl.u32 %v2068, 7
        %v2070 = vsub.s32 %v2067, %v2069
        %v2071 = vrot.slane %v2057, %v2070
        %v2072 = vcombine.low %v2048, %v2064
        %v2073 = vcombine.high %v2048, %v2064
        %v2075 = vunpack.c.l.s4 1934713408
        %v2076 = vunpack.c.0.s8 %v2075
        %v2077 = vlaneseq
        %v2078 = vshrl.u32 %v2077, 7
        %v2079 = vsub.s32 %v2076, %v2078
        %v2080 = vrot.slane %v2072, %v2079
        %v2082 = vunpack.c.l.s4 1934713408
        %v2083 = vunpack.c.0.s8 %v2082
        %v2084 = vlaneseq
        %v2085 = vshrl.u32 %v2084, 7
        %v2086 = vsub.s32 %v2083, %v2085
        %v2087 = vrot.slane %v2073, %v2086
        %v2088 = vcombine.low %v2055, %v2071
        %v2089 = vcombine.high %v2055, %v2071
        %v2091 = vunpack.c.l.s4 1934713408
        %v2092 = vunpack.c.0.s8 %v2091
        %v2093 = vlaneseq
        %v2094 = vshrl.u32 %v2093, 7
        %v2095 = vsub.s32 %v2092, %v2094
        %v2096 = vrot.slane %v2088, %v2095
        %v2098 = vunpack.c.l.s4 1934713408
        %v2099 = vunpack.c.0.s8 %v2098
        %v2100 = vlaneseq
        %v2101 = vshrl.u32 %v2100, 7
        %v2102 = vsub.s32 %v2099, %v2101
        %v2103 = vrot.slane %v2089, %v2102
        %v2104 = vcombine.high %v2080, 0.0
        %v2105 = vcombine.high %v2087, 0.0
        %v2106 = vcombine.high %v2096, 0.0
        %v2107 = vcombine.high %v2103, 0.0
        %v2108 = vcombine.low %v2012, %v2019
        %v2110 = vunpack.c.l.s4 1983009808
        %v2111 = vunpack.c.0.s8 %v2110
        %v2112 = vlaneseq
        %v2113 = vshrl.u32 %v2112, 7
        %v2114 = vsub.s32 %v2111, %v2113
        %v2115 = vrot.slane %v2108, %v2114
        %v2116 = vcombine.low %v2036, %v2037
        %v2118 = vunpack.c.l.s4 1983009808
        %v2119 = vunpack.c.0.s8 %v2118
        %v2120 = vlaneseq
        %v2121 = vshrl.u32 %v2120, 7
        %v2122 = vsub.s32 %v2119, %v2121
        %v2123 = vrot.slane %v2116, %v2122
        %v2124 = vcombine.low %v2028, %v2035
        %v2126 = vunpack.c.l.s4 1983009808
        %v2127 = vunpack.c.0.s8 %v2126
        %v2128 = vlaneseq
        %v2129 = vshrl.u32 %v2128, 7
        %v2130 = vsub.s32 %v2127, %v2129
        %v2131 = vrot.slane %v2124, %v2130
        %v2132 = vcombine.low %v2038, %v2039
        %v2134 = vunpack.c.l.s4 1983009808
        %v2135 = vunpack.c.0.s8 %v2134
        %v2136 = vlaneseq
        %v2137 = vshrl.u32 %v2136, 7
        %v2138 = vsub.s32 %v2135, %v2137
        %v2139 = vrot.slane %v2132, %v2138
        %v2140 = vcombine.low %v2115, %v2123
        %v2141 = vcombine.high %v2115, %v2123
        %v2143 = vunpack.c.l.s4 1934713408
        %v2144 = vunpack.c.0.s8 %v2143
        %v2145 = vlaneseq
        %v2146 = vshrl.u32 %v2145, 7
        %v2147 = vsub.s32 %v2144, %v2146
        %v2148 = vrot.slane %v2140, %v2147
        %v2150 = vunpack.c.l.s4 1934713408
        %v2151 = vunpack.c.0.s8 %v2150
        %v2152 = vlaneseq
        %v2153 = vshrl.u32 %v2152, 7
        %v2154 = vsub.s32 %v2151, %v2153
        %v2155 = vrot.slane %v2141, %v2154
        %v2156 = vcombine.low %v2131, %v2139
        %v2157 = vcombine.high %v2131, %v2139
        %v2159 = vunpack.c.l.s4 1934713408
        %v2160 = vunpack.c.0.s8 %v2159
        %v2161 = vlaneseq
        %v2162 = vshrl.u32 %v2161, 7
        %v2163 = vsub.s32 %v2160, %v2162
        %v2164 = vrot.slane %v2156, %v2163
        %v2166 = vunpack.c.l.s4 1934713408
        %v2167 = vunpack.c.0.s8 %v2166
        %v2168 = vlaneseq
        %v2169 = vshrl.u32 %v2168, 7
        %v2170 = vsub.s32 %v2167, %v2169
        %v2171 = vrot.slane %v2157, %v2170
        %v2172 = vcombine.low %v2148, %v2164
        %v2173 = vcombine.high %v2148, %v2164
        %v2174 = vcombine.low %v2155, %v2171
        %v2175 = vcombine.high %v2155, %v2171
        %v2176 = vcombine.low %v2080, %v2087
        %v2178 = vunpack.c.l.s4 1983009808
        %v2179 = vunpack.c.0.s8 %v2178
        %v2180 = vlaneseq
        %v2181 = vshrl.u32 %v2180, 7
        %v2182 = vsub.s32 %v2179, %v2181
        %v2183 = vrot.slane %v2176, %v2182
        %v2184 = vcombine.low %v2104, %v2105
        %v2186 = vunpack.c.l.s4 1983009808
        %v2187 = vunpack.c.0.s8 %v2186
        %v2188 = vlaneseq
        %v2189 = vshrl.u32 %v2188, 7
        %v2190 = vsub.s32 %v2187, %v2189
        %v2191 = vrot.slane %v2184, %v2190
        %v2192 = vcombine.low %v2096, %v2103
        %v2194 = vunpack.c.l.s4 1983009808
        %v2195 = vunpack.c.0.s8 %v2194
        %v2196 = vlaneseq
        %v2197 = vshrl.u32 %v2196, 7
        %v2198 = vsub.s32 %v2195, %v2197
        %v2199 = vrot.slane %v2192, %v2198
        %v2200 = vcombine.low %v2106, %v2107
        %v2202 = vunpack.c.l.s4 1983009808
        %v2203 = vunpack.c.0.s8 %v2202
        %v2204 = vlaneseq
        %v2205 = vshrl.u32 %v2204, 7
        %v2206 = vsub.s32 %v2203, %v2205
        %v2207 = vrot.slane %v2200, %v2206
        %v2208 = vcombine.low %v2183, %v2191
        %v2209 = vcombine.high %v2183, %v2191
        %v2211 = vunpack.c.l.s4 1934713408
        %v2212 = vunpack.c.0.s8 %v2211
        %v2213 = vlaneseq
        %v2214 = vshrl.u32 %v2213, 7
        %v2215 = vsub.s32 %v2212, %v2214
        %v2216 = vrot.slane %v2208, %v2215
        %v2218 = vunpack.c.l.s4 1934713408
        %v2219 = vunpack.c.0.s8 %v2218
        %v2220 = vlaneseq
        %v2221 = vshrl.u32 %v2220, 7
        %v2222 = vsub.s32 %v2219, %v2221
        %v2223 = vrot.slane %v2209, %v2222
        %v2224 = vcombine.low %v2199, %v2207
        %v2225 = vcombine.high %v2199, %v2207
        %v2227 = vunpack.c.l.s4 1934713408
        %v2228 = vunpack.c.0.s8 %v2227
        %v2229 = vlaneseq
        %v2230 = vshrl.u32 %v2229, 7
        %v2231 = vsub.s32 %v2228, %v2230
        %v2232 = vrot.slane %v2224, %v2231
        %v2234 = vunpack.c.l.s4 1934713408
        %v2235 = vunpack.c.0.s8 %v2234
        %v2236 = vlaneseq
        %v2237 = vshrl.u32 %v2236, 7
        %v2238 = vsub.s32 %v2235, %v2237
        %v2239 = vrot.slane %v2225, %v2238
        %v2240 = vcombine.low %v2216, %v2232
        %v2241 = vcombine.high %v2216, %v2232
        %v2242 = vcombine.low %v2223, %v2239
        %v2243 = vcombine.high %v2223, %v2239
        %2246 = vrot.lane.b32.xlu0 %v2173, 32
        %v2247 = vpop.permute.xlu0 %2246
        %2248 = vrot.lane.b32.xlu0 %v2241, 32
        %v2249 = vpop.permute.xlu0 %2248
        %2254 = vrot.lane.b32.xlu0 %v2174, 64
        %v2255 = vpop.permute.xlu0 %2254
        %2256 = vrot.lane.b32.xlu0 %v2242, 64
        %v2257 = vpop.permute.xlu0 %2256
        %2262 = vrot.lane.b32.xlu0 %v2175, 96
        %v2263 = vpop.permute.xlu0 %2262
        %2264 = vrot.lane.b32.xlu0 %v2243, 96
        %v2265 = vpop.permute.xlu0 %2264
        %v2268 = vsel %vm898, %v2172, %v2247
        %v2269 = vsel %vm898, %v2240, %v2249
        %vm2270 = vcmask 523264
        %v2271 = vsel %vm2270, %v2268, %v2255
        %v2272 = vsel %vm2270, %v2269, %v2257
        %vm2273 = vcmask 785408
        %v2274 = vsel %vm2273, %v2271, %v2263
        %v2275 = vsel %vm2273, %v2272, %v2265
        %v2276 = vld [vmem:[#allocation11] sm:$0xff]
        %v2277 = vld [vmem:[#allocation11 + $0x8] sm:$0xff]
        %v2278 = vld [vmem:[#allocation11 + $0x10] sm:$0xff]
        %v2279 = vld [vmem:[#allocation11 + $0x18] sm:$0xff]
        %v2280 = vld [vmem:[#allocation11 + $0x20] sm:$0xff]
        %v2281 = vld [vmem:[#allocation11 + $0x28] sm:$0xff]
        %v2282 = vld [vmem:[#allocation11 + $0x30] sm:$0xff]
        %v2283 = vld [vmem:[#allocation11 + $0x38] sm:$0xff]
        %v2284 = vld [vmem:[#allocation11 + $0x40] sm:$0xff]
        %v2285 = vld [vmem:[#allocation11 + $0x48] sm:$0xff]
        %v2286 = vld [vmem:[#allocation11 + $0x50] sm:$0xff]
        %v2287 = vld [vmem:[#allocation11 + $0x58] sm:$0xff]
        %v2288 = vld [vmem:[#allocation11 + $0x60] sm:$0xff]
        %v2289 = vld [vmem:[#allocation11 + $0x68] sm:$0xff]
        %v2290 = vld [vmem:[#allocation11 + $0x70] sm:$0xff]
        %v2291 = vld [vmem:[#allocation11 + $0x78] sm:$0xff]
        %v2292 = vld [vmem:[%s7] sm:$0x1]
        %v2294 = vlaneseq
        %v2295 = vshrl.u32 %v2294, 7
        %v2296 = vsub.s32 0, %v2295
        %v2297 = vrot.slane %v2292, %v2296
        %2299 = vmatprep.subr.mxu0 0.0
        %2300 = vmatpush1.msra.mxu0 %v2276
        %2301 = vmatprep.subr.mxu0 0.0
        %2302 = vmatpush1.msra.mxu0 %v2277
        %2303 = vmatprep.subr.mxu0 0.0
        %2304 = vmatpush1.msra.mxu0 %v2278
        %2305 = vmatprep.subr.mxu0 0.0
        %2306 = vmatpush1.msra.mxu0 %v2279
        %2307 = vmatprep.subr.mxu0 0.0
        %2308 = vmatpush1.msra.mxu0 %v2280
        %2309 = vmatprep.subr.mxu0 0.0
        %2310 = vmatpush1.msra.mxu0 %v2281
        %2311 = vmatprep.subr.mxu0 0.0
        %2312 = vmatpush1.msra.mxu0 %v2282
        %2313 = vmatprep.subr.mxu0 0.0
        %2314 = vmatpush1.msra.mxu0 %v2283
        %2315 = vmatprep.subr.mxu0 0.0
        %2316 = vmatpush1.msra.mxu0 %v2284
        %2317 = vmatprep.subr.mxu0 0.0
        %2318 = vmatpush1.msra.mxu0 %v2285
        %2319 = vmatprep.subr.mxu0 0.0
        %2320 = vmatpush1.msra.mxu0 %v2286
        %2321 = vmatprep.subr.mxu0 0.0
        %2322 = vmatpush1.msra.mxu0 %v2287
        %2323 = vmatprep.subr.mxu0 0.0
        %2324 = vmatpush1.msra.mxu0 %v2288
        %2325 = vmatprep.subr.mxu0 0.0
        %2326 = vmatpush1.msra.mxu0 %v2289
        %2327 = vmatprep.subr.mxu0 0.0
        %2328 = vmatpush1.msra.mxu0 %v2290
        %2329 = vmatprep.subr.mxu0 0.0
        %2330 = vmatpush1.msra.mxu0 %v2291
        %2331 = vmatprep.subr.mxu0 0.0
        %2332 = vmatpush1.msra.mxu0 0.0
        %2333 = vmatprep.subr.mxu0 0.0
        %2334 = vmatpush1.msra.mxu0 0.0
        %2335 = vmatprep.subr.mxu0 0.0
        %2336 = vmatpush1.msra.mxu0 0.0
        %2337 = vmatprep.subr.mxu0 0.0
        %2338 = vmatpush1.msra.mxu0 0.0
        %2339 = vmatprep.subr.mxu0 0.0
        %2340 = vmatpush1.msra.mxu0 0.0
        %2341 = vmatprep.subr.mxu0 0.0
        %2342 = vmatpush1.msra.mxu0 0.0
        %2343 = vmatprep.subr.mxu0 0.0
        %2344 = vmatpush1.msra.mxu0 0.0
        %2345 = vmatprep.subr.mxu0 0.0
        %2346 = vmatpush1.msra.mxu0 0.0
        %2347 = vmatprep.subr.mxu0 0.0
        %2348 = vmatpush1.msra.mxu0 0.0
        %2349 = vmatprep.subr.mxu0 0.0
        %2350 = vmatpush1.msra.mxu0 0.0
        %2351 = vmatprep.subr.mxu0 0.0
        %2352 = vmatpush1.msra.mxu0 0.0
        %2353 = vmatprep.subr.mxu0 0.0
        %2354 = vmatpush1.msra.mxu0 0.0
        %2355 = vmatprep.subr.mxu0 0.0
        %2356 = vmatpush1.msra.mxu0 0.0
        %2357 = vmatprep.subr.mxu0 0.0
        %2358 = vmatpush1.msra.mxu0 0.0
        %2359 = vmatprep.subr.mxu0 0.0
        %2360 = vmatpush1.msra.mxu0 0.0
        %2361 = vmatprep.subr.mxu0 0.0
        %2362 = vmatpush1.msra.mxu0 0.0
        %2363 = vmatprep.mubr.f32.mxu0 0.0
        %2364 = vmatmul.mubr.f32.gmra.mrb[0].mxu0 %v2274
        %v2365 = vpop.f32.mrb[0].mxu0
        %v2366 = vadd.f32 %v2297, %v2365
        %v2367 = vpop.f32.mrb[0].mxu0
        %2368 = vmatprep.mubr.f32.mxu0 0.0
        %2369 = vmatmul.mubr.f32.gmra.mrb[0].mxu0 %v2275
        %v2370 = vpop.f32.mrb[0].mxu0
        %v2371 = vadd.f32 %v2297, %v2370
        %v2372 = vpop.f32.mrb[0].mxu0
        %2373 = vdwg.mxu0
        %v2374 = vadd.f32 %v2366, %v481
        %v2375 = vadd.f32 %v2371, %v482
        %2376 = vadd.xlane.f32.xlu0 %v2374
        %v2377 = vpop.xlane.xlu0 %2376
        %2378 = vadd.xlane.f32.xlu0 %v2375
        %v2379 = vpop.xlane.xlu0 %2378
        %v2380 = vrcp.pop 128.0
        %v2381 = vmul.f32 %v2377, %v2380
        %v2382 = vmul.f32 %v2379, %v2380
        %v2383 = vsub.f32 %v2374, %v2381
        %v2384 = vsub.f32 %v2375, %v2382
        %v2385 = vmul.f32 %v2383, %v2383
        %v2386 = vmul.f32 %v2384, %v2384
        %2387 = vadd.xlane.f32.xlu0 %v2385
        %v2388 = vpop.xlane.xlu0 %2387
        %2389 = vadd.xlane.f32.xlu0 %v2386
        %v2390 = vpop.xlane.xlu0 %2389
        %v2391 = vmul.f32 %v2388, %v2380
        %v2392 = vmul.f32 %v2390, %v2380
        %v2393 = vadd.f32 %v2391, 1e-05
        %v2394 = vadd.f32 %v2392, 1e-05
        %v2395 = vrsqrt.pop %v2393
        %v2396 = vrsqrt.pop %v2394
        %v2397 = vmul.f32 %v2383, %v2395
        %v2398 = vmul.f32 %v2384, %v2396
        %v2399 = vld [vmem:[%s8] sm:$0x1]
        %v2401 = vlaneseq
        %v2402 = vshrl.u32 %v2401, 7
        %v2403 = vsub.s32 0, %v2402
        %v2404 = vrot.slane %v2399, %v2403
        %v2406 = vmul.f32 %v2397, %v2404
        %v2407 = vmul.f32 %v2398, %v2404
        %v2408 = vld [vmem:[%s9] sm:$0x1]
        %v2410 = vlaneseq
        %v2411 = vshrl.u32 %v2410, 7
        %v2412 = vsub.s32 0, %v2411
        %v2413 = vrot.slane %v2408, %v2412
        %v2415 = vadd.f32 %v2406, %v2413
        %v2416 = vadd.f32 %v2407, %v2413
        %2417 = vst [vmem:[%s478] sm:$0xff] %v2415
        %2418 = vst [vmem:[%s478 + $0x8] sm:$0xff] %v2416
        %s2419 = sand.u32 %s275, 1
        %s2420 = scalar_lea.sflag [#allocation5], %s2419
        %s2421 = sand.u32 %s275, 1
        %s2422 = smul.addr %s2421, 16
        %s2423 = scalar_lea.vmem [#allocation12], %s2422
        // Predicated region
        $region85: #{tpu_custom_call.1} parent=59 // pred_check
          %p2424 = pneg %p285
        $region86: #{tpu_custom_call.1} parent=59 // pred_check_branch
          %2426 = sbr.rel (%p2424) target = $region88
        $region87: #{tpu_custom_call.1} parent=59 // pred_region
          %s2427 = smul.u32 2, %s36
          %s2429 = ssub.s32 256, 256
          %2430 = vsyncadd %s2420, %s2429
          %s2431 = smul.addr %s35, 2
          %s2432 = sadd.s32 %s2427, %s2431
          %s2433 = smul.addr %s2432, 128
          %s2434 = scalar_lea.hbm %s10, %s2433
          %s2435 = sshll.u32 %s2423, 4
          %s2436 = int_to_ptr.vmem [resolvable:$true] %s2435
          %2441 = dma.vmem_to_hbm [thread:$0]  %s2436, 256, %s2434, %s2420, 128, 128, 8
        $region88: #{tpu_custom_call.1} parent=59 // pred_fallthru
          _
      $region60: #{tpu_custom_call.1} parent=5 // pred_fallthru
        _
      %p2442 = scmp.le.s32.totalorder 2, %s26
      // Predicated region
      $region89: #{tpu_custom_call.1} parent=5 // pred_check
        %p2443 = pneg %p2442
      $region90: #{tpu_custom_call.1} parent=5 // pred_check_branch
        %2445 = sbr.rel (%p2443) target = $region92
      $region91: #{tpu_custom_call.1} parent=5 // pred_region
        %s2446 = ssub.s32 %s26, 2
        // Predicated region
        $region93: #{tpu_custom_call.1} parent=91 // pred_check
          %p2447 = pneg %p291
        $region94: #{tpu_custom_call.1} parent=91 // pred_check_branch
          %2449 = sbr.rel (%p2447) target = $region96
        $region95: #{tpu_custom_call.1} parent=91 // pred_region
          %s2450 = sand.u32 %s276, 1
          %s2451 = scalar_lea.sflag [#allocation5], %s2450
          %s2452 = sand.u32 %s276, 1
          %s2453 = smul.addr %s2452, 16
          %s2454 = scalar_lea.vmem [#allocation12], %s2453
          %2455 = dma.done %s2451, 256
        $region96: #{tpu_custom_call.1} parent=91 // pred_fallthru
          _
      $region92: #{tpu_custom_call.1} parent=5 // pred_fallthru
        _
    $region6: #{tpu_custom_call.1} parent=1 // loop_footer
      %s30 = sadd.s32 1, %s26
    $region7: #{tpu_custom_call.1} parent=1 // loop_footer_branch
      %25 = sbr.rel target = $region3
    $region8: #{tpu_custom_call.1} parent=1 // loop_exit
      _
    %2456 = vsyncpa [#allocation4], 1
    %s2457 = scalar_lea.sflag [#allocation4], 1
    %2458 = vsyncpa %s2457, 1
    %2459 = vsyncpa [#allocation7], 1
    %s2460 = scalar_lea.sflag [#allocation7], 1
    %2461 = vsyncpa %s2460, 1
    %2462 = vsyncpa [#allocation10], 1
    %2463 = vsyncpa [#allocation5], 1
    %s2464 = scalar_lea.sflag [#allocation5], 1
    %2465 = vsyncpa %s2464, 1

</llo_original>
